<compile_context>
chip_gen: v7x
topology: tpu7x:2x2x1
jax: 0.10.0
libtpu: 0.0.40
codegen_flags: <defaults>
</compile_context>

<pallas_src>
import jax
import jax.numpy as jnp
from jax.experimental import pallas as pl
from jax.experimental.pallas import tpu as pltpu

Z_DIM = 128 * 6            # 768   (encoder latent per view * 6 views)
OUT_DIM = 19 * 19 * 5      # 1805  (fc1 output size)
GRID = 19
CELL = 80.0 / 19.0         # grid_size / 19 scaling on box channels


def _head_tiling():
    """Pick (padded width, tile width) per TPU generation.

    v7x has 2 TensorCores -> even 2-way split (pad to 2048, TN=1024).
    v5e/v6e have 1 TC -> a single lane-dense 1920-wide tile (15*128), no
    extra grid-step overhead.
    """
    try:
        kind = jax.devices()[0].device_kind.lower()
    except Exception:
        kind = ""
    if "v7" in kind:
        return 2048, 1024          # 2 tiles: even megacore split
    return 1920, 1920              # 1 tile: single-TC chips


def det_head_kernel(z_ref, w_ref, bs_ref, o_ref):
    """Fused fc1 tile + sigmoid + per-channel scale.

    out = sigmoid(z @ W_tile + bias_tile) * scale_tile
    z_ref : [B, 768]      bf16
    w_ref : [1, 768, TN]  bf16  (pre-packed contiguous tile)
    bs_ref: [2, TN]       f32   (row 0 = bias, row 1 = scale)
    """
    # bf16 x bf16 -> f32 accumulation on the MXU.
    logits = jnp.dot(z_ref[...], w_ref[0], preferred_element_type=jnp.float32)
    logits = logits + bs_ref[0:1, :]             # broadcast bias [1, TN]
    s = jax.nn.sigmoid(logits)                   # EUP/VPU elementwise
    o_ref[...] = (s * bs_ref[1:2, :]).astype(o_ref.dtype)


def detection_head(z_bf16, w_tiles, bs_pad):
    """z:[B,768] bf16, w_tiles:[n_tiles,768,TN] bf16, bs_pad:[2,n_tiles*TN] f32."""
    B = z_bf16.shape[0]
    n_tiles, _, tn = w_tiles.shape
    out_pad = n_tiles * tn
    return pl.pallas_call(
        det_head_kernel,
        out_shape=jax.ShapeDtypeStruct((B, out_pad), jnp.float32),
        grid=(n_tiles,),
        in_specs=[
            pl.BlockSpec((B, Z_DIM), lambda j: (0, 0)),        # z resident
            pl.BlockSpec((1, Z_DIM, tn), lambda j: (j, 0, 0)),  # contiguous weight tile
            pl.BlockSpec((2, tn), lambda j: (0, j)),            # fused bias+scale
        ],
        out_specs=pl.BlockSpec((B, tn), lambda j: (0, j)),
        compiler_params=pltpu.CompilerParams(
            dimension_semantics=("parallel",)),                 # v7x: shard tiles across TCs
    )(z_bf16, w_tiles, bs_pad)


def prepare_head_params(w_fc1, b_fc1, out_pad, tn):
    """One-time prep: pad 1805 -> out_pad cols, cast weight to bf16, pre-pack
    per-tile contiguous layout, and build the fused (bias, scale) operand.

    Padded cols have W=0, b=0, scale=1 -> sigmoid(0)=0.5; sliced off before
    the (19,19,5) reshape.  Re-run this if w_fc1/b_fc1 ever change.
    """
    n_tiles = out_pad // tn
    w_pad = jnp.zeros((Z_DIM, out_pad), jnp.float32).at[:, :OUT_DIM].set(w_fc1)
    # [768, out_pad] -> [n_tiles, 768, TN] so each tile DMA is fully contiguous.
    w_tiles = (w_pad.astype(jnp.bfloat16)
               .reshape(Z_DIM, n_tiles, tn)
               .transpose(1, 0, 2))

    cols = jnp.arange(OUT_DIM)
    scale = jnp.where(cols % 5 == 0, 1.0, CELL).astype(jnp.float32)
    bs = jnp.zeros((2, out_pad), jnp.float32)
    bs = bs.at[0, :OUT_DIM].set(b_fc1.reshape(-1))   # bias row
    bs = bs.at[1, :].set(1.0)
    bs = bs.at[1, :OUT_DIM].set(scale)               # scale row
    return w_tiles, bs


def synthetic_encoder(x, w_enc, b_enc):
    # TODO(synk): the real encoder is an externally-injected module (passed to
    # __init__) with unspecified architecture; substitute a deterministic
    # pooled-linear stub that reproduces the (h, z) interface with z:[N, 128].
    # Pool in bf16 (f32 accumulation) to halve the dominant input read.
    pooled = jnp.mean(x.astype(jnp.bfloat16), axis=(2, 3), dtype=jnp.float32)
    h = pooled                                   # unused by DetectionModel.forward
    z = jnp.tanh(pooled @ w_enc + b_enc)         # [N, 128]
    return h, z


def detection_model_forward(batch, w_enc, b_enc, w_tiles, bs_pad):
    bs = batch.shape[0]
    # TODO(synk): passing the batch to the encoder already in bf16 (caller-side)
    # would remove the remaining f32 input read; outside the head kernel.
    x = batch.reshape(bs * 6, 3, 256, 306)
    _h, z = synthetic_encoder(x, w_enc, b_enc)   # z: [bs*6, 128]
    z = z.reshape(bs, Z_DIM).astype(jnp.bfloat16)
    out_pad = detection_head(z, w_tiles, bs_pad)
    out_flat = out_pad[:, :OUT_DIM]              # drop padded columns
    return out_flat.reshape(bs, GRID, GRID, 5)   # [bs, 19, 19, 5] channel-last


def reference_forward(batch, w_enc, b_enc, w_fc1, b_fc1):
    """Pure-JAX f32 reference mirroring the PyTorch forward (same encoder stub)."""
    bs = batch.shape[0]
    x = batch.reshape(bs * 6, 3, 256, 306)
    _h, z = synthetic_encoder(x, w_enc, b_enc)
    z = z.reshape(bs, Z_DIM)
    out = (z @ w_fc1 + b_fc1).reshape(bs, GRID, GRID, 5)
    out = out.at[..., 0].set(jax.nn.sigmoid(out[..., 0]))
    out = out.at[..., 1:].set(CELL * jax.nn.sigmoid(out[..., 1:]))
    return out


if __name__ == "__main__":
    key = jax.random.PRNGKey(0)
    kx, kw1, kb1, kwe, kbe = jax.random.split(key, 5)

    B = 2
    # input consistent with forward(): [batch, 6, 3, 256, 306]
    batch = jax.random.normal(kx, (B, 6, 3, 256, 306), dtype=jnp.float32)

    # deterministic synthetic parameters (shapes from the module's __init__)
    w_fc1 = jax.random.normal(kw1, (Z_DIM, OUT_DIM), dtype=jnp.float32) * 0.02
    b_fc1 = jax.random.normal(kb1, (OUT_DIM,), dtype=jnp.float32) * 0.02
    w_enc = jax.random.normal(kwe, (3, 128), dtype=jnp.float32) * 0.1
    b_enc = jax.random.normal(kbe, (128,), dtype=jnp.float32) * 0.1

    # One-time head-parameter prep, hoisted out of the per-call forward.
    out_pad_width, tn = _head_tiling()
    w_tiles, bs_pad = prepare_head_params(w_fc1, b_fc1, out_pad_width, tn)
    w_tiles, bs_pad = jax.block_until_ready((w_tiles, bs_pad))

    fwd = jax.jit(detection_model_forward)
    out = fwd(batch, w_enc, b_enc, w_tiles, bs_pad)
    out = jax.block_until_ready(out)

    assert out.shape == (B, GRID, GRID, 5), out.shape
    assert out.dtype == jnp.float32

    # Correctness vs. pure-JAX f32 reference (loose tol for bf16 weight stream).
    ref = jax.block_until_ready(
        jax.jit(reference_forward)(batch, w_enc, b_enc, w_fc1, b_fc1))
    assert jnp.allclose(out, ref, atol=2e-2, rtol=2e-2), float(
        jnp.max(jnp.abs(out - ref)))

    # sanity: channel 0 is a plain sigmoid, channels 1: scaled by 80/19
    assert bool(jnp.all((out[..., 0] >= 0.0) & (out[..., 0] <= 1.0)))
    assert bool(jnp.all((out[..., 1:] >= 0.0) & (out[..., 1:] <= CELL)))
    print("KERNEL_OK")
</pallas_src>

<mosaic_0001>
module attributes {stable_mosaic.version = 11 : i64} {
  func.func @det_head_kernel(%arg0: i32, %arg1: memref<2x768xbf16, #tpu.memory_space<vmem>>, %arg2: memref<1x768x1920xbf16, #tpu.memory_space<vmem>>, %arg3: memref<2x1920xf32, #tpu.memory_space<vmem>>, %arg4: memref<2x1920xf32, #tpu.memory_space<vmem>>) attributes {dimension_semantics = [#tpu.dimension_semantics<parallel>], iteration_bounds = array<i64: 1>, scalar_prefetch = 0 : i64, scratch_operands = 0 : i64, tpu.core_type = #tpu.core_type<tc>, window_params = [{pipeline_mode = #tpu.pipeline_mode<synchronous>, transform_indices = @transform_0, window_bounds = array<i64: 2, 768>}, {transform_indices = @transform_1, window_bounds = array<i64: 1, 768, 1920>}, {transform_indices = @transform_2, window_bounds = array<i64: 2, 1920>}, {transform_indices = @transform_3, window_bounds = array<i64: 2, 1920>}]} {
    %c0 = arith.constant 0 : index
    %c0_0 = arith.constant 0 : index
    %0 = vector.load %arg1[%c0, %c0_0] : memref<2x768xbf16, #tpu.memory_space<vmem>>, vector<2x768xbf16>
    %c0_1 = arith.constant 0 : index
    %c0_2 = arith.constant 0 : index
    %c0_3 = arith.constant 0 : index
    %1 = vector.load %arg2[%c0_1, %c0_2, %c0_3] : memref<1x768x1920xbf16, #tpu.memory_space<vmem>>, vector<1x768x1920xbf16>
    %2 = vector.shape_cast %1 : vector<1x768x1920xbf16> to vector<768x1920xbf16>
    %cst = arith.constant dense<0.000000e+00> : vector<2x1920xf32>
    %3 = tpu.matmul %0, %2, %cst {dimension_numbers = #tpu.dot_dimension_numbers<[1], [0], [0], [1], [0, 0, 1, 1], [], []>} : vector<2x768xbf16>, vector<768x1920xbf16>, vector<2x1920xf32> -> vector<2x1920xf32>
    %c0_4 = arith.constant 0 : index
    %c0_5 = arith.constant 0 : index
    %4 = vector.load %arg3[%c0_4, %c0_5] : memref<2x1920xf32, #tpu.memory_space<vmem>>, vector<1x1920xf32>
    %5 = vector.broadcast %4 : vector<1x1920xf32> to vector<2x1920xf32>
    %6 = arith.addf %3, %5 : vector<2x1920xf32>
    %7 = arith.negf %6 : vector<2x1920xf32>
    %8 = math.exp %7 : vector<2x1920xf32>
    %cst_6 = arith.constant 1.000000e+00 : f32
    %9 = vector.broadcast %cst_6 : f32 to vector<2x1920xf32>
    %10 = arith.addf %9, %8 : vector<2x1920xf32>
    %11 = arith.divf %9, %10 : vector<2x1920xf32>
    %c1 = arith.constant 1 : index
    %c0_7 = arith.constant 0 : index
    %12 = vector.load %arg3[%c1, %c0_7] : memref<2x1920xf32, #tpu.memory_space<vmem>>, vector<1x1920xf32>
    %13 = vector.broadcast %12 : vector<1x1920xf32> to vector<2x1920xf32>
    %14 = arith.mulf %11, %13 : vector<2x1920xf32>
    %c0_8 = arith.constant 0 : index
    %c0_9 = arith.constant 0 : index
    %15 = vector.load %arg4[%c0_8, %c0_9] : memref<2x1920xf32, #tpu.memory_space<vmem>>, vector<2x1920xf32>
    tpu.vector_store %arg4[%c0_8, %c0_9], %14 {strides = array<i32>} : memref<2x1920xf32, #tpu.memory_space<vmem>>, vector<2x1920xf32>,
    return
  }
  func.func @transform_0(%arg0: i32) -> (i32, i32) {
    %c0_i32 = arith.constant 0 : i32
    %c0_i32_0 = arith.constant 0 : i32
    %c0_i32_1 = arith.constant 0 : i32
    return %c0_i32, %c0_i32_0 : i32, i32
  }
  func.func @transform_1(%arg0: i32) -> (i32, i32, i32) {
    %c0_i32 = arith.constant 0 : i32
    %c0_i32_0 = arith.constant 0 : i32
    %c0_i32_1 = arith.constant 0 : i32
    return %arg0, %c0_i32, %c0_i32_0 : i32, i32, i32
  }
  func.func @transform_2(%arg0: i32) -> (i32, i32) {
    %c0_i32 = arith.constant 0 : i32
    %c0_i32_0 = arith.constant 0 : i32
    return %c0_i32, %arg0 : i32, i32
  }
  func.func @transform_3(%arg0: i32) -> (i32, i32) {
    %c0_i32 = arith.constant 0 : i32
    %c0_i32_0 = arith.constant 0 : i32
    return %c0_i32, %arg0 : i32, i32
  }
}

</mosaic_0001>

<llo_original>
// kernel: detection_model_forward.1
$region0: #{detection_model_forward.1}
  #allocation0 [shape = 'u32[]', space=smem, size = 0x4, offset = 0x4, fixed_abs, tag = 'smem constant byte address 0x4 - core index']
  #allocation1 [shape = 'u32[144,128]{1,0:T(1,128)}', space=vmem, size = 0x12000, scoped, tag = 'internal scratch']
  %s0 = inlined_call_operand.vmem [shape: bf16[2,768], index: 0, kind: input, shape index: {}]
  %s1 = inlined_call_operand.vmem [shape: bf16[1,768,1920], index: 1, kind: input, shape index: {}]
  %s2 = inlined_call_operand.vmem [shape: f32[2,1920], index: 2, kind: input, shape index: {}]
  %s3 = inlined_call_operand.vmem [shape: f32[2,1920], index: 3, kind: output, shape index: {}]
  %s4 = sld [smem:[#allocation0]]
  $region22: #{detection_model_forward.1} parent=0
    _
  %s6 = ssub.s32 1, %s4
  %s7 = scalar_select 0, %s6, %s4
  // Predicated region
  $region2: #{detection_model_forward.1} parent=0 // pred_check
    _
  $region3: #{detection_model_forward.1} parent=0 // pred_check_branch
    %9 = sbr.rel (0) target = $region5
  $region4: #{detection_model_forward.1} parent=0 // pred_region
    _
  $region5: #{detection_model_forward.1} parent=0 // pred_fallthru
    _
  // Predicated region
  $region6: #{detection_model_forward.1} parent=0 // pred_check
    _
  $region7: #{detection_model_forward.1} parent=0 // pred_check_branch
    %11 = sbr.rel (0) target = $region9
  $region8: #{detection_model_forward.1} parent=0 // pred_region
    _
  $region9: #{detection_model_forward.1} parent=0 // pred_fallthru
    _
  // Predicated region
  $region10: #{detection_model_forward.1} parent=0 // pred_check
    _
  $region11: #{detection_model_forward.1} parent=0 // pred_check_branch
    %13 = sbr.rel (0) target = $region13
  $region12: #{detection_model_forward.1} parent=0 // pred_region
    _
  $region13: #{detection_model_forward.1} parent=0 // pred_fallthru
    _
  %v15 = vld [vmem:[%s0] sm:$0x3f]
  %v16 = vld [vmem:[%s1] sm:$0xff]
  %v17 = vld [vmem:[%s1 + $0x8] sm:$0xff]
  %v18 = vld [vmem:[%s1 + $0x10] sm:$0xff]
  %v19 = vld [vmem:[%s1 + $0x18] sm:$0xff]
  %v20 = vld [vmem:[%s1 + $0x20] sm:$0xff]
  %v21 = vld [vmem:[%s1 + $0x28] sm:$0xff]
  %v22 = vld [vmem:[%s1 + $0x30] sm:$0xff]
  %v23 = vld [vmem:[%s1 + $0x38] sm:$0xf]
  %v24 = vld [vmem:[%s1 + $0x3c] sm:$0xff]
  %v25 = vld [vmem:[%s1 + $0x44] sm:$0xff]
  %v26 = vld [vmem:[%s1 + $0x4c] sm:$0xff]
  %v27 = vld [vmem:[%s1 + $0x54] sm:$0xff]
  %v28 = vld [vmem:[%s1 + $0x5c] sm:$0xff]
  %v29 = vld [vmem:[%s1 + $0x64] sm:$0xff]
  %v30 = vld [vmem:[%s1 + $0x6c] sm:$0xff]
  %v31 = vld [vmem:[%s1 + $0x74] sm:$0xf]
  %v32 = vld [vmem:[%s1 + $0x78] sm:$0xff]
  %v33 = vld [vmem:[%s1 + $0x80] sm:$0xff]
  %v34 = vld [vmem:[%s1 + $0x88] sm:$0xff]
  %v35 = vld [vmem:[%s1 + $0x90] sm:$0xff]
  %v36 = vld [vmem:[%s1 + $0x98] sm:$0xff]
  %v37 = vld [vmem:[%s1 + $0xa0] sm:$0xff]
  %v38 = vld [vmem:[%s1 + $0xa8] sm:$0xff]
  %v39 = vld [vmem:[%s1 + $0xb0] sm:$0xf]
  %v40 = vld [vmem:[%s1 + $0xb4] sm:$0xff]
  %v41 = vld [vmem:[%s1 + $0xbc] sm:$0xff]
  %v42 = vld [vmem:[%s1 + $0xc4] sm:$0xff]
  %v43 = vld [vmem:[%s1 + $0xcc] sm:$0xff]
  %v44 = vld [vmem:[%s1 + $0xd4] sm:$0xff]
  %v45 = vld [vmem:[%s1 + $0xdc] sm:$0xff]
  %v46 = vld [vmem:[%s1 + $0xe4] sm:$0xff]
  %v47 = vld [vmem:[%s1 + $0xec] sm:$0xf]
  %v48 = vld [vmem:[%s1 + $0xf0] sm:$0xff]
  %v49 = vld [vmem:[%s1 + $0xf8] sm:$0xff]
  %v50 = vld [vmem:[%s1 + $0x100] sm:$0xff]
  %v51 = vld [vmem:[%s1 + $0x108] sm:$0xff]
  %v52 = vld [vmem:[%s1 + $0x110] sm:$0xff]
  %v53 = vld [vmem:[%s1 + $0x118] sm:$0xff]
  %v54 = vld [vmem:[%s1 + $0x120] sm:$0xff]
  %v55 = vld [vmem:[%s1 + $0x128] sm:$0xf]
  %v56 = vld [vmem:[%s1 + $0x12c] sm:$0xff]
  %v57 = vld [vmem:[%s1 + $0x134] sm:$0xff]
  %v58 = vld [vmem:[%s1 + $0x13c] sm:$0xff]
  %v59 = vld [vmem:[%s1 + $0x144] sm:$0xff]
  %v60 = vld [vmem:[%s1 + $0x14c] sm:$0xff]
  %v61 = vld [vmem:[%s1 + $0x154] sm:$0xff]
  %v62 = vld [vmem:[%s1 + $0x15c] sm:$0xff]
  %v63 = vld [vmem:[%s1 + $0x164] sm:$0xf]
  %v64 = vld [vmem:[%s1 + $0x168] sm:$0xff]
  %v65 = vld [vmem:[%s1 + $0x170] sm:$0xff]
  %v66 = vld [vmem:[%s1 + $0x178] sm:$0xff]
  %v67 = vld [vmem:[%s1 + $0x180] sm:$0xff]
  %v68 = vld [vmem:[%s1 + $0x188] sm:$0xff]
  %v69 = vld [vmem:[%s1 + $0x190] sm:$0xff]
  %v70 = vld [vmem:[%s1 + $0x198] sm:$0xff]
  %v71 = vld [vmem:[%s1 + $0x1a0] sm:$0xf]
  %v72 = vld [vmem:[%s1 + $0x1a4] sm:$0xff]
  %v73 = vld [vmem:[%s1 + $0x1ac] sm:$0xff]
  %v74 = vld [vmem:[%s1 + $0x1b4] sm:$0xff]
  %v75 = vld [vmem:[%s1 + $0x1bc] sm:$0xff]
  %v76 = vld [vmem:[%s1 + $0x1c4] sm:$0xff]
  %v77 = vld [vmem:[%s1 + $0x1cc] sm:$0xff]
  %v78 = vld [vmem:[%s1 + $0x1d4] sm:$0xff]
  %v79 = vld [vmem:[%s1 + $0x1dc] sm:$0xf]
  %v80 = vld [vmem:[%s1 + $0x1e0] sm:$0xff]
  %v81 = vld [vmem:[%s1 + $0x1e8] sm:$0xff]
  %v82 = vld [vmem:[%s1 + $0x1f0] sm:$0xff]
  %v83 = vld [vmem:[%s1 + $0x1f8] sm:$0xff]
  %v84 = vld [vmem:[%s1 + $0x200] sm:$0xff]
  %v85 = vld [vmem:[%s1 + $0x208] sm:$0xff]
  %v86 = vld [vmem:[%s1 + $0x210] sm:$0xff]
  %v87 = vld [vmem:[%s1 + $0x218] sm:$0xf]
  %v88 = vld [vmem:[%s1 + $0x21c] sm:$0xff]
  %v89 = vld [vmem:[%s1 + $0x224] sm:$0xff]
  %v90 = vld [vmem:[%s1 + $0x22c] sm:$0xff]
  %v91 = vld [vmem:[%s1 + $0x234] sm:$0xff]
  %v92 = vld [vmem:[%s1 + $0x23c] sm:$0xff]
  %v93 = vld [vmem:[%s1 + $0x244] sm:$0xff]
  %v94 = vld [vmem:[%s1 + $0x24c] sm:$0xff]
  %v95 = vld [vmem:[%s1 + $0x254] sm:$0xf]
  %v96 = vld [vmem:[%s1 + $0x258] sm:$0xff]
  %v97 = vld [vmem:[%s1 + $0x260] sm:$0xff]
  %v98 = vld [vmem:[%s1 + $0x268] sm:$0xff]
  %v99 = vld [vmem:[%s1 + $0x270] sm:$0xff]
  %v100 = vld [vmem:[%s1 + $0x278] sm:$0xff]
  %v101 = vld [vmem:[%s1 + $0x280] sm:$0xff]
  %v102 = vld [vmem:[%s1 + $0x288] sm:$0xff]
  %v103 = vld [vmem:[%s1 + $0x290] sm:$0xf]
  %v104 = vld [vmem:[%s1 + $0x294] sm:$0xff]
  %v105 = vld [vmem:[%s1 + $0x29c] sm:$0xff]
  %v106 = vld [vmem:[%s1 + $0x2a4] sm:$0xff]
  %v107 = vld [vmem:[%s1 + $0x2ac] sm:$0xff]
  %v108 = vld [vmem:[%s1 + $0x2b4] sm:$0xff]
  %v109 = vld [vmem:[%s1 + $0x2bc] sm:$0xff]
  %v110 = vld [vmem:[%s1 + $0x2c4] sm:$0xff]
  %v111 = vld [vmem:[%s1 + $0x2cc] sm:$0xf]
  %v112 = vld [vmem:[%s1 + $0x2d0] sm:$0xff]
  %v113 = vld [vmem:[%s1 + $0x2d8] sm:$0xff]
  %v114 = vld [vmem:[%s1 + $0x2e0] sm:$0xff]
  %v115 = vld [vmem:[%s1 + $0x2e8] sm:$0xff]
  %v116 = vld [vmem:[%s1 + $0x2f0] sm:$0xff]
  %v117 = vld [vmem:[%s1 + $0x2f8] sm:$0xff]
  %v118 = vld [vmem:[%s1 + $0x300] sm:$0xff]
  %v119 = vld [vmem:[%s1 + $0x308] sm:$0xf]
  %v120 = vld [vmem:[%s1 + $0x30c] sm:$0xff]
  %v121 = vld [vmem:[%s1 + $0x314] sm:$0xff]
  %v122 = vld [vmem:[%s1 + $0x31c] sm:$0xff]
  %v123 = vld [vmem:[%s1 + $0x324] sm:$0xff]
  %v124 = vld [vmem:[%s1 + $0x32c] sm:$0xff]
  %v125 = vld [vmem:[%s1 + $0x334] sm:$0xff]
  %v126 = vld [vmem:[%s1 + $0x33c] sm:$0xff]
  %v127 = vld [vmem:[%s1 + $0x344] sm:$0xf]
  %v128 = vld [vmem:[%s1 + $0x348] sm:$0xff]
  %v129 = vld [vmem:[%s1 + $0x350] sm:$0xff]
  %v130 = vld [vmem:[%s1 + $0x358] sm:$0xff]
  %v131 = vld [vmem:[%s1 + $0x360] sm:$0xff]
  %v132 = vld [vmem:[%s1 + $0x368] sm:$0xff]
  %v133 = vld [vmem:[%s1 + $0x370] sm:$0xff]
  %v134 = vld [vmem:[%s1 + $0x378] sm:$0xff]
  %v135 = vld [vmem:[%s1 + $0x380] sm:$0xf]
  %v136 = vld [vmem:[%s1 + $0x384] sm:$0xff]
  %v137 = vld [vmem:[%s1 + $0x38c] sm:$0xff]
  %v138 = vld [vmem:[%s1 + $0x394] sm:$0xff]
  %v139 = vld [vmem:[%s1 + $0x39c] sm:$0xff]
  %v140 = vld [vmem:[%s1 + $0x3a4] sm:$0xff]
  %v141 = vld [vmem:[%s1 + $0x3ac] sm:$0xff]
  %v142 = vld [vmem:[%s1 + $0x3b4] sm:$0xff]
  %v143 = vld [vmem:[%s1 + $0x3bc] sm:$0xf]
  %v144 = vld [vmem:[%s1 + $0x3c0] sm:$0xff]
  %v145 = vld [vmem:[%s1 + $0x3c8] sm:$0xff]
  %v146 = vld [vmem:[%s1 + $0x3d0] sm:$0xff]
  %v147 = vld [vmem:[%s1 + $0x3d8] sm:$0xff]
  %v148 = vld [vmem:[%s1 + $0x3e0] sm:$0xff]
  %v149 = vld [vmem:[%s1 + $0x3e8] sm:$0xff]
  %v150 = vld [vmem:[%s1 + $0x3f0] sm:$0xff]
  %v151 = vld [vmem:[%s1 + $0x3f8] sm:$0xf]
  %v152 = vld [vmem:[%s1 + $0x3fc] sm:$0xff]
  %v153 = vld [vmem:[%s1 + $0x404] sm:$0xff]
  %v154 = vld [vmem:[%s1 + $0x40c] sm:$0xff]
  %v155 = vld [vmem:[%s1 + $0x414] sm:$0xff]
  %v156 = vld [vmem:[%s1 + $0x41c] sm:$0xff]
  %v157 = vld [vmem:[%s1 + $0x424] sm:$0xff]
  %v158 = vld [vmem:[%s1 + $0x42c] sm:$0xff]
  %v159 = vld [vmem:[%s1 + $0x434] sm:$0xf]
  %v160 = vld [vmem:[%s1 + $0x438] sm:$0xff]
  %v161 = vld [vmem:[%s1 + $0x440] sm:$0xff]
  %v162 = vld [vmem:[%s1 + $0x448] sm:$0xff]
  %v163 = vld [vmem:[%s1 + $0x450] sm:$0xff]
  %v164 = vld [vmem:[%s1 + $0x458] sm:$0xff]
  %v165 = vld [vmem:[%s1 + $0x460] sm:$0xff]
  %v166 = vld [vmem:[%s1 + $0x468] sm:$0xff]
  %v167 = vld [vmem:[%s1 + $0x470] sm:$0xf]
  %v168 = vld [vmem:[%s1 + $0x474] sm:$0xff]
  %v169 = vld [vmem:[%s1 + $0x47c] sm:$0xff]
  %v170 = vld [vmem:[%s1 + $0x484] sm:$0xff]
  %v171 = vld [vmem:[%s1 + $0x48c] sm:$0xff]
  %v172 = vld [vmem:[%s1 + $0x494] sm:$0xff]
  %v173 = vld [vmem:[%s1 + $0x49c] sm:$0xff]
  %v174 = vld [vmem:[%s1 + $0x4a4] sm:$0xff]
  %v175 = vld [vmem:[%s1 + $0x4ac] sm:$0xf]
  %v176 = vld [vmem:[%s1 + $0x4b0] sm:$0xff]
  %v177 = vld [vmem:[%s1 + $0x4b8] sm:$0xff]
  %v178 = vld [vmem:[%s1 + $0x4c0] sm:$0xff]
  %v179 = vld [vmem:[%s1 + $0x4c8] sm:$0xff]
  %v180 = vld [vmem:[%s1 + $0x4d0] sm:$0xff]
  %v181 = vld [vmem:[%s1 + $0x4d8] sm:$0xff]
  %v182 = vld [vmem:[%s1 + $0x4e0] sm:$0xff]
  %v183 = vld [vmem:[%s1 + $0x4e8] sm:$0xf]
  %v184 = vld [vmem:[%s1 + $0x4ec] sm:$0xff]
  %v185 = vld [vmem:[%s1 + $0x4f4] sm:$0xff]
  %v186 = vld [vmem:[%s1 + $0x4fc] sm:$0xff]
  %v187 = vld [vmem:[%s1 + $0x504] sm:$0xff]
  %v188 = vld [vmem:[%s1 + $0x50c] sm:$0xff]
  %v189 = vld [vmem:[%s1 + $0x514] sm:$0xff]
  %v190 = vld [vmem:[%s1 + $0x51c] sm:$0xff]
  %v191 = vld [vmem:[%s1 + $0x524] sm:$0xf]
  %v192 = vld [vmem:[%s1 + $0x528] sm:$0xff]
  %v193 = vld [vmem:[%s1 + $0x530] sm:$0xff]
  %v194 = vld [vmem:[%s1 + $0x538] sm:$0xff]
  %v195 = vld [vmem:[%s1 + $0x540] sm:$0xff]
  %v196 = vld [vmem:[%s1 + $0x548] sm:$0xff]
  %v197 = vld [vmem:[%s1 + $0x550] sm:$0xff]
  %v198 = vld [vmem:[%s1 + $0x558] sm:$0xff]
  %v199 = vld [vmem:[%s1 + $0x560] sm:$0xf]
  %v200 = vld [vmem:[%s1 + $0x564] sm:$0xff]
  %v201 = vld [vmem:[%s1 + $0x56c] sm:$0xff]
  %v202 = vld [vmem:[%s1 + $0x574] sm:$0xff]
  %v203 = vld [vmem:[%s1 + $0x57c] sm:$0xff]
  %v204 = vld [vmem:[%s1 + $0x584] sm:$0xff]
  %v205 = vld [vmem:[%s1 + $0x58c] sm:$0xff]
  %v206 = vld [vmem:[%s1 + $0x594] sm:$0xff]
  %v207 = vld [vmem:[%s1 + $0x59c] sm:$0xf]
  %v208 = vld [vmem:[%s1 + $0x5a0] sm:$0xff]
  %v209 = vld [vmem:[%s1 + $0x5a8] sm:$0xff]
  %v210 = vld [vmem:[%s1 + $0x5b0] sm:$0xff]
  %v211 = vld [vmem:[%s1 + $0x5b8] sm:$0xff]
  %v212 = vld [vmem:[%s1 + $0x5c0] sm:$0xff]
  %v213 = vld [vmem:[%s1 + $0x5c8] sm:$0xff]
  %v214 = vld [vmem:[%s1 + $0x5d0] sm:$0xff]
  %v215 = vld [vmem:[%s1 + $0x5d8] sm:$0xf]
  %v216 = vld [vmem:[%s1 + $0x5dc] sm:$0xff]
  %v217 = vld [vmem:[%s1 + $0x5e4] sm:$0xff]
  %v218 = vld [vmem:[%s1 + $0x5ec] sm:$0xff]
  %v219 = vld [vmem:[%s1 + $0x5f4] sm:$0xff]
  %v220 = vld [vmem:[%s1 + $0x5fc] sm:$0xff]
  %v221 = vld [vmem:[%s1 + $0x604] sm:$0xff]
  %v222 = vld [vmem:[%s1 + $0x60c] sm:$0xff]
  %v223 = vld [vmem:[%s1 + $0x614] sm:$0xf]
  %v224 = vld [vmem:[%s1 + $0x618] sm:$0xff]
  %v225 = vld [vmem:[%s1 + $0x620] sm:$0xff]
  %v226 = vld [vmem:[%s1 + $0x628] sm:$0xff]
  %v227 = vld [vmem:[%s1 + $0x630] sm:$0xff]
  %v228 = vld [vmem:[%s1 + $0x638] sm:$0xff]
  %v229 = vld [vmem:[%s1 + $0x640] sm:$0xff]
  %v230 = vld [vmem:[%s1 + $0x648] sm:$0xff]
  %v231 = vld [vmem:[%s1 + $0x650] sm:$0xf]
  %v232 = vld [vmem:[%s1 + $0x654] sm:$0xff]
  %v233 = vld [vmem:[%s1 + $0x65c] sm:$0xff]
  %v234 = vld [vmem:[%s1 + $0x664] sm:$0xff]
  %v235 = vld [vmem:[%s1 + $0x66c] sm:$0xff]
  %v236 = vld [vmem:[%s1 + $0x674] sm:$0xff]
  %v237 = vld [vmem:[%s1 + $0x67c] sm:$0xff]
  %v238 = vld [vmem:[%s1 + $0x684] sm:$0xff]
  %v239 = vld [vmem:[%s1 + $0x68c] sm:$0xf]
  %v240 = vld [vmem:[%s1 + $0x690] sm:$0xff]
  %v241 = vld [vmem:[%s1 + $0x698] sm:$0xff]
  %v242 = vld [vmem:[%s1 + $0x6a0] sm:$0xff]
  %v243 = vld [vmem:[%s1 + $0x6a8] sm:$0xff]
  %v244 = vld [vmem:[%s1 + $0x6b0] sm:$0xff]
  %v245 = vld [vmem:[%s1 + $0x6b8] sm:$0xff]
  %v246 = vld [vmem:[%s1 + $0x6c0] sm:$0xff]
  %v247 = vld [vmem:[%s1 + $0x6c8] sm:$0xf]
  %v248 = vld [vmem:[%s1 + $0x6cc] sm:$0xff]
  %v249 = vld [vmem:[%s1 + $0x6d4] sm:$0xff]
  %v250 = vld [vmem:[%s1 + $0x6dc] sm:$0xff]
  %v251 = vld [vmem:[%s1 + $0x6e4] sm:$0xff]
  %v252 = vld [vmem:[%s1 + $0x6ec] sm:$0xff]
  %v253 = vld [vmem:[%s1 + $0x6f4] sm:$0xff]
  %v254 = vld [vmem:[%s1 + $0x6fc] sm:$0xff]
  %v255 = vld [vmem:[%s1 + $0x704] sm:$0xf]
  %v256 = vld [vmem:[%s1 + $0x708] sm:$0xff]
  %v257 = vld [vmem:[%s1 + $0x710] sm:$0xff]
  %v258 = vld [vmem:[%s1 + $0x718] sm:$0xff]
  %v259 = vld [vmem:[%s1 + $0x720] sm:$0xff]
  %v260 = vld [vmem:[%s1 + $0x728] sm:$0xff]
  %v261 = vld [vmem:[%s1 + $0x730] sm:$0xff]
  %v262 = vld [vmem:[%s1 + $0x738] sm:$0xff]
  %v263 = vld [vmem:[%s1 + $0x740] sm:$0xf]
  %v264 = vld [vmem:[%s1 + $0x744] sm:$0xff]
  %v265 = vld [vmem:[%s1 + $0x74c] sm:$0xff]
  %v266 = vld [vmem:[%s1 + $0x754] sm:$0xff]
  %v267 = vld [vmem:[%s1 + $0x75c] sm:$0xff]
  %v268 = vld [vmem:[%s1 + $0x764] sm:$0xff]
  %v269 = vld [vmem:[%s1 + $0x76c] sm:$0xff]
  %v270 = vld [vmem:[%s1 + $0x774] sm:$0xff]
  %v271 = vld [vmem:[%s1 + $0x77c] sm:$0xf]
  %v272 = vld [vmem:[%s1 + $0x780] sm:$0xff]
  %v273 = vld [vmem:[%s1 + $0x788] sm:$0xff]
  %v274 = vld [vmem:[%s1 + $0x790] sm:$0xff]
  %v275 = vld [vmem:[%s1 + $0x798] sm:$0xff]
  %v276 = vld [vmem:[%s1 + $0x7a0] sm:$0xff]
  %v277 = vld [vmem:[%s1 + $0x7a8] sm:$0xff]
  %v278 = vld [vmem:[%s1 + $0x7b0] sm:$0xff]
  %v279 = vld [vmem:[%s1 + $0x7b8] sm:$0xf]
  %v280 = vld [vmem:[%s1 + $0x7bc] sm:$0xff]
  %v281 = vld [vmem:[%s1 + $0x7c4] sm:$0xff]
  %v282 = vld [vmem:[%s1 + $0x7cc] sm:$0xff]
  %v283 = vld [vmem:[%s1 + $0x7d4] sm:$0xff]
  %v284 = vld [vmem:[%s1 + $0x7dc] sm:$0xff]
  %v285 = vld [vmem:[%s1 + $0x7e4] sm:$0xff]
  %v286 = vld [vmem:[%s1 + $0x7ec] sm:$0xff]
  %v287 = vld [vmem:[%s1 + $0x7f4] sm:$0xf]
  %v288 = vld [vmem:[%s1 + $0x7f8] sm:$0xff]
  %v289 = vld [vmem:[%s1 + $0x800] sm:$0xff]
  %v290 = vld [vmem:[%s1 + $0x808] sm:$0xff]
  %v291 = vld [vmem:[%s1 + $0x810] sm:$0xff]
  %v292 = vld [vmem:[%s1 + $0x818] sm:$0xff]
  %v293 = vld [vmem:[%s1 + $0x820] sm:$0xff]
  %v294 = vld [vmem:[%s1 + $0x828] sm:$0xff]
  %v295 = vld [vmem:[%s1 + $0x830] sm:$0xf]
  %v296 = vld [vmem:[%s1 + $0x834] sm:$0xff]
  %v297 = vld [vmem:[%s1 + $0x83c] sm:$0xff]
  %v298 = vld [vmem:[%s1 + $0x844] sm:$0xff]
  %v299 = vld [vmem:[%s1 + $0x84c] sm:$0xff]
  %v300 = vld [vmem:[%s1 + $0x854] sm:$0xff]
  %v301 = vld [vmem:[%s1 + $0x85c] sm:$0xff]
  %v302 = vld [vmem:[%s1 + $0x864] sm:$0xff]
  %v303 = vld [vmem:[%s1 + $0x86c] sm:$0xf]
  %v304 = vld [vmem:[%s1 + $0x870] sm:$0xff]
  %v305 = vld [vmem:[%s1 + $0x878] sm:$0xff]
  %v306 = vld [vmem:[%s1 + $0x880] sm:$0xff]
  %v307 = vld [vmem:[%s1 + $0x888] sm:$0xff]
  %v308 = vld [vmem:[%s1 + $0x890] sm:$0xff]
  %v309 = vld [vmem:[%s1 + $0x898] sm:$0xff]
  %v310 = vld [vmem:[%s1 + $0x8a0] sm:$0xff]
  %v311 = vld [vmem:[%s1 + $0x8a8] sm:$0xf]
  %v312 = vld [vmem:[%s1 + $0x8ac] sm:$0xff]
  %v313 = vld [vmem:[%s1 + $0x8b4] sm:$0xff]
  %v314 = vld [vmem:[%s1 + $0x8bc] sm:$0xff]
  %v315 = vld [vmem:[%s1 + $0x8c4] sm:$0xff]
  %v316 = vld [vmem:[%s1 + $0x8cc] sm:$0xff]
  %v317 = vld [vmem:[%s1 + $0x8d4] sm:$0xff]
  %v318 = vld [vmem:[%s1 + $0x8dc] sm:$0xff]
  %v319 = vld [vmem:[%s1 + $0x8e4] sm:$0xf]
  %v320 = vld [vmem:[%s1 + $0x8e8] sm:$0xff]
  %v321 = vld [vmem:[%s1 + $0x8f0] sm:$0xff]
  %v322 = vld [vmem:[%s1 + $0x8f8] sm:$0xff]
  %v323 = vld [vmem:[%s1 + $0x900] sm:$0xff]
  %v324 = vld [vmem:[%s1 + $0x908] sm:$0xff]
  %v325 = vld [vmem:[%s1 + $0x910] sm:$0xff]
  %v326 = vld [vmem:[%s1 + $0x918] sm:$0xff]
  %v327 = vld [vmem:[%s1 + $0x920] sm:$0xf]
  %v328 = vld [vmem:[%s1 + $0x924] sm:$0xff]
  %v329 = vld [vmem:[%s1 + $0x92c] sm:$0xff]
  %v330 = vld [vmem:[%s1 + $0x934] sm:$0xff]
  %v331 = vld [vmem:[%s1 + $0x93c] sm:$0xff]
  %v332 = vld [vmem:[%s1 + $0x944] sm:$0xff]
  %v333 = vld [vmem:[%s1 + $0x94c] sm:$0xff]
  %v334 = vld [vmem:[%s1 + $0x954] sm:$0xff]
  %v335 = vld [vmem:[%s1 + $0x95c] sm:$0xf]
  %v336 = vld [vmem:[%s1 + $0x960] sm:$0xff]
  %v337 = vld [vmem:[%s1 + $0x968] sm:$0xff]
  %v338 = vld [vmem:[%s1 + $0x970] sm:$0xff]
  %v339 = vld [vmem:[%s1 + $0x978] sm:$0xff]
  %v340 = vld [vmem:[%s1 + $0x980] sm:$0xff]
  %v341 = vld [vmem:[%s1 + $0x988] sm:$0xff]
  %v342 = vld [vmem:[%s1 + $0x990] sm:$0xff]
  %v343 = vld [vmem:[%s1 + $0x998] sm:$0xf]
  %v344 = vld [vmem:[%s1 + $0x99c] sm:$0xff]
  %v345 = vld [vmem:[%s1 + $0x9a4] sm:$0xff]
  %v346 = vld [vmem:[%s1 + $0x9ac] sm:$0xff]
  %v347 = vld [vmem:[%s1 + $0x9b4] sm:$0xff]
  %v348 = vld [vmem:[%s1 + $0x9bc] sm:$0xff]
  %v349 = vld [vmem:[%s1 + $0x9c4] sm:$0xff]
  %v350 = vld [vmem:[%s1 + $0x9cc] sm:$0xff]
  %v351 = vld [vmem:[%s1 + $0x9d4] sm:$0xf]
  %v352 = vld [vmem:[%s1 + $0x9d8] sm:$0xff]
  %v353 = vld [vmem:[%s1 + $0x9e0] sm:$0xff]
  %v354 = vld [vmem:[%s1 + $0x9e8] sm:$0xff]
  %v355 = vld [vmem:[%s1 + $0x9f0] sm:$0xff]
  %v356 = vld [vmem:[%s1 + $0x9f8] sm:$0xff]
  %v357 = vld [vmem:[%s1 + $0xa00] sm:$0xff]
  %v358 = vld [vmem:[%s1 + $0xa08] sm:$0xff]
  %v359 = vld [vmem:[%s1 + $0xa10] sm:$0xf]
  %v360 = vld [vmem:[%s1 + $0xa14] sm:$0xff]
  %v361 = vld [vmem:[%s1 + $0xa1c] sm:$0xff]
  %v362 = vld [vmem:[%s1 + $0xa24] sm:$0xff]
  %v363 = vld [vmem:[%s1 + $0xa2c] sm:$0xff]
  %v364 = vld [vmem:[%s1 + $0xa34] sm:$0xff]
  %v365 = vld [vmem:[%s1 + $0xa3c] sm:$0xff]
  %v366 = vld [vmem:[%s1 + $0xa44] sm:$0xff]
  %v367 = vld [vmem:[%s1 + $0xa4c] sm:$0xf]
  %v368 = vld [vmem:[%s1 + $0xa50] sm:$0xff]
  %v369 = vld [vmem:[%s1 + $0xa58] sm:$0xff]
  %v370 = vld [vmem:[%s1 + $0xa60] sm:$0xff]
  %v371 = vld [vmem:[%s1 + $0xa68] sm:$0xff]
  %v372 = vld [vmem:[%s1 + $0xa70] sm:$0xff]
  %v373 = vld [vmem:[%s1 + $0xa78] sm:$0xff]
  %v374 = vld [vmem:[%s1 + $0xa80] sm:$0xff]
  %v375 = vld [vmem:[%s1 + $0xa88] sm:$0xf]
  %v376 = vld [vmem:[%s1 + $0xa8c] sm:$0xff]
  %v377 = vld [vmem:[%s1 + $0xa94] sm:$0xff]
  %v378 = vld [vmem:[%s1 + $0xa9c] sm:$0xff]
  %v379 = vld [vmem:[%s1 + $0xaa4] sm:$0xff]
  %v380 = vld [vmem:[%s1 + $0xaac] sm:$0xff]
  %v381 = vld [vmem:[%s1 + $0xab4] sm:$0xff]
  %v382 = vld [vmem:[%s1 + $0xabc] sm:$0xff]
  %v383 = vld [vmem:[%s1 + $0xac4] sm:$0xf]
  %v384 = vld [vmem:[%s1 + $0xac8] sm:$0xff]
  %v385 = vld [vmem:[%s1 + $0xad0] sm:$0xff]
  %v386 = vld [vmem:[%s1 + $0xad8] sm:$0xff]
  %v387 = vld [vmem:[%s1 + $0xae0] sm:$0xff]
  %v388 = vld [vmem:[%s1 + $0xae8] sm:$0xff]
  %v389 = vld [vmem:[%s1 + $0xaf0] sm:$0xff]
  %v390 = vld [vmem:[%s1 + $0xaf8] sm:$0xff]
  %v391 = vld [vmem:[%s1 + $0xb00] sm:$0xf]
  %v392 = vld [vmem:[%s1 + $0xb04] sm:$0xff]
  %v393 = vld [vmem:[%s1 + $0xb0c] sm:$0xff]
  %v394 = vld [vmem:[%s1 + $0xb14] sm:$0xff]
  %v395 = vld [vmem:[%s1 + $0xb1c] sm:$0xff]
  %v396 = vld [vmem:[%s1 + $0xb24] sm:$0xff]
  %v397 = vld [vmem:[%s1 + $0xb2c] sm:$0xff]
  %v398 = vld [vmem:[%s1 + $0xb34] sm:$0xff]
  %v399 = vld [vmem:[%s1 + $0xb3c] sm:$0xf]
  %v400 = vld [vmem:[%s1 + $0xb40] sm:$0xff]
  %v401 = vld [vmem:[%s1 + $0xb48] sm:$0xff]
  %v402 = vld [vmem:[%s1 + $0xb50] sm:$0xff]
  %v403 = vld [vmem:[%s1 + $0xb58] sm:$0xff]
  %v404 = vld [vmem:[%s1 + $0xb60] sm:$0xff]
  %v405 = vld [vmem:[%s1 + $0xb68] sm:$0xff]
  %v406 = vld [vmem:[%s1 + $0xb70] sm:$0xff]
  %v407 = vld [vmem:[%s1 + $0xb78] sm:$0xf]
  %v408 = vld [vmem:[%s1 + $0xb7c] sm:$0xff]
  %v409 = vld [vmem:[%s1 + $0xb84] sm:$0xff]
  %v410 = vld [vmem:[%s1 + $0xb8c] sm:$0xff]
  %v411 = vld [vmem:[%s1 + $0xb94] sm:$0xff]
  %v412 = vld [vmem:[%s1 + $0xb9c] sm:$0xff]
  %v413 = vld [vmem:[%s1 + $0xba4] sm:$0xff]
  %v414 = vld [vmem:[%s1 + $0xbac] sm:$0xff]
  %v415 = vld [vmem:[%s1 + $0xbb4] sm:$0xf]
  %v416 = vld [vmem:[%s1 + $0xbb8] sm:$0xff]
  %v417 = vld [vmem:[%s1 + $0xbc0] sm:$0xff]
  %v418 = vld [vmem:[%s1 + $0xbc8] sm:$0xff]
  %v419 = vld [vmem:[%s1 + $0xbd0] sm:$0xff]
  %v420 = vld [vmem:[%s1 + $0xbd8] sm:$0xff]
  %v421 = vld [vmem:[%s1 + $0xbe0] sm:$0xff]
  %v422 = vld [vmem:[%s1 + $0xbe8] sm:$0xff]
  %v423 = vld [vmem:[%s1 + $0xbf0] sm:$0xf]
  %v424 = vld [vmem:[%s1 + $0xbf4] sm:$0xff]
  %v425 = vld [vmem:[%s1 + $0xbfc] sm:$0xff]
  %v426 = vld [vmem:[%s1 + $0xc04] sm:$0xff]
  %v427 = vld [vmem:[%s1 + $0xc0c] sm:$0xff]
  %v428 = vld [vmem:[%s1 + $0xc14] sm:$0xff]
  %v429 = vld [vmem:[%s1 + $0xc1c] sm:$0xff]
  %v430 = vld [vmem:[%s1 + $0xc24] sm:$0xff]
  %v431 = vld [vmem:[%s1 + $0xc2c] sm:$0xf]
  %v432 = vld [vmem:[%s1 + $0xc30] sm:$0xff]
  %v433 = vld [vmem:[%s1 + $0xc38] sm:$0xff]
  %v434 = vld [vmem:[%s1 + $0xc40] sm:$0xff]
  %v435 = vld [vmem:[%s1 + $0xc48] sm:$0xff]
  %v436 = vld [vmem:[%s1 + $0xc50] sm:$0xff]
  %v437 = vld [vmem:[%s1 + $0xc58] sm:$0xff]
  %v438 = vld [vmem:[%s1 + $0xc60] sm:$0xff]
  %v439 = vld [vmem:[%s1 + $0xc68] sm:$0xf]
  %v440 = vld [vmem:[%s1 + $0xc6c] sm:$0xff]
  %v441 = vld [vmem:[%s1 + $0xc74] sm:$0xff]
  %v442 = vld [vmem:[%s1 + $0xc7c] sm:$0xff]
  %v443 = vld [vmem:[%s1 + $0xc84] sm:$0xff]
  %v444 = vld [vmem:[%s1 + $0xc8c] sm:$0xff]
  %v445 = vld [vmem:[%s1 + $0xc94] sm:$0xff]
  %v446 = vld [vmem:[%s1 + $0xc9c] sm:$0xff]
  %v447 = vld [vmem:[%s1 + $0xca4] sm:$0xf]
  %v448 = vld [vmem:[%s1 + $0xca8] sm:$0xff]
  %v449 = vld [vmem:[%s1 + $0xcb0] sm:$0xff]
  %v450 = vld [vmem:[%s1 + $0xcb8] sm:$0xff]
  %v451 = vld [vmem:[%s1 + $0xcc0] sm:$0xff]
  %v452 = vld [vmem:[%s1 + $0xcc8] sm:$0xff]
  %v453 = vld [vmem:[%s1 + $0xcd0] sm:$0xff]
  %v454 = vld [vmem:[%s1 + $0xcd8] sm:$0xff]
  %v455 = vld [vmem:[%s1 + $0xce0] sm:$0xf]
  %v456 = vld [vmem:[%s1 + $0xce4] sm:$0xff]
  %v457 = vld [vmem:[%s1 + $0xcec] sm:$0xff]
  %v458 = vld [vmem:[%s1 + $0xcf4] sm:$0xff]
  %v459 = vld [vmem:[%s1 + $0xcfc] sm:$0xff]
  %v460 = vld [vmem:[%s1 + $0xd04] sm:$0xff]
  %v461 = vld [vmem:[%s1 + $0xd0c] sm:$0xff]
  %v462 = vld [vmem:[%s1 + $0xd14] sm:$0xff]
  %v463 = vld [vmem:[%s1 + $0xd1c] sm:$0xf]
  %v464 = vld [vmem:[%s1 + $0xd20] sm:$0xff]
  %v465 = vld [vmem:[%s1 + $0xd28] sm:$0xff]
  %v466 = vld [vmem:[%s1 + $0xd30] sm:$0xff]
  %v467 = vld [vmem:[%s1 + $0xd38] sm:$0xff]
  %v468 = vld [vmem:[%s1 + $0xd40] sm:$0xff]
  %v469 = vld [vmem:[%s1 + $0xd48] sm:$0xff]
  %v470 = vld [vmem:[%s1 + $0xd50] sm:$0xff]
  %v471 = vld [vmem:[%s1 + $0xd58] sm:$0xf]
  %v472 = vld [vmem:[%s1 + $0xd5c] sm:$0xff]
  %v473 = vld [vmem:[%s1 + $0xd64] sm:$0xff]
  %v474 = vld [vmem:[%s1 + $0xd6c] sm:$0xff]
  %v475 = vld [vmem:[%s1 + $0xd74] sm:$0xff]
  %v476 = vld [vmem:[%s1 + $0xd7c] sm:$0xff]
  %v477 = vld [vmem:[%s1 + $0xd84] sm:$0xff]
  %v478 = vld [vmem:[%s1 + $0xd8c] sm:$0xff]
  %v479 = vld [vmem:[%s1 + $0xd94] sm:$0xf]
  %v480 = vld [vmem:[%s1 + $0xd98] sm:$0xff]
  %v481 = vld [vmem:[%s1 + $0xda0] sm:$0xff]
  %v482 = vld [vmem:[%s1 + $0xda8] sm:$0xff]
  %v483 = vld [vmem:[%s1 + $0xdb0] sm:$0xff]
  %v484 = vld [vmem:[%s1 + $0xdb8] sm:$0xff]
  %v485 = vld [vmem:[%s1 + $0xdc0] sm:$0xff]
  %v486 = vld [vmem:[%s1 + $0xdc8] sm:$0xff]
  %v487 = vld [vmem:[%s1 + $0xdd0] sm:$0xf]
  %v488 = vld [vmem:[%s1 + $0xdd4] sm:$0xff]
  %v489 = vld [vmem:[%s1 + $0xddc] sm:$0xff]
  %v490 = vld [vmem:[%s1 + $0xde4] sm:$0xff]
  %v491 = vld [vmem:[%s1 + $0xdec] sm:$0xff]
  %v492 = vld [vmem:[%s1 + $0xdf4] sm:$0xff]
  %v493 = vld [vmem:[%s1 + $0xdfc] sm:$0xff]
  %v494 = vld [vmem:[%s1 + $0xe04] sm:$0xff]
  %v495 = vld [vmem:[%s1 + $0xe0c] sm:$0xf]
  %v496 = vld [vmem:[%s1 + $0xe10] sm:$0xff]
  %v497 = vld [vmem:[%s1 + $0xe18] sm:$0xff]
  %v498 = vld [vmem:[%s1 + $0xe20] sm:$0xff]
  %v499 = vld [vmem:[%s1 + $0xe28] sm:$0xff]
  %v500 = vld [vmem:[%s1 + $0xe30] sm:$0xff]
  %v501 = vld [vmem:[%s1 + $0xe38] sm:$0xff]
  %v502 = vld [vmem:[%s1 + $0xe40] sm:$0xff]
  %v503 = vld [vmem:[%s1 + $0xe48] sm:$0xf]
  %v504 = vld [vmem:[%s1 + $0xe4c] sm:$0xff]
  %v505 = vld [vmem:[%s1 + $0xe54] sm:$0xff]
  %v506 = vld [vmem:[%s1 + $0xe5c] sm:$0xff]
  %v507 = vld [vmem:[%s1 + $0xe64] sm:$0xff]
  %v508 = vld [vmem:[%s1 + $0xe6c] sm:$0xff]
  %v509 = vld [vmem:[%s1 + $0xe74] sm:$0xff]
  %v510 = vld [vmem:[%s1 + $0xe7c] sm:$0xff]
  %v511 = vld [vmem:[%s1 + $0xe84] sm:$0xf]
  %v512 = vld [vmem:[%s1 + $0xe88] sm:$0xff]
  %v513 = vld [vmem:[%s1 + $0xe90] sm:$0xff]
  %v514 = vld [vmem:[%s1 + $0xe98] sm:$0xff]
  %v515 = vld [vmem:[%s1 + $0xea0] sm:$0xff]
  %v516 = vld [vmem:[%s1 + $0xea8] sm:$0xff]
  %v517 = vld [vmem:[%s1 + $0xeb0] sm:$0xff]
  %v518 = vld [vmem:[%s1 + $0xeb8] sm:$0xff]
  %v519 = vld [vmem:[%s1 + $0xec0] sm:$0xf]
  %v520 = vld [vmem:[%s1 + $0xec4] sm:$0xff]
  %v521 = vld [vmem:[%s1 + $0xecc] sm:$0xff]
  %v522 = vld [vmem:[%s1 + $0xed4] sm:$0xff]
  %v523 = vld [vmem:[%s1 + $0xedc] sm:$0xff]
  %v524 = vld [vmem:[%s1 + $0xee4] sm:$0xff]
  %v525 = vld [vmem:[%s1 + $0xeec] sm:$0xff]
  %v526 = vld [vmem:[%s1 + $0xef4] sm:$0xff]
  %v527 = vld [vmem:[%s1 + $0xefc] sm:$0xf]
  %v528 = vld [vmem:[%s1 + $0xf00] sm:$0xff]
  %v529 = vld [vmem:[%s1 + $0xf08] sm:$0xff]
  %v530 = vld [vmem:[%s1 + $0xf10] sm:$0xff]
  %v531 = vld [vmem:[%s1 + $0xf18] sm:$0xff]
  %v532 = vld [vmem:[%s1 + $0xf20] sm:$0xff]
  %v533 = vld [vmem:[%s1 + $0xf28] sm:$0xff]
  %v534 = vld [vmem:[%s1 + $0xf30] sm:$0xff]
  %v535 = vld [vmem:[%s1 + $0xf38] sm:$0xf]
  %v536 = vld [vmem:[%s1 + $0xf3c] sm:$0xff]
  %v537 = vld [vmem:[%s1 + $0xf44] sm:$0xff]
  %v538 = vld [vmem:[%s1 + $0xf4c] sm:$0xff]
  %v539 = vld [vmem:[%s1 + $0xf54] sm:$0xff]
  %v540 = vld [vmem:[%s1 + $0xf5c] sm:$0xff]
  %v541 = vld [vmem:[%s1 + $0xf64] sm:$0xff]
  %v542 = vld [vmem:[%s1 + $0xf6c] sm:$0xff]
  %v543 = vld [vmem:[%s1 + $0xf74] sm:$0xf]
  %v544 = vld [vmem:[%s1 + $0xf78] sm:$0xff]
  %v545 = vld [vmem:[%s1 + $0xf80] sm:$0xff]
  %v546 = vld [vmem:[%s1 + $0xf88] sm:$0xff]
  %v547 = vld [vmem:[%s1 + $0xf90] sm:$0xff]
  %v548 = vld [vmem:[%s1 + $0xf98] sm:$0xff]
  %v549 = vld [vmem:[%s1 + $0xfa0] sm:$0xff]
  %v550 = vld [vmem:[%s1 + $0xfa8] sm:$0xff]
  %v551 = vld [vmem:[%s1 + $0xfb0] sm:$0xf]
  %v552 = vld [vmem:[%s1 + $0xfb4] sm:$0xff]
  %v553 = vld [vmem:[%s1 + $0xfbc] sm:$0xff]
  %v554 = vld [vmem:[%s1 + $0xfc4] sm:$0xff]
  %v555 = vld [vmem:[%s1 + $0xfcc] sm:$0xff]
  %v556 = vld [vmem:[%s1 + $0xfd4] sm:$0xff]
  %v557 = vld [vmem:[%s1 + $0xfdc] sm:$0xff]
  %v558 = vld [vmem:[%s1 + $0xfe4] sm:$0xff]
  %v559 = vld [vmem:[%s1 + $0xfec] sm:$0xf]
  %v560 = vld [vmem:[%s1 + $0xff0] sm:$0xff]
  %v561 = vld [vmem:[%s1 + $0xff8] sm:$0xff]
  %v562 = vld [vmem:[%s1 + $0x1000] sm:$0xff]
  %v563 = vld [vmem:[%s1 + $0x1008] sm:$0xff]
  %v564 = vld [vmem:[%s1 + $0x1010] sm:$0xff]
  %v565 = vld [vmem:[%s1 + $0x1018] sm:$0xff]
  %v566 = vld [vmem:[%s1 + $0x1020] sm:$0xff]
  %v567 = vld [vmem:[%s1 + $0x1028] sm:$0xf]
  %v568 = vld [vmem:[%s1 + $0x102c] sm:$0xff]
  %v569 = vld [vmem:[%s1 + $0x1034] sm:$0xff]
  %v570 = vld [vmem:[%s1 + $0x103c] sm:$0xff]
  %v571 = vld [vmem:[%s1 + $0x1044] sm:$0xff]
  %v572 = vld [vmem:[%s1 + $0x104c] sm:$0xff]
  %v573 = vld [vmem:[%s1 + $0x1054] sm:$0xff]
  %v574 = vld [vmem:[%s1 + $0x105c] sm:$0xff]
  %v575 = vld [vmem:[%s1 + $0x1064] sm:$0xf]
  %v576 = vld [vmem:[%s1 + $0x1068] sm:$0xff]
  %v577 = vld [vmem:[%s1 + $0x1070] sm:$0xff]
  %v578 = vld [vmem:[%s1 + $0x1078] sm:$0xff]
  %v579 = vld [vmem:[%s1 + $0x1080] sm:$0xff]
  %v580 = vld [vmem:[%s1 + $0x1088] sm:$0xff]
  %v581 = vld [vmem:[%s1 + $0x1090] sm:$0xff]
  %v582 = vld [vmem:[%s1 + $0x1098] sm:$0xff]
  %v583 = vld [vmem:[%s1 + $0x10a0] sm:$0xf]
  %v584 = vld [vmem:[%s1 + $0x10a4] sm:$0xff]
  %v585 = vld [vmem:[%s1 + $0x10ac] sm:$0xff]
  %v586 = vld [vmem:[%s1 + $0x10b4] sm:$0xff]
  %v587 = vld [vmem:[%s1 + $0x10bc] sm:$0xff]
  %v588 = vld [vmem:[%s1 + $0x10c4] sm:$0xff]
  %v589 = vld [vmem:[%s1 + $0x10cc] sm:$0xff]
  %v590 = vld [vmem:[%s1 + $0x10d4] sm:$0xff]
  %v591 = vld [vmem:[%s1 + $0x10dc] sm:$0xf]
  %v592 = vld [vmem:[%s1 + $0x10e0] sm:$0xff]
  %v593 = vld [vmem:[%s1 + $0x10e8] sm:$0xff]
  %v594 = vld [vmem:[%s1 + $0x10f0] sm:$0xff]
  %v595 = vld [vmem:[%s1 + $0x10f8] sm:$0xff]
  %v596 = vld [vmem:[%s1 + $0x1100] sm:$0xff]
  %v597 = vld [vmem:[%s1 + $0x1108] sm:$0xff]
  %v598 = vld [vmem:[%s1 + $0x1110] sm:$0xff]
  %v599 = vld [vmem:[%s1 + $0x1118] sm:$0xf]
  %v600 = vld [vmem:[%s1 + $0x111c] sm:$0xff]
  %v601 = vld [vmem:[%s1 + $0x1124] sm:$0xff]
  %v602 = vld [vmem:[%s1 + $0x112c] sm:$0xff]
  %v603 = vld [vmem:[%s1 + $0x1134] sm:$0xff]
  %v604 = vld [vmem:[%s1 + $0x113c] sm:$0xff]
  %v605 = vld [vmem:[%s1 + $0x1144] sm:$0xff]
  %v606 = vld [vmem:[%s1 + $0x114c] sm:$0xff]
  %v607 = vld [vmem:[%s1 + $0x1154] sm:$0xf]
  %v608 = vld [vmem:[%s1 + $0x1158] sm:$0xff]
  %v609 = vld [vmem:[%s1 + $0x1160] sm:$0xff]
  %v610 = vld [vmem:[%s1 + $0x1168] sm:$0xff]
  %v611 = vld [vmem:[%s1 + $0x1170] sm:$0xff]
  %v612 = vld [vmem:[%s1 + $0x1178] sm:$0xff]
  %v613 = vld [vmem:[%s1 + $0x1180] sm:$0xff]
  %v614 = vld [vmem:[%s1 + $0x1188] sm:$0xff]
  %v615 = vld [vmem:[%s1 + $0x1190] sm:$0xf]
  %v616 = vld [vmem:[%s1 + $0x1194] sm:$0xff]
  %v617 = vld [vmem:[%s1 + $0x119c] sm:$0xff]
  %v618 = vld [vmem:[%s1 + $0x11a4] sm:$0xff]
  %v619 = vld [vmem:[%s1 + $0x11ac] sm:$0xff]
  %v620 = vld [vmem:[%s1 + $0x11b4] sm:$0xff]
  %v621 = vld [vmem:[%s1 + $0x11bc] sm:$0xff]
  %v622 = vld [vmem:[%s1 + $0x11c4] sm:$0xff]
  %v623 = vld [vmem:[%s1 + $0x11cc] sm:$0xf]
  %v624 = vld [vmem:[%s1 + $0x11d0] sm:$0xff]
  %v625 = vld [vmem:[%s1 + $0x11d8] sm:$0xff]
  %v626 = vld [vmem:[%s1 + $0x11e0] sm:$0xff]
  %v627 = vld [vmem:[%s1 + $0x11e8] sm:$0xff]
  %v628 = vld [vmem:[%s1 + $0x11f0] sm:$0xff]
  %v629 = vld [vmem:[%s1 + $0x11f8] sm:$0xff]
  %v630 = vld [vmem:[%s1 + $0x1200] sm:$0xff]
  %v631 = vld [vmem:[%s1 + $0x1208] sm:$0xf]
  %v632 = vld [vmem:[%s1 + $0x120c] sm:$0xff]
  %v633 = vld [vmem:[%s1 + $0x1214] sm:$0xff]
  %v634 = vld [vmem:[%s1 + $0x121c] sm:$0xff]
  %v635 = vld [vmem:[%s1 + $0x1224] sm:$0xff]
  %v636 = vld [vmem:[%s1 + $0x122c] sm:$0xff]
  %v637 = vld [vmem:[%s1 + $0x1234] sm:$0xff]
  %v638 = vld [vmem:[%s1 + $0x123c] sm:$0xff]
  %v639 = vld [vmem:[%s1 + $0x1244] sm:$0xf]
  %v640 = vld [vmem:[%s1 + $0x1248] sm:$0xff]
  %v641 = vld [vmem:[%s1 + $0x1250] sm:$0xff]
  %v642 = vld [vmem:[%s1 + $0x1258] sm:$0xff]
  %v643 = vld [vmem:[%s1 + $0x1260] sm:$0xff]
  %v644 = vld [vmem:[%s1 + $0x1268] sm:$0xff]
  %v645 = vld [vmem:[%s1 + $0x1270] sm:$0xff]
  %v646 = vld [vmem:[%s1 + $0x1278] sm:$0xff]
  %v647 = vld [vmem:[%s1 + $0x1280] sm:$0xf]
  %v648 = vld [vmem:[%s1 + $0x1284] sm:$0xff]
  %v649 = vld [vmem:[%s1 + $0x128c] sm:$0xff]
  %v650 = vld [vmem:[%s1 + $0x1294] sm:$0xff]
  %v651 = vld [vmem:[%s1 + $0x129c] sm:$0xff]
  %v652 = vld [vmem:[%s1 + $0x12a4] sm:$0xff]
  %v653 = vld [vmem:[%s1 + $0x12ac] sm:$0xff]
  %v654 = vld [vmem:[%s1 + $0x12b4] sm:$0xff]
  %v655 = vld [vmem:[%s1 + $0x12bc] sm:$0xf]
  %v656 = vld [vmem:[%s1 + $0x12c0] sm:$0xff]
  %v657 = vld [vmem:[%s1 + $0x12c8] sm:$0xff]
  %v658 = vld [vmem:[%s1 + $0x12d0] sm:$0xff]
  %v659 = vld [vmem:[%s1 + $0x12d8] sm:$0xff]
  %v660 = vld [vmem:[%s1 + $0x12e0] sm:$0xff]
  %v661 = vld [vmem:[%s1 + $0x12e8] sm:$0xff]
  %v662 = vld [vmem:[%s1 + $0x12f0] sm:$0xff]
  %v663 = vld [vmem:[%s1 + $0x12f8] sm:$0xf]
  %v664 = vld [vmem:[%s1 + $0x12fc] sm:$0xff]
  %v665 = vld [vmem:[%s1 + $0x1304] sm:$0xff]
  %v666 = vld [vmem:[%s1 + $0x130c] sm:$0xff]
  %v667 = vld [vmem:[%s1 + $0x1314] sm:$0xff]
  %v668 = vld [vmem:[%s1 + $0x131c] sm:$0xff]
  %v669 = vld [vmem:[%s1 + $0x1324] sm:$0xff]
  %v670 = vld [vmem:[%s1 + $0x132c] sm:$0xff]
  %v671 = vld [vmem:[%s1 + $0x1334] sm:$0xf]
  %v672 = vld [vmem:[%s1 + $0x1338] sm:$0xff]
  %v673 = vld [vmem:[%s1 + $0x1340] sm:$0xff]
  %v674 = vld [vmem:[%s1 + $0x1348] sm:$0xff]
  %v675 = vld [vmem:[%s1 + $0x1350] sm:$0xff]
  %v676 = vld [vmem:[%s1 + $0x1358] sm:$0xff]
  %v677 = vld [vmem:[%s1 + $0x1360] sm:$0xff]
  %v678 = vld [vmem:[%s1 + $0x1368] sm:$0xff]
  %v679 = vld [vmem:[%s1 + $0x1370] sm:$0xf]
  %v680 = vld [vmem:[%s1 + $0x1374] sm:$0xff]
  %v681 = vld [vmem:[%s1 + $0x137c] sm:$0xff]
  %v682 = vld [vmem:[%s1 + $0x1384] sm:$0xff]
  %v683 = vld [vmem:[%s1 + $0x138c] sm:$0xff]
  %v684 = vld [vmem:[%s1 + $0x1394] sm:$0xff]
  %v685 = vld [vmem:[%s1 + $0x139c] sm:$0xff]
  %v686 = vld [vmem:[%s1 + $0x13a4] sm:$0xff]
  %v687 = vld [vmem:[%s1 + $0x13ac] sm:$0xf]
  %v688 = vld [vmem:[%s1 + $0x13b0] sm:$0xff]
  %v689 = vld [vmem:[%s1 + $0x13b8] sm:$0xff]
  %v690 = vld [vmem:[%s1 + $0x13c0] sm:$0xff]
  %v691 = vld [vmem:[%s1 + $0x13c8] sm:$0xff]
  %v692 = vld [vmem:[%s1 + $0x13d0] sm:$0xff]
  %v693 = vld [vmem:[%s1 + $0x13d8] sm:$0xff]
  %v694 = vld [vmem:[%s1 + $0x13e0] sm:$0xff]
  %v695 = vld [vmem:[%s1 + $0x13e8] sm:$0xf]
  %v696 = vld [vmem:[%s1 + $0x13ec] sm:$0xff]
  %v697 = vld [vmem:[%s1 + $0x13f4] sm:$0xff]
  %v698 = vld [vmem:[%s1 + $0x13fc] sm:$0xff]
  %v699 = vld [vmem:[%s1 + $0x1404] sm:$0xff]
  %v700 = vld [vmem:[%s1 + $0x140c] sm:$0xff]
  %v701 = vld [vmem:[%s1 + $0x1414] sm:$0xff]
  %v702 = vld [vmem:[%s1 + $0x141c] sm:$0xff]
  %v703 = vld [vmem:[%s1 + $0x1424] sm:$0xf]
  %v704 = vld [vmem:[%s1 + $0x1428] sm:$0xff]
  %v705 = vld [vmem:[%s1 + $0x1430] sm:$0xff]
  %v706 = vld [vmem:[%s1 + $0x1438] sm:$0xff]
  %v707 = vld [vmem:[%s1 + $0x1440] sm:$0xff]
  %v708 = vld [vmem:[%s1 + $0x1448] sm:$0xff]
  %v709 = vld [vmem:[%s1 + $0x1450] sm:$0xff]
  %v710 = vld [vmem:[%s1 + $0x1458] sm:$0xff]
  %v711 = vld [vmem:[%s1 + $0x1460] sm:$0xf]
  %v712 = vld [vmem:[%s1 + $0x1464] sm:$0xff]
  %v713 = vld [vmem:[%s1 + $0x146c] sm:$0xff]
  %v714 = vld [vmem:[%s1 + $0x1474] sm:$0xff]
  %v715 = vld [vmem:[%s1 + $0x147c] sm:$0xff]
  %v716 = vld [vmem:[%s1 + $0x1484] sm:$0xff]
  %v717 = vld [vmem:[%s1 + $0x148c] sm:$0xff]
  %v718 = vld [vmem:[%s1 + $0x1494] sm:$0xff]
  %v719 = vld [vmem:[%s1 + $0x149c] sm:$0xf]
  %v720 = vld [vmem:[%s1 + $0x14a0] sm:$0xff]
  %v721 = vld [vmem:[%s1 + $0x14a8] sm:$0xff]
  %v722 = vld [vmem:[%s1 + $0x14b0] sm:$0xff]
  %v723 = vld [vmem:[%s1 + $0x14b8] sm:$0xff]
  %v724 = vld [vmem:[%s1 + $0x14c0] sm:$0xff]
  %v725 = vld [vmem:[%s1 + $0x14c8] sm:$0xff]
  %v726 = vld [vmem:[%s1 + $0x14d0] sm:$0xff]
  %v727 = vld [vmem:[%s1 + $0x14d8] sm:$0xf]
  %v728 = vld [vmem:[%s1 + $0x14dc] sm:$0xff]
  %v729 = vld [vmem:[%s1 + $0x14e4] sm:$0xff]
  %v730 = vld [vmem:[%s1 + $0x14ec] sm:$0xff]
  %v731 = vld [vmem:[%s1 + $0x14f4] sm:$0xff]
  %v732 = vld [vmem:[%s1 + $0x14fc] sm:$0xff]
  %v733 = vld [vmem:[%s1 + $0x1504] sm:$0xff]
  %v734 = vld [vmem:[%s1 + $0x150c] sm:$0xff]
  %v735 = vld [vmem:[%s1 + $0x1514] sm:$0xf]
  %v736 = vld [vmem:[%s1 + $0x1518] sm:$0xff]
  %v737 = vld [vmem:[%s1 + $0x1520] sm:$0xff]
  %v738 = vld [vmem:[%s1 + $0x1528] sm:$0xff]
  %v739 = vld [vmem:[%s1 + $0x1530] sm:$0xff]
  %v740 = vld [vmem:[%s1 + $0x1538] sm:$0xff]
  %v741 = vld [vmem:[%s1 + $0x1540] sm:$0xff]
  %v742 = vld [vmem:[%s1 + $0x1548] sm:$0xff]
  %v743 = vld [vmem:[%s1 + $0x1550] sm:$0xf]
  %v744 = vld [vmem:[%s1 + $0x1554] sm:$0xff]
  %v745 = vld [vmem:[%s1 + $0x155c] sm:$0xff]
  %v746 = vld [vmem:[%s1 + $0x1564] sm:$0xff]
  %v747 = vld [vmem:[%s1 + $0x156c] sm:$0xff]
  %v748 = vld [vmem:[%s1 + $0x1574] sm:$0xff]
  %v749 = vld [vmem:[%s1 + $0x157c] sm:$0xff]
  %v750 = vld [vmem:[%s1 + $0x1584] sm:$0xff]
  %v751 = vld [vmem:[%s1 + $0x158c] sm:$0xf]
  %v752 = vld [vmem:[%s1 + $0x1590] sm:$0xff]
  %v753 = vld [vmem:[%s1 + $0x1598] sm:$0xff]
  %v754 = vld [vmem:[%s1 + $0x15a0] sm:$0xff]
  %v755 = vld [vmem:[%s1 + $0x15a8] sm:$0xff]
  %v756 = vld [vmem:[%s1 + $0x15b0] sm:$0xff]
  %v757 = vld [vmem:[%s1 + $0x15b8] sm:$0xff]
  %v758 = vld [vmem:[%s1 + $0x15c0] sm:$0xff]
  %v759 = vld [vmem:[%s1 + $0x15c8] sm:$0xf]
  %v760 = vld [vmem:[%s1 + $0x15cc] sm:$0xff]
  %v761 = vld [vmem:[%s1 + $0x15d4] sm:$0xff]
  %v762 = vld [vmem:[%s1 + $0x15dc] sm:$0xff]
  %v763 = vld [vmem:[%s1 + $0x15e4] sm:$0xff]
  %v764 = vld [vmem:[%s1 + $0x15ec] sm:$0xff]
  %v765 = vld [vmem:[%s1 + $0x15f4] sm:$0xff]
  %v766 = vld [vmem:[%s1 + $0x15fc] sm:$0xff]
  %v767 = vld [vmem:[%s1 + $0x1604] sm:$0xf]
  %v768 = vld [vmem:[%s1 + $0x1608] sm:$0xff]
  %v769 = vld [vmem:[%s1 + $0x1610] sm:$0xff]
  %v770 = vld [vmem:[%s1 + $0x1618] sm:$0xff]
  %v771 = vld [vmem:[%s1 + $0x1620] sm:$0xff]
  %v772 = vld [vmem:[%s1 + $0x1628] sm:$0xff]
  %v773 = vld [vmem:[%s1 + $0x1630] sm:$0xff]
  %v774 = vld [vmem:[%s1 + $0x1638] sm:$0xff]
  %v775 = vld [vmem:[%s1 + $0x1640] sm:$0xf]
  %v776 = vld [vmem:[%s1 + $0x1644] sm:$0xff]
  %v777 = vld [vmem:[%s1 + $0x164c] sm:$0xff]
  %v778 = vld [vmem:[%s1 + $0x1654] sm:$0xff]
  %v779 = vld [vmem:[%s1 + $0x165c] sm:$0xff]
  %v780 = vld [vmem:[%s1 + $0x1664] sm:$0xff]
  %v781 = vld [vmem:[%s1 + $0x166c] sm:$0xff]
  %v782 = vld [vmem:[%s1 + $0x1674] sm:$0xff]
  %v783 = vld [vmem:[%s1 + $0x167c] sm:$0xf]
  %v784 = vld [vmem:[%s2] ss:$2 sm:$0xff]
  %s785 = scalar_lea.vmem %s2, 16
  %v786 = vld [vmem:[%s785] ss:$2 sm:$0xff]
  %v789 = vlaneseq
  %v790 = vshrl.u32 %v789, 7
  %v791 = vsub.s32 0, %v790
  %v792 = vrot.slane %v784, %v791
  %v793 = vlaneseq
  %v794 = vshrl.u32 %v793, 7
  %v795 = vsub.s32 1, %v794
  %v796 = vrot.slane %v784, %v795
  %v797 = vlaneseq
  %v798 = vshrl.u32 %v797, 7
  %v799 = vsub.s32 2, %v798
  %v800 = vrot.slane %v784, %v799
  %v801 = vlaneseq
  %v802 = vshrl.u32 %v801, 7
  %v803 = vsub.s32 3, %v802
  %v804 = vrot.slane %v784, %v803
  %v805 = vlaneseq
  %v806 = vshrl.u32 %v805, 7
  %v807 = vsub.s32 4, %v806
  %v808 = vrot.slane %v784, %v807
  %v809 = vlaneseq
  %v810 = vshrl.u32 %v809, 7
  %v811 = vsub.s32 5, %v810
  %v812 = vrot.slane %v784, %v811
  %v813 = vlaneseq
  %v814 = vshrl.u32 %v813, 7
  %v815 = vsub.s32 6, %v814
  %v816 = vrot.slane %v784, %v815
  %v817 = vlaneseq
  %v818 = vshrl.u32 %v817, 7
  %v819 = vsub.s32 7, %v818
  %v820 = vrot.slane %v784, %v819
  %v821 = vlaneseq
  %v822 = vshrl.u32 %v821, 7
  %v823 = vsub.s32 0, %v822
  %v824 = vrot.slane %v786, %v823
  %v825 = vlaneseq
  %v826 = vshrl.u32 %v825, 7
  %v827 = vsub.s32 1, %v826
  %v828 = vrot.slane %v786, %v827
  %v829 = vlaneseq
  %v830 = vshrl.u32 %v829, 7
  %v831 = vsub.s32 2, %v830
  %v832 = vrot.slane %v786, %v831
  %v833 = vlaneseq
  %v834 = vshrl.u32 %v833, 7
  %v835 = vsub.s32 3, %v834
  %v836 = vrot.slane %v786, %v835
  %v837 = vlaneseq
  %v838 = vshrl.u32 %v837, 7
  %v839 = vsub.s32 4, %v838
  %v840 = vrot.slane %v786, %v839
  %v841 = vlaneseq
  %v842 = vshrl.u32 %v841, 7
  %v843 = vsub.s32 5, %v842
  %v844 = vrot.slane %v786, %v843
  %v845 = vlaneseq
  %v846 = vshrl.u32 %v845, 7
  %v847 = vsub.s32 6, %v846
  %v848 = vrot.slane %v786, %v847
  %v865 = vcombine.high %v15, %v15
  %v867 = vunpack.c.l.s4 1966171168
  %v868 = vunpack.c.0.s8 %v867
  %v869 = vlaneseq
  %v870 = vshrl.u32 %v869, 7
  %v871 = vsub.s32 %v868, %v870
  %v872 = vrot.slane %v15, %v871
  %v874 = vunpack.c.l.s4 1966171168
  %v875 = vunpack.c.0.s8 %v874
  %v876 = vlaneseq
  %v877 = vshrl.u32 %v876, 7
  %v878 = vsub.s32 %v875, %v877
  %v879 = vrot.slane %v865, %v878
  %v880 = vcombine.high %v872, %v872
  %v881 = vcombine.high %v879, %v879
  %v883 = vunpack.c.l.s4 1966171168
  %v884 = vunpack.c.0.s8 %v883
  %v885 = vlaneseq
  %v886 = vshrl.u32 %v885, 7
  %v887 = vsub.s32 %v884, %v886
  %v888 = vrot.slane %v872, %v887
  %v890 = vunpack.c.l.s4 1966171168
  %v891 = vunpack.c.0.s8 %v890
  %v892 = vlaneseq
  %v893 = vshrl.u32 %v892, 7
  %v894 = vsub.s32 %v891, %v893
  %v895 = vrot.slane %v879, %v894
  %v897 = vunpack.c.l.s4 1966171168
  %v898 = vunpack.c.0.s8 %v897
  %v899 = vlaneseq
  %v900 = vshrl.u32 %v899, 7
  %v901 = vsub.s32 %v898, %v900
  %v902 = vrot.slane %v880, %v901
  %v904 = vunpack.c.l.s4 1966171168
  %v905 = vunpack.c.0.s8 %v904
  %v906 = vlaneseq
  %v907 = vshrl.u32 %v906, 7
  %v908 = vsub.s32 %v905, %v907
  %v909 = vrot.slane %v881, %v908
  %v910 = vcombine.high %v888, %v888
  %v911 = vcombine.high %v902, %v902
  %v1686 = vunpack.c.l.b16 %v16
  %v1687 = vunpack.c.h.b16 %v16
  %v1688 = vunpack.c.l.b16 %v17
  %v1689 = vunpack.c.h.b16 %v17
  %v1690 = vunpack.c.l.b16 %v18
  %v1691 = vunpack.c.h.b16 %v18
  %v1692 = vunpack.c.l.b16 %v19
  %v1693 = vunpack.c.h.b16 %v19
  %v1694 = vunpack.c.l.b16 %v20
  %v1695 = vunpack.c.h.b16 %v20
  %v1696 = vunpack.c.l.b16 %v21
  %v1697 = vunpack.c.h.b16 %v21
  %v1698 = vunpack.c.l.b16 %v22
  %v1699 = vunpack.c.h.b16 %v22
  %v1700 = vunpack.c.l.b16 %v23
  %v1701 = vunpack.c.l.b16 %v24
  %v1702 = vunpack.c.h.b16 %v24
  %v1703 = vunpack.c.l.b16 %v25
  %v1704 = vunpack.c.h.b16 %v25
  %v1705 = vunpack.c.l.b16 %v26
  %v1706 = vunpack.c.h.b16 %v26
  %v1707 = vunpack.c.l.b16 %v27
  %v1708 = vunpack.c.h.b16 %v27
  %v1709 = vunpack.c.l.b16 %v28
  %v1710 = vunpack.c.h.b16 %v28
  %v1711 = vunpack.c.l.b16 %v29
  %v1712 = vunpack.c.h.b16 %v29
  %v1713 = vunpack.c.l.b16 %v30
  %v1714 = vunpack.c.h.b16 %v30
  %v1715 = vunpack.c.l.b16 %v31
  %v1716 = vunpack.c.l.b16 %v32
  %v1717 = vunpack.c.h.b16 %v32
  %v1718 = vunpack.c.l.b16 %v33
  %v1719 = vunpack.c.h.b16 %v33
  %v1720 = vunpack.c.l.b16 %v34
  %v1721 = vunpack.c.h.b16 %v34
  %v1722 = vunpack.c.l.b16 %v35
  %v1723 = vunpack.c.h.b16 %v35
  %v1724 = vunpack.c.l.b16 %v36
  %v1725 = vunpack.c.h.b16 %v36
  %v1726 = vunpack.c.l.b16 %v37
  %v1727 = vunpack.c.h.b16 %v37
  %v1728 = vunpack.c.l.b16 %v38
  %v1729 = vunpack.c.h.b16 %v38
  %v1730 = vunpack.c.l.b16 %v39
  %v1731 = vunpack.c.l.b16 %v40
  %v1732 = vunpack.c.h.b16 %v40
  %v1733 = vunpack.c.l.b16 %v41
  %v1734 = vunpack.c.h.b16 %v41
  %v1735 = vunpack.c.l.b16 %v42
  %v1736 = vunpack.c.h.b16 %v42
  %v1737 = vunpack.c.l.b16 %v43
  %v1738 = vunpack.c.h.b16 %v43
  %v1739 = vunpack.c.l.b16 %v44
  %v1740 = vunpack.c.h.b16 %v44
  %v1741 = vunpack.c.l.b16 %v45
  %v1742 = vunpack.c.h.b16 %v45
  %v1743 = vunpack.c.l.b16 %v46
  %v1744 = vunpack.c.h.b16 %v46
  %v1745 = vunpack.c.l.b16 %v47
  %v1746 = vunpack.c.l.b16 %v48
  %v1747 = vunpack.c.h.b16 %v48
  %v1748 = vunpack.c.l.b16 %v49
  %v1749 = vunpack.c.h.b16 %v49
  %v1750 = vunpack.c.l.b16 %v50
  %v1751 = vunpack.c.h.b16 %v50
  %v1752 = vunpack.c.l.b16 %v51
  %v1753 = vunpack.c.h.b16 %v51
  %v1754 = vunpack.c.l.b16 %v52
  %v1755 = vunpack.c.h.b16 %v52
  %v1756 = vunpack.c.l.b16 %v53
  %v1757 = vunpack.c.h.b16 %v53
  %v1758 = vunpack.c.l.b16 %v54
  %v1759 = vunpack.c.h.b16 %v54
  %v1760 = vunpack.c.l.b16 %v55
  %v1761 = vunpack.c.l.b16 %v56
  %v1762 = vunpack.c.h.b16 %v56
  %v1763 = vunpack.c.l.b16 %v57
  %v1764 = vunpack.c.h.b16 %v57
  %v1765 = vunpack.c.l.b16 %v58
  %v1766 = vunpack.c.h.b16 %v58
  %v1767 = vunpack.c.l.b16 %v59
  %v1768 = vunpack.c.h.b16 %v59
  %v1769 = vunpack.c.l.b16 %v60
  %v1770 = vunpack.c.h.b16 %v60
  %v1771 = vunpack.c.l.b16 %v61
  %v1772 = vunpack.c.h.b16 %v61
  %v1773 = vunpack.c.l.b16 %v62
  %v1774 = vunpack.c.h.b16 %v62
  %v1775 = vunpack.c.l.b16 %v63
  %v1776 = vunpack.c.l.b16 %v64
  %v1777 = vunpack.c.h.b16 %v64
  %v1778 = vunpack.c.l.b16 %v65
  %v1779 = vunpack.c.h.b16 %v65
  %v1780 = vunpack.c.l.b16 %v66
  %v1781 = vunpack.c.h.b16 %v66
  %v1782 = vunpack.c.l.b16 %v67
  %v1783 = vunpack.c.h.b16 %v67
  %v1784 = vunpack.c.l.b16 %v68
  %v1785 = vunpack.c.h.b16 %v68
  %v1786 = vunpack.c.l.b16 %v69
  %v1787 = vunpack.c.h.b16 %v69
  %v1788 = vunpack.c.l.b16 %v70
  %v1789 = vunpack.c.h.b16 %v70
  %v1790 = vunpack.c.l.b16 %v71
  %v1791 = vunpack.c.l.b16 %v72
  %v1792 = vunpack.c.h.b16 %v72
  %v1793 = vunpack.c.l.b16 %v73
  %v1794 = vunpack.c.h.b16 %v73
  %v1795 = vunpack.c.l.b16 %v74
  %v1796 = vunpack.c.h.b16 %v74
  %v1797 = vunpack.c.l.b16 %v75
  %v1798 = vunpack.c.h.b16 %v75
  %v1799 = vunpack.c.l.b16 %v76
  %v1800 = vunpack.c.h.b16 %v76
  %v1801 = vunpack.c.l.b16 %v77
  %v1802 = vunpack.c.h.b16 %v77
  %v1803 = vunpack.c.l.b16 %v78
  %v1804 = vunpack.c.h.b16 %v78
  %v1805 = vunpack.c.l.b16 %v79
  %v1806 = vunpack.c.l.b16 %v80
  %v1807 = vunpack.c.h.b16 %v80
  %v1808 = vunpack.c.l.b16 %v81
  %v1809 = vunpack.c.h.b16 %v81
  %v1810 = vunpack.c.l.b16 %v82
  %v1811 = vunpack.c.h.b16 %v82
  %v1812 = vunpack.c.l.b16 %v83
  %v1813 = vunpack.c.h.b16 %v83
  %v1814 = vunpack.c.l.b16 %v84
  %v1815 = vunpack.c.h.b16 %v84
  %v1816 = vunpack.c.l.b16 %v85
  %v1817 = vunpack.c.h.b16 %v85
  %v1818 = vunpack.c.l.b16 %v86
  %v1819 = vunpack.c.h.b16 %v86
  %v1820 = vunpack.c.l.b16 %v87
  %v1821 = vunpack.c.l.b16 %v88
  %v1822 = vunpack.c.h.b16 %v88
  %v1823 = vunpack.c.l.b16 %v89
  %v1824 = vunpack.c.h.b16 %v89
  %v1825 = vunpack.c.l.b16 %v90
  %v1826 = vunpack.c.h.b16 %v90
  %v1827 = vunpack.c.l.b16 %v91
  %v1828 = vunpack.c.h.b16 %v91
  %v1829 = vunpack.c.l.b16 %v92
  %v1830 = vunpack.c.h.b16 %v92
  %v1831 = vunpack.c.l.b16 %v93
  %v1832 = vunpack.c.h.b16 %v93
  %v1833 = vunpack.c.l.b16 %v94
  %v1834 = vunpack.c.h.b16 %v94
  %v1835 = vunpack.c.l.b16 %v95
  %v1836 = vunpack.c.l.b16 %v96
  %v1837 = vunpack.c.h.b16 %v96
  %v1838 = vunpack.c.l.b16 %v97
  %v1839 = vunpack.c.h.b16 %v97
  %v1840 = vunpack.c.l.b16 %v98
  %v1841 = vunpack.c.h.b16 %v98
  %v1842 = vunpack.c.l.b16 %v99
  %v1843 = vunpack.c.h.b16 %v99
  %v1844 = vunpack.c.l.b16 %v100
  %v1845 = vunpack.c.h.b16 %v100
  %v1846 = vunpack.c.l.b16 %v101
  %v1847 = vunpack.c.h.b16 %v101
  %v1848 = vunpack.c.l.b16 %v102
  %v1849 = vunpack.c.h.b16 %v102
  %v1850 = vunpack.c.l.b16 %v103
  %v1851 = vunpack.c.l.b16 %v104
  %v1852 = vunpack.c.h.b16 %v104
  %v1853 = vunpack.c.l.b16 %v105
  %v1854 = vunpack.c.h.b16 %v105
  %v1855 = vunpack.c.l.b16 %v106
  %v1856 = vunpack.c.h.b16 %v106
  %v1857 = vunpack.c.l.b16 %v107
  %v1858 = vunpack.c.h.b16 %v107
  %v1859 = vunpack.c.l.b16 %v108
  %v1860 = vunpack.c.h.b16 %v108
  %v1861 = vunpack.c.l.b16 %v109
  %v1862 = vunpack.c.h.b16 %v109
  %v1863 = vunpack.c.l.b16 %v110
  %v1864 = vunpack.c.h.b16 %v110
  %v1865 = vunpack.c.l.b16 %v111
  %v1866 = vunpack.c.l.b16 %v112
  %v1867 = vunpack.c.h.b16 %v112
  %v1868 = vunpack.c.l.b16 %v113
  %v1869 = vunpack.c.h.b16 %v113
  %v1870 = vunpack.c.l.b16 %v114
  %v1871 = vunpack.c.h.b16 %v114
  %v1872 = vunpack.c.l.b16 %v115
  %v1873 = vunpack.c.h.b16 %v115
  %v1874 = vunpack.c.l.b16 %v116
  %v1875 = vunpack.c.h.b16 %v116
  %v1876 = vunpack.c.l.b16 %v117
  %v1877 = vunpack.c.h.b16 %v117
  %v1878 = vunpack.c.l.b16 %v118
  %v1879 = vunpack.c.h.b16 %v118
  %v1880 = vunpack.c.l.b16 %v119
  %v1881 = vunpack.c.l.b16 %v120
  %v1882 = vunpack.c.h.b16 %v120
  %v1883 = vunpack.c.l.b16 %v121
  %v1884 = vunpack.c.h.b16 %v121
  %v1885 = vunpack.c.l.b16 %v122
  %v1886 = vunpack.c.h.b16 %v122
  %v1887 = vunpack.c.l.b16 %v123
  %v1888 = vunpack.c.h.b16 %v123
  %v1889 = vunpack.c.l.b16 %v124
  %v1890 = vunpack.c.h.b16 %v124
  %v1891 = vunpack.c.l.b16 %v125
  %v1892 = vunpack.c.h.b16 %v125
  %v1893 = vunpack.c.l.b16 %v126
  %v1894 = vunpack.c.h.b16 %v126
  %v1895 = vunpack.c.l.b16 %v127
  %v1896 = vunpack.c.l.b16 %v128
  %v1897 = vunpack.c.h.b16 %v128
  %v1898 = vunpack.c.l.b16 %v129
  %v1899 = vunpack.c.h.b16 %v129
  %v1900 = vunpack.c.l.b16 %v130
  %v1901 = vunpack.c.h.b16 %v130
  %v1902 = vunpack.c.l.b16 %v131
  %v1903 = vunpack.c.h.b16 %v131
  %v1904 = vunpack.c.l.b16 %v132
  %v1905 = vunpack.c.h.b16 %v132
  %v1906 = vunpack.c.l.b16 %v133
  %v1907 = vunpack.c.h.b16 %v133
  %v1908 = vunpack.c.l.b16 %v134
  %v1909 = vunpack.c.h.b16 %v134
  %v1910 = vunpack.c.l.b16 %v135
  %v1911 = vunpack.c.l.b16 %v136
  %v1912 = vunpack.c.h.b16 %v136
  %v1913 = vunpack.c.l.b16 %v137
  %v1914 = vunpack.c.h.b16 %v137
  %v1915 = vunpack.c.l.b16 %v138
  %v1916 = vunpack.c.h.b16 %v138
  %v1917 = vunpack.c.l.b16 %v139
  %v1918 = vunpack.c.h.b16 %v139
  %v1919 = vunpack.c.l.b16 %v140
  %v1920 = vunpack.c.h.b16 %v140
  %v1921 = vunpack.c.l.b16 %v141
  %v1922 = vunpack.c.h.b16 %v141
  %v1923 = vunpack.c.l.b16 %v142
  %v1924 = vunpack.c.h.b16 %v142
  %v1925 = vunpack.c.l.b16 %v143
  %v1926 = vunpack.c.l.b16 %v144
  %v1927 = vunpack.c.h.b16 %v144
  %v1928 = vunpack.c.l.b16 %v145
  %v1929 = vunpack.c.h.b16 %v145
  %v1930 = vunpack.c.l.b16 %v146
  %v1931 = vunpack.c.h.b16 %v146
  %v1932 = vunpack.c.l.b16 %v147
  %v1933 = vunpack.c.h.b16 %v147
  %v1934 = vunpack.c.l.b16 %v148
  %v1935 = vunpack.c.h.b16 %v148
  %v1936 = vunpack.c.l.b16 %v149
  %v1937 = vunpack.c.h.b16 %v149
  %v1938 = vunpack.c.l.b16 %v150
  %v1939 = vunpack.c.h.b16 %v150
  %v1940 = vunpack.c.l.b16 %v151
  %v1941 = vunpack.c.l.b16 %v152
  %v1942 = vunpack.c.h.b16 %v152
  %v1943 = vunpack.c.l.b16 %v153
  %v1944 = vunpack.c.h.b16 %v153
  %v1945 = vunpack.c.l.b16 %v154
  %v1946 = vunpack.c.h.b16 %v154
  %v1947 = vunpack.c.l.b16 %v155
  %v1948 = vunpack.c.h.b16 %v155
  %v1949 = vunpack.c.l.b16 %v156
  %v1950 = vunpack.c.h.b16 %v156
  %v1951 = vunpack.c.l.b16 %v157
  %v1952 = vunpack.c.h.b16 %v157
  %v1953 = vunpack.c.l.b16 %v158
  %v1954 = vunpack.c.h.b16 %v158
  %v1955 = vunpack.c.l.b16 %v159
  %v1956 = vunpack.c.l.b16 %v160
  %v1957 = vunpack.c.h.b16 %v160
  %v1958 = vunpack.c.l.b16 %v161
  %v1959 = vunpack.c.h.b16 %v161
  %v1960 = vunpack.c.l.b16 %v162
  %v1961 = vunpack.c.h.b16 %v162
  %v1962 = vunpack.c.l.b16 %v163
  %v1963 = vunpack.c.h.b16 %v163
  %v1964 = vunpack.c.l.b16 %v164
  %v1965 = vunpack.c.h.b16 %v164
  %v1966 = vunpack.c.l.b16 %v165
  %v1967 = vunpack.c.h.b16 %v165
  %v1968 = vunpack.c.l.b16 %v166
  %v1969 = vunpack.c.h.b16 %v166
  %v1970 = vunpack.c.l.b16 %v167
  %v1971 = vunpack.c.l.b16 %v168
  %v1972 = vunpack.c.h.b16 %v168
  %v1973 = vunpack.c.l.b16 %v169
  %v1974 = vunpack.c.h.b16 %v169
  %v1975 = vunpack.c.l.b16 %v170
  %v1976 = vunpack.c.h.b16 %v170
  %v1977 = vunpack.c.l.b16 %v171
  %v1978 = vunpack.c.h.b16 %v171
  %v1979 = vunpack.c.l.b16 %v172
  %v1980 = vunpack.c.h.b16 %v172
  %v1981 = vunpack.c.l.b16 %v173
  %v1982 = vunpack.c.h.b16 %v173
  %v1983 = vunpack.c.l.b16 %v174
  %v1984 = vunpack.c.h.b16 %v174
  %v1985 = vunpack.c.l.b16 %v175
  %v1986 = vunpack.c.l.b16 %v176
  %v1987 = vunpack.c.h.b16 %v176
  %v1988 = vunpack.c.l.b16 %v177
  %v1989 = vunpack.c.h.b16 %v177
  %v1990 = vunpack.c.l.b16 %v178
  %v1991 = vunpack.c.h.b16 %v178
  %v1992 = vunpack.c.l.b16 %v179
  %v1993 = vunpack.c.h.b16 %v179
  %v1994 = vunpack.c.l.b16 %v180
  %v1995 = vunpack.c.h.b16 %v180
  %v1996 = vunpack.c.l.b16 %v181
  %v1997 = vunpack.c.h.b16 %v181
  %v1998 = vunpack.c.l.b16 %v182
  %v1999 = vunpack.c.h.b16 %v182
  %v2000 = vunpack.c.l.b16 %v183
  %v2001 = vunpack.c.l.b16 %v184
  %v2002 = vunpack.c.h.b16 %v184
  %v2003 = vunpack.c.l.b16 %v185
  %v2004 = vunpack.c.h.b16 %v185
  %v2005 = vunpack.c.l.b16 %v186
  %v2006 = vunpack.c.h.b16 %v186
  %v2007 = vunpack.c.l.b16 %v187
  %v2008 = vunpack.c.h.b16 %v187
  %v2009 = vunpack.c.l.b16 %v188
  %v2010 = vunpack.c.h.b16 %v188
  %v2011 = vunpack.c.l.b16 %v189
  %v2012 = vunpack.c.h.b16 %v189
  %v2013 = vunpack.c.l.b16 %v190
  %v2014 = vunpack.c.h.b16 %v190
  %v2015 = vunpack.c.l.b16 %v191
  %v2016 = vunpack.c.l.b16 %v192
  %v2017 = vunpack.c.h.b16 %v192
  %v2018 = vunpack.c.l.b16 %v193
  %v2019 = vunpack.c.h.b16 %v193
  %v2020 = vunpack.c.l.b16 %v194
  %v2021 = vunpack.c.h.b16 %v194
  %v2022 = vunpack.c.l.b16 %v195
  %v2023 = vunpack.c.h.b16 %v195
  %v2024 = vunpack.c.l.b16 %v196
  %v2025 = vunpack.c.h.b16 %v196
  %v2026 = vunpack.c.l.b16 %v197
  %v2027 = vunpack.c.h.b16 %v197
  %v2028 = vunpack.c.l.b16 %v198
  %v2029 = vunpack.c.h.b16 %v198
  %v2030 = vunpack.c.l.b16 %v199
  %v2031 = vunpack.c.l.b16 %v200
  %v2032 = vunpack.c.h.b16 %v200
  %v2033 = vunpack.c.l.b16 %v201
  %v2034 = vunpack.c.h.b16 %v201
  %v2035 = vunpack.c.l.b16 %v202
  %v2036 = vunpack.c.h.b16 %v202
  %v2037 = vunpack.c.l.b16 %v203
  %v2038 = vunpack.c.h.b16 %v203
  %v2039 = vunpack.c.l.b16 %v204
  %v2040 = vunpack.c.h.b16 %v204
  %v2041 = vunpack.c.l.b16 %v205
  %v2042 = vunpack.c.h.b16 %v205
  %v2043 = vunpack.c.l.b16 %v206
  %v2044 = vunpack.c.h.b16 %v206
  %v2045 = vunpack.c.l.b16 %v207
  %v2046 = vunpack.c.l.b16 %v208
  %v2047 = vunpack.c.h.b16 %v208
  %v2048 = vunpack.c.l.b16 %v209
  %v2049 = vunpack.c.h.b16 %v209
  %v2050 = vunpack.c.l.b16 %v210
  %v2051 = vunpack.c.h.b16 %v210
  %v2052 = vunpack.c.l.b16 %v211
  %v2053 = vunpack.c.h.b16 %v211
  %v2054 = vunpack.c.l.b16 %v212
  %v2055 = vunpack.c.h.b16 %v212
  %v2056 = vunpack.c.l.b16 %v213
  %v2057 = vunpack.c.h.b16 %v213
  %v2058 = vunpack.c.l.b16 %v214
  %v2059 = vunpack.c.h.b16 %v214
  %v2060 = vunpack.c.l.b16 %v215
  %v2061 = vunpack.c.l.b16 %v216
  %v2062 = vunpack.c.h.b16 %v216
  %v2063 = vunpack.c.l.b16 %v217
  %v2064 = vunpack.c.h.b16 %v217
  %v2065 = vunpack.c.l.b16 %v218
  %v2066 = vunpack.c.h.b16 %v218
  %v2067 = vunpack.c.l.b16 %v219
  %v2068 = vunpack.c.h.b16 %v219
  %v2069 = vunpack.c.l.b16 %v220
  %v2070 = vunpack.c.h.b16 %v220
  %v2071 = vunpack.c.l.b16 %v221
  %v2072 = vunpack.c.h.b16 %v221
  %v2073 = vunpack.c.l.b16 %v222
  %v2074 = vunpack.c.h.b16 %v222
  %v2075 = vunpack.c.l.b16 %v223
  %v2076 = vunpack.c.l.b16 %v224
  %v2077 = vunpack.c.h.b16 %v224
  %v2078 = vunpack.c.l.b16 %v225
  %v2079 = vunpack.c.h.b16 %v225
  %v2080 = vunpack.c.l.b16 %v226
  %v2081 = vunpack.c.h.b16 %v226
  %v2082 = vunpack.c.l.b16 %v227
  %v2083 = vunpack.c.h.b16 %v227
  %v2084 = vunpack.c.l.b16 %v228
  %v2085 = vunpack.c.h.b16 %v228
  %v2086 = vunpack.c.l.b16 %v229
  %v2087 = vunpack.c.h.b16 %v229
  %v2088 = vunpack.c.l.b16 %v230
  %v2089 = vunpack.c.h.b16 %v230
  %v2090 = vunpack.c.l.b16 %v231
  %v2091 = vunpack.c.l.b16 %v232
  %v2092 = vunpack.c.h.b16 %v232
  %v2093 = vunpack.c.l.b16 %v233
  %v2094 = vunpack.c.h.b16 %v233
  %v2095 = vunpack.c.l.b16 %v234
  %v2096 = vunpack.c.h.b16 %v234
  %v2097 = vunpack.c.l.b16 %v235
  %v2098 = vunpack.c.h.b16 %v235
  %v2099 = vunpack.c.l.b16 %v236
  %v2100 = vunpack.c.h.b16 %v236
  %v2101 = vunpack.c.l.b16 %v237
  %v2102 = vunpack.c.h.b16 %v237
  %v2103 = vunpack.c.l.b16 %v238
  %v2104 = vunpack.c.h.b16 %v238
  %v2105 = vunpack.c.l.b16 %v239
  %v2106 = vunpack.c.l.b16 %v240
  %v2107 = vunpack.c.h.b16 %v240
  %v2108 = vunpack.c.l.b16 %v241
  %v2109 = vunpack.c.h.b16 %v241
  %v2110 = vunpack.c.l.b16 %v242
  %v2111 = vunpack.c.h.b16 %v242
  %v2112 = vunpack.c.l.b16 %v243
  %v2113 = vunpack.c.h.b16 %v243
  %v2114 = vunpack.c.l.b16 %v244
  %v2115 = vunpack.c.h.b16 %v244
  %v2116 = vunpack.c.l.b16 %v245
  %v2117 = vunpack.c.h.b16 %v245
  %v2118 = vunpack.c.l.b16 %v246
  %v2119 = vunpack.c.h.b16 %v246
  %v2120 = vunpack.c.l.b16 %v247
  %v2121 = vunpack.c.l.b16 %v248
  %v2122 = vunpack.c.h.b16 %v248
  %v2123 = vunpack.c.l.b16 %v249
  %v2124 = vunpack.c.h.b16 %v249
  %v2125 = vunpack.c.l.b16 %v250
  %v2126 = vunpack.c.h.b16 %v250
  %v2127 = vunpack.c.l.b16 %v251
  %v2128 = vunpack.c.h.b16 %v251
  %v2129 = vunpack.c.l.b16 %v252
  %v2130 = vunpack.c.h.b16 %v252
  %v2131 = vunpack.c.l.b16 %v253
  %v2132 = vunpack.c.h.b16 %v253
  %v2133 = vunpack.c.l.b16 %v254
  %v2134 = vunpack.c.h.b16 %v254
  %v2135 = vunpack.c.l.b16 %v255
  %v2136 = vunpack.c.l.b16 %v256
  %v2137 = vunpack.c.h.b16 %v256
  %v2138 = vunpack.c.l.b16 %v257
  %v2139 = vunpack.c.h.b16 %v257
  %v2140 = vunpack.c.l.b16 %v258
  %v2141 = vunpack.c.h.b16 %v258
  %v2142 = vunpack.c.l.b16 %v259
  %v2143 = vunpack.c.h.b16 %v259
  %v2144 = vunpack.c.l.b16 %v260
  %v2145 = vunpack.c.h.b16 %v260
  %v2146 = vunpack.c.l.b16 %v261
  %v2147 = vunpack.c.h.b16 %v261
  %v2148 = vunpack.c.l.b16 %v262
  %v2149 = vunpack.c.h.b16 %v262
  %v2150 = vunpack.c.l.b16 %v263
  %v2151 = vunpack.c.l.b16 %v264
  %v2152 = vunpack.c.h.b16 %v264
  %v2153 = vunpack.c.l.b16 %v265
  %v2154 = vunpack.c.h.b16 %v265
  %v2155 = vunpack.c.l.b16 %v266
  %v2156 = vunpack.c.h.b16 %v266
  %v2157 = vunpack.c.l.b16 %v267
  %v2158 = vunpack.c.h.b16 %v267
  %v2159 = vunpack.c.l.b16 %v268
  %v2160 = vunpack.c.h.b16 %v268
  %v2161 = vunpack.c.l.b16 %v269
  %v2162 = vunpack.c.h.b16 %v269
  %v2163 = vunpack.c.l.b16 %v270
  %v2164 = vunpack.c.h.b16 %v270
  %v2165 = vunpack.c.l.b16 %v271
  %v2166 = vunpack.c.l.b16 %v272
  %v2167 = vunpack.c.h.b16 %v272
  %v2168 = vunpack.c.l.b16 %v273
  %v2169 = vunpack.c.h.b16 %v273
  %v2170 = vunpack.c.l.b16 %v274
  %v2171 = vunpack.c.h.b16 %v274
  %v2172 = vunpack.c.l.b16 %v275
  %v2173 = vunpack.c.h.b16 %v275
  %v2174 = vunpack.c.l.b16 %v276
  %v2175 = vunpack.c.h.b16 %v276
  %v2176 = vunpack.c.l.b16 %v277
  %v2177 = vunpack.c.h.b16 %v277
  %v2178 = vunpack.c.l.b16 %v278
  %v2179 = vunpack.c.h.b16 %v278
  %v2180 = vunpack.c.l.b16 %v279
  %v2181 = vunpack.c.l.b16 %v280
  %v2182 = vunpack.c.h.b16 %v280
  %v2183 = vunpack.c.l.b16 %v281
  %v2184 = vunpack.c.h.b16 %v281
  %v2185 = vunpack.c.l.b16 %v282
  %v2186 = vunpack.c.h.b16 %v282
  %v2187 = vunpack.c.l.b16 %v283
  %v2188 = vunpack.c.h.b16 %v283
  %v2189 = vunpack.c.l.b16 %v284
  %v2190 = vunpack.c.h.b16 %v284
  %v2191 = vunpack.c.l.b16 %v285
  %v2192 = vunpack.c.h.b16 %v285
  %v2193 = vunpack.c.l.b16 %v286
  %v2194 = vunpack.c.h.b16 %v286
  %v2195 = vunpack.c.l.b16 %v287
  %v2196 = vunpack.c.l.b16 %v288
  %v2197 = vunpack.c.h.b16 %v288
  %v2198 = vunpack.c.l.b16 %v289
  %v2199 = vunpack.c.h.b16 %v289
  %v2200 = vunpack.c.l.b16 %v290
  %v2201 = vunpack.c.h.b16 %v290
  %v2202 = vunpack.c.l.b16 %v291
  %v2203 = vunpack.c.h.b16 %v291
  %v2204 = vunpack.c.l.b16 %v292
  %v2205 = vunpack.c.h.b16 %v292
  %v2206 = vunpack.c.l.b16 %v293
  %v2207 = vunpack.c.h.b16 %v293
  %v2208 = vunpack.c.l.b16 %v294
  %v2209 = vunpack.c.h.b16 %v294
  %v2210 = vunpack.c.l.b16 %v295
  %v2211 = vunpack.c.l.b16 %v296
  %v2212 = vunpack.c.h.b16 %v296
  %v2213 = vunpack.c.l.b16 %v297
  %v2214 = vunpack.c.h.b16 %v297
  %v2215 = vunpack.c.l.b16 %v298
  %v2216 = vunpack.c.h.b16 %v298
  %v2217 = vunpack.c.l.b16 %v299
  %v2218 = vunpack.c.h.b16 %v299
  %v2219 = vunpack.c.l.b16 %v300
  %v2220 = vunpack.c.h.b16 %v300
  %v2221 = vunpack.c.l.b16 %v301
  %v2222 = vunpack.c.h.b16 %v301
  %v2223 = vunpack.c.l.b16 %v302
  %v2224 = vunpack.c.h.b16 %v302
  %v2225 = vunpack.c.l.b16 %v303
  %v2226 = vunpack.c.l.b16 %v304
  %v2227 = vunpack.c.h.b16 %v304
  %v2228 = vunpack.c.l.b16 %v305
  %v2229 = vunpack.c.h.b16 %v305
  %v2230 = vunpack.c.l.b16 %v306
  %v2231 = vunpack.c.h.b16 %v306
  %v2232 = vunpack.c.l.b16 %v307
  %v2233 = vunpack.c.h.b16 %v307
  %v2234 = vunpack.c.l.b16 %v308
  %v2235 = vunpack.c.h.b16 %v308
  %v2236 = vunpack.c.l.b16 %v309
  %v2237 = vunpack.c.h.b16 %v309
  %v2238 = vunpack.c.l.b16 %v310
  %v2239 = vunpack.c.h.b16 %v310
  %v2240 = vunpack.c.l.b16 %v311
  %v2241 = vunpack.c.l.b16 %v312
  %v2242 = vunpack.c.h.b16 %v312
  %v2243 = vunpack.c.l.b16 %v313
  %v2244 = vunpack.c.h.b16 %v313
  %v2245 = vunpack.c.l.b16 %v314
  %v2246 = vunpack.c.h.b16 %v314
  %v2247 = vunpack.c.l.b16 %v315
  %v2248 = vunpack.c.h.b16 %v315
  %v2249 = vunpack.c.l.b16 %v316
  %v2250 = vunpack.c.h.b16 %v316
  %v2251 = vunpack.c.l.b16 %v317
  %v2252 = vunpack.c.h.b16 %v317
  %v2253 = vunpack.c.l.b16 %v318
  %v2254 = vunpack.c.h.b16 %v318
  %v2255 = vunpack.c.l.b16 %v319
  %v2256 = vunpack.c.l.b16 %v320
  %v2257 = vunpack.c.h.b16 %v320
  %v2258 = vunpack.c.l.b16 %v321
  %v2259 = vunpack.c.h.b16 %v321
  %v2260 = vunpack.c.l.b16 %v322
  %v2261 = vunpack.c.h.b16 %v322
  %v2262 = vunpack.c.l.b16 %v323
  %v2263 = vunpack.c.h.b16 %v323
  %v2264 = vunpack.c.l.b16 %v324
  %v2265 = vunpack.c.h.b16 %v324
  %v2266 = vunpack.c.l.b16 %v325
  %v2267 = vunpack.c.h.b16 %v325
  %v2268 = vunpack.c.l.b16 %v326
  %v2269 = vunpack.c.h.b16 %v326
  %v2270 = vunpack.c.l.b16 %v327
  %v2271 = vunpack.c.l.b16 %v328
  %v2272 = vunpack.c.h.b16 %v328
  %v2273 = vunpack.c.l.b16 %v329
  %v2274 = vunpack.c.h.b16 %v329
  %v2275 = vunpack.c.l.b16 %v330
  %v2276 = vunpack.c.h.b16 %v330
  %v2277 = vunpack.c.l.b16 %v331
  %v2278 = vunpack.c.h.b16 %v331
  %v2279 = vunpack.c.l.b16 %v332
  %v2280 = vunpack.c.h.b16 %v332
  %v2281 = vunpack.c.l.b16 %v333
  %v2282 = vunpack.c.h.b16 %v333
  %v2283 = vunpack.c.l.b16 %v334
  %v2284 = vunpack.c.h.b16 %v334
  %v2285 = vunpack.c.l.b16 %v335
  %v2286 = vunpack.c.l.b16 %v336
  %v2287 = vunpack.c.h.b16 %v336
  %v2288 = vunpack.c.l.b16 %v337
  %v2289 = vunpack.c.h.b16 %v337
  %v2290 = vunpack.c.l.b16 %v338
  %v2291 = vunpack.c.h.b16 %v338
  %v2292 = vunpack.c.l.b16 %v339
  %v2293 = vunpack.c.h.b16 %v339
  %v2294 = vunpack.c.l.b16 %v340
  %v2295 = vunpack.c.h.b16 %v340
  %v2296 = vunpack.c.l.b16 %v341
  %v2297 = vunpack.c.h.b16 %v341
  %v2298 = vunpack.c.l.b16 %v342
  %v2299 = vunpack.c.h.b16 %v342
  %v2300 = vunpack.c.l.b16 %v343
  %v2301 = vunpack.c.l.b16 %v344
  %v2302 = vunpack.c.h.b16 %v344
  %v2303 = vunpack.c.l.b16 %v345
  %v2304 = vunpack.c.h.b16 %v345
  %v2305 = vunpack.c.l.b16 %v346
  %v2306 = vunpack.c.h.b16 %v346
  %v2307 = vunpack.c.l.b16 %v347
  %v2308 = vunpack.c.h.b16 %v347
  %v2309 = vunpack.c.l.b16 %v348
  %v2310 = vunpack.c.h.b16 %v348
  %v2311 = vunpack.c.l.b16 %v349
  %v2312 = vunpack.c.h.b16 %v349
  %v2313 = vunpack.c.l.b16 %v350
  %v2314 = vunpack.c.h.b16 %v350
  %v2315 = vunpack.c.l.b16 %v351
  %v2316 = vunpack.c.l.b16 %v352
  %v2317 = vunpack.c.h.b16 %v352
  %v2318 = vunpack.c.l.b16 %v353
  %v2319 = vunpack.c.h.b16 %v353
  %v2320 = vunpack.c.l.b16 %v354
  %v2321 = vunpack.c.h.b16 %v354
  %v2322 = vunpack.c.l.b16 %v355
  %v2323 = vunpack.c.h.b16 %v355
  %v2324 = vunpack.c.l.b16 %v356
  %v2325 = vunpack.c.h.b16 %v356
  %v2326 = vunpack.c.l.b16 %v357
  %v2327 = vunpack.c.h.b16 %v357
  %v2328 = vunpack.c.l.b16 %v358
  %v2329 = vunpack.c.h.b16 %v358
  %v2330 = vunpack.c.l.b16 %v359
  %v2331 = vunpack.c.l.b16 %v360
  %v2332 = vunpack.c.h.b16 %v360
  %v2333 = vunpack.c.l.b16 %v361
  %v2334 = vunpack.c.h.b16 %v361
  %v2335 = vunpack.c.l.b16 %v362
  %v2336 = vunpack.c.h.b16 %v362
  %v2337 = vunpack.c.l.b16 %v363
  %v2338 = vunpack.c.h.b16 %v363
  %v2339 = vunpack.c.l.b16 %v364
  %v2340 = vunpack.c.h.b16 %v364
  %v2341 = vunpack.c.l.b16 %v365
  %v2342 = vunpack.c.h.b16 %v365
  %v2343 = vunpack.c.l.b16 %v366
  %v2344 = vunpack.c.h.b16 %v366
  %v2345 = vunpack.c.l.b16 %v367
  %v2346 = vunpack.c.l.b16 %v368
  %v2347 = vunpack.c.h.b16 %v368
  %v2348 = vunpack.c.l.b16 %v369
  %v2349 = vunpack.c.h.b16 %v369
  %v2350 = vunpack.c.l.b16 %v370
  %v2351 = vunpack.c.h.b16 %v370
  %v2352 = vunpack.c.l.b16 %v371
  %v2353 = vunpack.c.h.b16 %v371
  %v2354 = vunpack.c.l.b16 %v372
  %v2355 = vunpack.c.h.b16 %v372
  %v2356 = vunpack.c.l.b16 %v373
  %v2357 = vunpack.c.h.b16 %v373
  %v2358 = vunpack.c.l.b16 %v374
  %v2359 = vunpack.c.h.b16 %v374
  %v2360 = vunpack.c.l.b16 %v375
  %v2361 = vunpack.c.l.b16 %v376
  %v2362 = vunpack.c.h.b16 %v376
  %v2363 = vunpack.c.l.b16 %v377
  %v2364 = vunpack.c.h.b16 %v377
  %v2365 = vunpack.c.l.b16 %v378
  %v2366 = vunpack.c.h.b16 %v378
  %v2367 = vunpack.c.l.b16 %v379
  %v2368 = vunpack.c.h.b16 %v379
  %v2369 = vunpack.c.l.b16 %v380
  %v2370 = vunpack.c.h.b16 %v380
  %v2371 = vunpack.c.l.b16 %v381
  %v2372 = vunpack.c.h.b16 %v381
  %v2373 = vunpack.c.l.b16 %v382
  %v2374 = vunpack.c.h.b16 %v382
  %v2375 = vunpack.c.l.b16 %v383
  %v2376 = vunpack.c.l.b16 %v384
  %v2377 = vunpack.c.h.b16 %v384
  %v2378 = vunpack.c.l.b16 %v385
  %v2379 = vunpack.c.h.b16 %v385
  %v2380 = vunpack.c.l.b16 %v386
  %v2381 = vunpack.c.h.b16 %v386
  %v2382 = vunpack.c.l.b16 %v387
  %v2383 = vunpack.c.h.b16 %v387
  %v2384 = vunpack.c.l.b16 %v388
  %v2385 = vunpack.c.h.b16 %v388
  %v2386 = vunpack.c.l.b16 %v389
  %v2387 = vunpack.c.h.b16 %v389
  %v2388 = vunpack.c.l.b16 %v390
  %v2389 = vunpack.c.h.b16 %v390
  %v2390 = vunpack.c.l.b16 %v391
  %v2391 = vunpack.c.l.b16 %v392
  %v2392 = vunpack.c.h.b16 %v392
  %v2393 = vunpack.c.l.b16 %v393
  %v2394 = vunpack.c.h.b16 %v393
  %v2395 = vunpack.c.l.b16 %v394
  %v2396 = vunpack.c.h.b16 %v394
  %v2397 = vunpack.c.l.b16 %v395
  %v2398 = vunpack.c.h.b16 %v395
  %v2399 = vunpack.c.l.b16 %v396
  %v2400 = vunpack.c.h.b16 %v396
  %v2401 = vunpack.c.l.b16 %v397
  %v2402 = vunpack.c.h.b16 %v397
  %v2403 = vunpack.c.l.b16 %v398
  %v2404 = vunpack.c.h.b16 %v398
  %v2405 = vunpack.c.l.b16 %v399
  %v2406 = vunpack.c.l.b16 %v400
  %v2407 = vunpack.c.h.b16 %v400
  %v2408 = vunpack.c.l.b16 %v401
  %v2409 = vunpack.c.h.b16 %v401
  %v2410 = vunpack.c.l.b16 %v402
  %v2411 = vunpack.c.h.b16 %v402
  %v2412 = vunpack.c.l.b16 %v403
  %v2413 = vunpack.c.h.b16 %v403
  %v2414 = vunpack.c.l.b16 %v404
  %v2415 = vunpack.c.h.b16 %v404
  %v2416 = vunpack.c.l.b16 %v405
  %v2417 = vunpack.c.h.b16 %v405
  %v2418 = vunpack.c.l.b16 %v406
  %v2419 = vunpack.c.h.b16 %v406
  %v2420 = vunpack.c.l.b16 %v407
  %v2421 = vunpack.c.l.b16 %v408
  %v2422 = vunpack.c.h.b16 %v408
  %v2423 = vunpack.c.l.b16 %v409
  %v2424 = vunpack.c.h.b16 %v409
  %v2425 = vunpack.c.l.b16 %v410
  %v2426 = vunpack.c.h.b16 %v410
  %v2427 = vunpack.c.l.b16 %v411
  %v2428 = vunpack.c.h.b16 %v411
  %v2429 = vunpack.c.l.b16 %v412
  %v2430 = vunpack.c.h.b16 %v412
  %v2431 = vunpack.c.l.b16 %v413
  %v2432 = vunpack.c.h.b16 %v413
  %v2433 = vunpack.c.l.b16 %v414
  %v2434 = vunpack.c.h.b16 %v414
  %v2435 = vunpack.c.l.b16 %v415
  %v2436 = vunpack.c.l.b16 %v416
  %v2437 = vunpack.c.h.b16 %v416
  %v2438 = vunpack.c.l.b16 %v417
  %v2439 = vunpack.c.h.b16 %v417
  %v2440 = vunpack.c.l.b16 %v418
  %v2441 = vunpack.c.h.b16 %v418
  %v2442 = vunpack.c.l.b16 %v419
  %v2443 = vunpack.c.h.b16 %v419
  %v2444 = vunpack.c.l.b16 %v420
  %v2445 = vunpack.c.h.b16 %v420
  %v2446 = vunpack.c.l.b16 %v421
  %v2447 = vunpack.c.h.b16 %v421
  %v2448 = vunpack.c.l.b16 %v422
  %v2449 = vunpack.c.h.b16 %v422
  %v2450 = vunpack.c.l.b16 %v423
  %v2451 = vunpack.c.l.b16 %v424
  %v2452 = vunpack.c.h.b16 %v424
  %v2453 = vunpack.c.l.b16 %v425
  %v2454 = vunpack.c.h.b16 %v425
  %v2455 = vunpack.c.l.b16 %v426
  %v2456 = vunpack.c.h.b16 %v426
  %v2457 = vunpack.c.l.b16 %v427
  %v2458 = vunpack.c.h.b16 %v427
  %v2459 = vunpack.c.l.b16 %v428
  %v2460 = vunpack.c.h.b16 %v428
  %v2461 = vunpack.c.l.b16 %v429
  %v2462 = vunpack.c.h.b16 %v429
  %v2463 = vunpack.c.l.b16 %v430
  %v2464 = vunpack.c.h.b16 %v430
  %v2465 = vunpack.c.l.b16 %v431
  %v2466 = vunpack.c.l.b16 %v432
  %v2467 = vunpack.c.h.b16 %v432
  %v2468 = vunpack.c.l.b16 %v433
  %v2469 = vunpack.c.h.b16 %v433
  %v2470 = vunpack.c.l.b16 %v434
  %v2471 = vunpack.c.h.b16 %v434
  %v2472 = vunpack.c.l.b16 %v435
  %v2473 = vunpack.c.h.b16 %v435
  %v2474 = vunpack.c.l.b16 %v436
  %v2475 = vunpack.c.h.b16 %v436
  %v2476 = vunpack.c.l.b16 %v437
  %v2477 = vunpack.c.h.b16 %v437
  %v2478 = vunpack.c.l.b16 %v438
  %v2479 = vunpack.c.h.b16 %v438
  %v2480 = vunpack.c.l.b16 %v439
  %v2481 = vunpack.c.l.b16 %v440
  %v2482 = vunpack.c.h.b16 %v440
  %v2483 = vunpack.c.l.b16 %v441
  %v2484 = vunpack.c.h.b16 %v441
  %v2485 = vunpack.c.l.b16 %v442
  %v2486 = vunpack.c.h.b16 %v442
  %v2487 = vunpack.c.l.b16 %v443
  %v2488 = vunpack.c.h.b16 %v443
  %v2489 = vunpack.c.l.b16 %v444
  %v2490 = vunpack.c.h.b16 %v444
  %v2491 = vunpack.c.l.b16 %v445
  %v2492 = vunpack.c.h.b16 %v445
  %v2493 = vunpack.c.l.b16 %v446
  %v2494 = vunpack.c.h.b16 %v446
  %v2495 = vunpack.c.l.b16 %v447
  %v2496 = vunpack.c.l.b16 %v448
  %v2497 = vunpack.c.h.b16 %v448
  %v2498 = vunpack.c.l.b16 %v449
  %v2499 = vunpack.c.h.b16 %v449
  %v2500 = vunpack.c.l.b16 %v450
  %v2501 = vunpack.c.h.b16 %v450
  %v2502 = vunpack.c.l.b16 %v451
  %v2503 = vunpack.c.h.b16 %v451
  %v2504 = vunpack.c.l.b16 %v452
  %v2505 = vunpack.c.h.b16 %v452
  %v2506 = vunpack.c.l.b16 %v453
  %v2507 = vunpack.c.h.b16 %v453
  %v2508 = vunpack.c.l.b16 %v454
  %v2509 = vunpack.c.h.b16 %v454
  %v2510 = vunpack.c.l.b16 %v455
  %v2511 = vunpack.c.l.b16 %v456
  %v2512 = vunpack.c.h.b16 %v456
  %v2513 = vunpack.c.l.b16 %v457
  %v2514 = vunpack.c.h.b16 %v457
  %v2515 = vunpack.c.l.b16 %v458
  %v2516 = vunpack.c.h.b16 %v458
  %v2517 = vunpack.c.l.b16 %v459
  %v2518 = vunpack.c.h.b16 %v459
  %v2519 = vunpack.c.l.b16 %v460
  %v2520 = vunpack.c.h.b16 %v460
  %v2521 = vunpack.c.l.b16 %v461
  %v2522 = vunpack.c.h.b16 %v461
  %v2523 = vunpack.c.l.b16 %v462
  %v2524 = vunpack.c.h.b16 %v462
  %v2525 = vunpack.c.l.b16 %v463
  %v2526 = vunpack.c.l.b16 %v464
  %v2527 = vunpack.c.h.b16 %v464
  %v2528 = vunpack.c.l.b16 %v465
  %v2529 = vunpack.c.h.b16 %v465
  %v2530 = vunpack.c.l.b16 %v466
  %v2531 = vunpack.c.h.b16 %v466
  %v2532 = vunpack.c.l.b16 %v467
  %v2533 = vunpack.c.h.b16 %v467
  %v2534 = vunpack.c.l.b16 %v468
  %v2535 = vunpack.c.h.b16 %v468
  %v2536 = vunpack.c.l.b16 %v469
  %v2537 = vunpack.c.h.b16 %v469
  %v2538 = vunpack.c.l.b16 %v470
  %v2539 = vunpack.c.h.b16 %v470
  %v2540 = vunpack.c.l.b16 %v471
  %v2541 = vunpack.c.l.b16 %v472
  %v2542 = vunpack.c.h.b16 %v472
  %v2543 = vunpack.c.l.b16 %v473
  %v2544 = vunpack.c.h.b16 %v473
  %v2545 = vunpack.c.l.b16 %v474
  %v2546 = vunpack.c.h.b16 %v474
  %v2547 = vunpack.c.l.b16 %v475
  %v2548 = vunpack.c.h.b16 %v475
  %v2549 = vunpack.c.l.b16 %v476
  %v2550 = vunpack.c.h.b16 %v476
  %v2551 = vunpack.c.l.b16 %v477
  %v2552 = vunpack.c.h.b16 %v477
  %v2553 = vunpack.c.l.b16 %v478
  %v2554 = vunpack.c.h.b16 %v478
  %v2555 = vunpack.c.l.b16 %v479
  %v2556 = vunpack.c.l.b16 %v480
  %v2557 = vunpack.c.h.b16 %v480
  %v2558 = vunpack.c.l.b16 %v481
  %v2559 = vunpack.c.h.b16 %v481
  %v2560 = vunpack.c.l.b16 %v482
  %v2561 = vunpack.c.h.b16 %v482
  %v2562 = vunpack.c.l.b16 %v483
  %v2563 = vunpack.c.h.b16 %v483
  %v2564 = vunpack.c.l.b16 %v484
  %v2565 = vunpack.c.h.b16 %v484
  %v2566 = vunpack.c.l.b16 %v485
  %v2567 = vunpack.c.h.b16 %v485
  %v2568 = vunpack.c.l.b16 %v486
  %v2569 = vunpack.c.h.b16 %v486
  %v2570 = vunpack.c.l.b16 %v487
  %v2571 = vunpack.c.l.b16 %v488
  %v2572 = vunpack.c.h.b16 %v488
  %v2573 = vunpack.c.l.b16 %v489
  %v2574 = vunpack.c.h.b16 %v489
  %v2575 = vunpack.c.l.b16 %v490
  %v2576 = vunpack.c.h.b16 %v490
  %v2577 = vunpack.c.l.b16 %v491
  %v2578 = vunpack.c.h.b16 %v491
  %v2579 = vunpack.c.l.b16 %v492
  %v2580 = vunpack.c.h.b16 %v492
  %v2581 = vunpack.c.l.b16 %v493
  %v2582 = vunpack.c.h.b16 %v493
  %v2583 = vunpack.c.l.b16 %v494
  %v2584 = vunpack.c.h.b16 %v494
  %v2585 = vunpack.c.l.b16 %v495
  %v2586 = vunpack.c.l.b16 %v496
  %v2587 = vunpack.c.h.b16 %v496
  %v2588 = vunpack.c.l.b16 %v497
  %v2589 = vunpack.c.h.b16 %v497
  %v2590 = vunpack.c.l.b16 %v498
  %v2591 = vunpack.c.h.b16 %v498
  %v2592 = vunpack.c.l.b16 %v499
  %v2593 = vunpack.c.h.b16 %v499
  %v2594 = vunpack.c.l.b16 %v500
  %v2595 = vunpack.c.h.b16 %v500
  %v2596 = vunpack.c.l.b16 %v501
  %v2597 = vunpack.c.h.b16 %v501
  %v2598 = vunpack.c.l.b16 %v502
  %v2599 = vunpack.c.h.b16 %v502
  %v2600 = vunpack.c.l.b16 %v503
  %v2601 = vunpack.c.l.b16 %v504
  %v2602 = vunpack.c.h.b16 %v504
  %v2603 = vunpack.c.l.b16 %v505
  %v2604 = vunpack.c.h.b16 %v505
  %v2605 = vunpack.c.l.b16 %v506
  %v2606 = vunpack.c.h.b16 %v506
  %v2607 = vunpack.c.l.b16 %v507
  %v2608 = vunpack.c.h.b16 %v507
  %v2609 = vunpack.c.l.b16 %v508
  %v2610 = vunpack.c.h.b16 %v508
  %v2611 = vunpack.c.l.b16 %v509
  %v2612 = vunpack.c.h.b16 %v509
  %v2613 = vunpack.c.l.b16 %v510
  %v2614 = vunpack.c.h.b16 %v510
  %v2615 = vunpack.c.l.b16 %v511
  %v2616 = vunpack.c.l.b16 %v512
  %v2617 = vunpack.c.h.b16 %v512
  %v2618 = vunpack.c.l.b16 %v513
  %v2619 = vunpack.c.h.b16 %v513
  %v2620 = vunpack.c.l.b16 %v514
  %v2621 = vunpack.c.h.b16 %v514
  %v2622 = vunpack.c.l.b16 %v515
  %v2623 = vunpack.c.h.b16 %v515
  %v2624 = vunpack.c.l.b16 %v516
  %v2625 = vunpack.c.h.b16 %v516
  %v2626 = vunpack.c.l.b16 %v517
  %v2627 = vunpack.c.h.b16 %v517
  %v2628 = vunpack.c.l.b16 %v518
  %v2629 = vunpack.c.h.b16 %v518
  %v2630 = vunpack.c.l.b16 %v519
  %v2631 = vunpack.c.l.b16 %v520
  %v2632 = vunpack.c.h.b16 %v520
  %v2633 = vunpack.c.l.b16 %v521
  %v2634 = vunpack.c.h.b16 %v521
  %v2635 = vunpack.c.l.b16 %v522
  %v2636 = vunpack.c.h.b16 %v522
  %v2637 = vunpack.c.l.b16 %v523
  %v2638 = vunpack.c.h.b16 %v523
  %v2639 = vunpack.c.l.b16 %v524
  %v2640 = vunpack.c.h.b16 %v524
  %v2641 = vunpack.c.l.b16 %v525
  %v2642 = vunpack.c.h.b16 %v525
  %v2643 = vunpack.c.l.b16 %v526
  %v2644 = vunpack.c.h.b16 %v526
  %v2645 = vunpack.c.l.b16 %v527
  %v2646 = vunpack.c.l.b16 %v528
  %v2647 = vunpack.c.h.b16 %v528
  %v2648 = vunpack.c.l.b16 %v529
  %v2649 = vunpack.c.h.b16 %v529
  %v2650 = vunpack.c.l.b16 %v530
  %v2651 = vunpack.c.h.b16 %v530
  %v2652 = vunpack.c.l.b16 %v531
  %v2653 = vunpack.c.h.b16 %v531
  %v2654 = vunpack.c.l.b16 %v532
  %v2655 = vunpack.c.h.b16 %v532
  %v2656 = vunpack.c.l.b16 %v533
  %v2657 = vunpack.c.h.b16 %v533
  %v2658 = vunpack.c.l.b16 %v534
  %v2659 = vunpack.c.h.b16 %v534
  %v2660 = vunpack.c.l.b16 %v535
  %v2661 = vunpack.c.l.b16 %v536
  %v2662 = vunpack.c.h.b16 %v536
  %v2663 = vunpack.c.l.b16 %v537
  %v2664 = vunpack.c.h.b16 %v537
  %v2665 = vunpack.c.l.b16 %v538
  %v2666 = vunpack.c.h.b16 %v538
  %v2667 = vunpack.c.l.b16 %v539
  %v2668 = vunpack.c.h.b16 %v539
  %v2669 = vunpack.c.l.b16 %v540
  %v2670 = vunpack.c.h.b16 %v540
  %v2671 = vunpack.c.l.b16 %v541
  %v2672 = vunpack.c.h.b16 %v541
  %v2673 = vunpack.c.l.b16 %v542
  %v2674 = vunpack.c.h.b16 %v542
  %v2675 = vunpack.c.l.b16 %v543
  %v2676 = vunpack.c.l.b16 %v544
  %v2677 = vunpack.c.h.b16 %v544
  %v2678 = vunpack.c.l.b16 %v545
  %v2679 = vunpack.c.h.b16 %v545
  %v2680 = vunpack.c.l.b16 %v546
  %v2681 = vunpack.c.h.b16 %v546
  %v2682 = vunpack.c.l.b16 %v547
  %v2683 = vunpack.c.h.b16 %v547
  %v2684 = vunpack.c.l.b16 %v548
  %v2685 = vunpack.c.h.b16 %v548
  %v2686 = vunpack.c.l.b16 %v549
  %v2687 = vunpack.c.h.b16 %v549
  %v2688 = vunpack.c.l.b16 %v550
  %v2689 = vunpack.c.h.b16 %v550
  %v2690 = vunpack.c.l.b16 %v551
  %v2691 = vunpack.c.l.b16 %v552
  %v2692 = vunpack.c.h.b16 %v552
  %v2693 = vunpack.c.l.b16 %v553
  %v2694 = vunpack.c.h.b16 %v553
  %v2695 = vunpack.c.l.b16 %v554
  %v2696 = vunpack.c.h.b16 %v554
  %v2697 = vunpack.c.l.b16 %v555
  %v2698 = vunpack.c.h.b16 %v555
  %v2699 = vunpack.c.l.b16 %v556
  %v2700 = vunpack.c.h.b16 %v556
  %v2701 = vunpack.c.l.b16 %v557
  %v2702 = vunpack.c.h.b16 %v557
  %v2703 = vunpack.c.l.b16 %v558
  %v2704 = vunpack.c.h.b16 %v558
  %v2705 = vunpack.c.l.b16 %v559
  %v2706 = vunpack.c.l.b16 %v560
  %v2707 = vunpack.c.h.b16 %v560
  %v2708 = vunpack.c.l.b16 %v561
  %v2709 = vunpack.c.h.b16 %v561
  %v2710 = vunpack.c.l.b16 %v562
  %v2711 = vunpack.c.h.b16 %v562
  %v2712 = vunpack.c.l.b16 %v563
  %v2713 = vunpack.c.h.b16 %v563
  %v2714 = vunpack.c.l.b16 %v564
  %v2715 = vunpack.c.h.b16 %v564
  %v2716 = vunpack.c.l.b16 %v565
  %v2717 = vunpack.c.h.b16 %v565
  %v2718 = vunpack.c.l.b16 %v566
  %v2719 = vunpack.c.h.b16 %v566
  %v2720 = vunpack.c.l.b16 %v567
  %v2721 = vunpack.c.l.b16 %v568
  %v2722 = vunpack.c.h.b16 %v568
  %v2723 = vunpack.c.l.b16 %v569
  %v2724 = vunpack.c.h.b16 %v569
  %v2725 = vunpack.c.l.b16 %v570
  %v2726 = vunpack.c.h.b16 %v570
  %v2727 = vunpack.c.l.b16 %v571
  %v2728 = vunpack.c.h.b16 %v571
  %v2729 = vunpack.c.l.b16 %v572
  %v2730 = vunpack.c.h.b16 %v572
  %v2731 = vunpack.c.l.b16 %v573
  %v2732 = vunpack.c.h.b16 %v573
  %v2733 = vunpack.c.l.b16 %v574
  %v2734 = vunpack.c.h.b16 %v574
  %v2735 = vunpack.c.l.b16 %v575
  %v2736 = vunpack.c.l.b16 %v576
  %v2737 = vunpack.c.h.b16 %v576
  %v2738 = vunpack.c.l.b16 %v577
  %v2739 = vunpack.c.h.b16 %v577
  %v2740 = vunpack.c.l.b16 %v578
  %v2741 = vunpack.c.h.b16 %v578
  %v2742 = vunpack.c.l.b16 %v579
  %v2743 = vunpack.c.h.b16 %v579
  %v2744 = vunpack.c.l.b16 %v580
  %v2745 = vunpack.c.h.b16 %v580
  %v2746 = vunpack.c.l.b16 %v581
  %v2747 = vunpack.c.h.b16 %v581
  %v2748 = vunpack.c.l.b16 %v582
  %v2749 = vunpack.c.h.b16 %v582
  %v2750 = vunpack.c.l.b16 %v583
  %v2751 = vunpack.c.l.b16 %v584
  %v2752 = vunpack.c.h.b16 %v584
  %v2753 = vunpack.c.l.b16 %v585
  %v2754 = vunpack.c.h.b16 %v585
  %v2755 = vunpack.c.l.b16 %v586
  %v2756 = vunpack.c.h.b16 %v586
  %v2757 = vunpack.c.l.b16 %v587
  %v2758 = vunpack.c.h.b16 %v587
  %v2759 = vunpack.c.l.b16 %v588
  %v2760 = vunpack.c.h.b16 %v588
  %v2761 = vunpack.c.l.b16 %v589
  %v2762 = vunpack.c.h.b16 %v589
  %v2763 = vunpack.c.l.b16 %v590
  %v2764 = vunpack.c.h.b16 %v590
  %v2765 = vunpack.c.l.b16 %v591
  %v2766 = vunpack.c.l.b16 %v592
  %v2767 = vunpack.c.h.b16 %v592
  %v2768 = vunpack.c.l.b16 %v593
  %v2769 = vunpack.c.h.b16 %v593
  %v2770 = vunpack.c.l.b16 %v594
  %v2771 = vunpack.c.h.b16 %v594
  %v2772 = vunpack.c.l.b16 %v595
  %v2773 = vunpack.c.h.b16 %v595
  %v2774 = vunpack.c.l.b16 %v596
  %v2775 = vunpack.c.h.b16 %v596
  %v2776 = vunpack.c.l.b16 %v597
  %v2777 = vunpack.c.h.b16 %v597
  %v2778 = vunpack.c.l.b16 %v598
  %v2779 = vunpack.c.h.b16 %v598
  %v2780 = vunpack.c.l.b16 %v599
  %v2781 = vunpack.c.l.b16 %v600
  %v2782 = vunpack.c.h.b16 %v600
  %v2783 = vunpack.c.l.b16 %v601
  %v2784 = vunpack.c.h.b16 %v601
  %v2785 = vunpack.c.l.b16 %v602
  %v2786 = vunpack.c.h.b16 %v602
  %v2787 = vunpack.c.l.b16 %v603
  %v2788 = vunpack.c.h.b16 %v603
  %v2789 = vunpack.c.l.b16 %v604
  %v2790 = vunpack.c.h.b16 %v604
  %v2791 = vunpack.c.l.b16 %v605
  %v2792 = vunpack.c.h.b16 %v605
  %v2793 = vunpack.c.l.b16 %v606
  %v2794 = vunpack.c.h.b16 %v606
  %v2795 = vunpack.c.l.b16 %v607
  %v2796 = vunpack.c.l.b16 %v608
  %v2797 = vunpack.c.h.b16 %v608
  %v2798 = vunpack.c.l.b16 %v609
  %v2799 = vunpack.c.h.b16 %v609
  %v2800 = vunpack.c.l.b16 %v610
  %v2801 = vunpack.c.h.b16 %v610
  %v2802 = vunpack.c.l.b16 %v611
  %v2803 = vunpack.c.h.b16 %v611
  %v2804 = vunpack.c.l.b16 %v612
  %v2805 = vunpack.c.h.b16 %v612
  %v2806 = vunpack.c.l.b16 %v613
  %v2807 = vunpack.c.h.b16 %v613
  %v2808 = vunpack.c.l.b16 %v614
  %v2809 = vunpack.c.h.b16 %v614
  %v2810 = vunpack.c.l.b16 %v615
  %v2811 = vunpack.c.l.b16 %v616
  %v2812 = vunpack.c.h.b16 %v616
  %v2813 = vunpack.c.l.b16 %v617
  %v2814 = vunpack.c.h.b16 %v617
  %v2815 = vunpack.c.l.b16 %v618
  %v2816 = vunpack.c.h.b16 %v618
  %v2817 = vunpack.c.l.b16 %v619
  %v2818 = vunpack.c.h.b16 %v619
  %v2819 = vunpack.c.l.b16 %v620
  %v2820 = vunpack.c.h.b16 %v620
  %v2821 = vunpack.c.l.b16 %v621
  %v2822 = vunpack.c.h.b16 %v621
  %v2823 = vunpack.c.l.b16 %v622
  %v2824 = vunpack.c.h.b16 %v622
  %v2825 = vunpack.c.l.b16 %v623
  %v2826 = vunpack.c.l.b16 %v624
  %v2827 = vunpack.c.h.b16 %v624
  %v2828 = vunpack.c.l.b16 %v625
  %v2829 = vunpack.c.h.b16 %v625
  %v2830 = vunpack.c.l.b16 %v626
  %v2831 = vunpack.c.h.b16 %v626
  %v2832 = vunpack.c.l.b16 %v627
  %v2833 = vunpack.c.h.b16 %v627
  %v2834 = vunpack.c.l.b16 %v628
  %v2835 = vunpack.c.h.b16 %v628
  %v2836 = vunpack.c.l.b16 %v629
  %v2837 = vunpack.c.h.b16 %v629
  %v2838 = vunpack.c.l.b16 %v630
  %v2839 = vunpack.c.h.b16 %v630
  %v2840 = vunpack.c.l.b16 %v631
  %v2841 = vunpack.c.l.b16 %v632
  %v2842 = vunpack.c.h.b16 %v632
  %v2843 = vunpack.c.l.b16 %v633
  %v2844 = vunpack.c.h.b16 %v633
  %v2845 = vunpack.c.l.b16 %v634
  %v2846 = vunpack.c.h.b16 %v634
  %v2847 = vunpack.c.l.b16 %v635
  %v2848 = vunpack.c.h.b16 %v635
  %v2849 = vunpack.c.l.b16 %v636
  %v2850 = vunpack.c.h.b16 %v636
  %v2851 = vunpack.c.l.b16 %v637
  %v2852 = vunpack.c.h.b16 %v637
  %v2853 = vunpack.c.l.b16 %v638
  %v2854 = vunpack.c.h.b16 %v638
  %v2855 = vunpack.c.l.b16 %v639
  %v2856 = vunpack.c.l.b16 %v640
  %v2857 = vunpack.c.h.b16 %v640
  %v2858 = vunpack.c.l.b16 %v641
  %v2859 = vunpack.c.h.b16 %v641
  %v2860 = vunpack.c.l.b16 %v642
  %v2861 = vunpack.c.h.b16 %v642
  %v2862 = vunpack.c.l.b16 %v643
  %v2863 = vunpack.c.h.b16 %v643
  %v2864 = vunpack.c.l.b16 %v644
  %v2865 = vunpack.c.h.b16 %v644
  %v2866 = vunpack.c.l.b16 %v645
  %v2867 = vunpack.c.h.b16 %v645
  %v2868 = vunpack.c.l.b16 %v646
  %v2869 = vunpack.c.h.b16 %v646
  %v2870 = vunpack.c.l.b16 %v647
  %v2871 = vunpack.c.l.b16 %v648
  %v2872 = vunpack.c.h.b16 %v648
  %v2873 = vunpack.c.l.b16 %v649
  %v2874 = vunpack.c.h.b16 %v649
  %v2875 = vunpack.c.l.b16 %v650
  %v2876 = vunpack.c.h.b16 %v650
  %v2877 = vunpack.c.l.b16 %v651
  %v2878 = vunpack.c.h.b16 %v651
  %v2879 = vunpack.c.l.b16 %v652
  %v2880 = vunpack.c.h.b16 %v652
  %v2881 = vunpack.c.l.b16 %v653
  %v2882 = vunpack.c.h.b16 %v653
  %v2883 = vunpack.c.l.b16 %v654
  %v2884 = vunpack.c.h.b16 %v654
  %v2885 = vunpack.c.l.b16 %v655
  %v2886 = vunpack.c.l.b16 %v656
  %v2887 = vunpack.c.h.b16 %v656
  %v2888 = vunpack.c.l.b16 %v657
  %v2889 = vunpack.c.h.b16 %v657
  %v2890 = vunpack.c.l.b16 %v658
  %v2891 = vunpack.c.h.b16 %v658
  %v2892 = vunpack.c.l.b16 %v659
  %v2893 = vunpack.c.h.b16 %v659
  %v2894 = vunpack.c.l.b16 %v660
  %v2895 = vunpack.c.h.b16 %v660
  %v2896 = vunpack.c.l.b16 %v661
  %v2897 = vunpack.c.h.b16 %v661
  %v2898 = vunpack.c.l.b16 %v662
  %v2899 = vunpack.c.h.b16 %v662
  %v2900 = vunpack.c.l.b16 %v663
  %v2901 = vunpack.c.l.b16 %v664
  %v2902 = vunpack.c.h.b16 %v664
  %v2903 = vunpack.c.l.b16 %v665
  %v2904 = vunpack.c.h.b16 %v665
  %v2905 = vunpack.c.l.b16 %v666
  %v2906 = vunpack.c.h.b16 %v666
  %v2907 = vunpack.c.l.b16 %v667
  %v2908 = vunpack.c.h.b16 %v667
  %v2909 = vunpack.c.l.b16 %v668
  %v2910 = vunpack.c.h.b16 %v668
  %v2911 = vunpack.c.l.b16 %v669
  %v2912 = vunpack.c.h.b16 %v669
  %v2913 = vunpack.c.l.b16 %v670
  %v2914 = vunpack.c.h.b16 %v670
  %v2915 = vunpack.c.l.b16 %v671
  %v2916 = vunpack.c.l.b16 %v672
  %v2917 = vunpack.c.h.b16 %v672
  %v2918 = vunpack.c.l.b16 %v673
  %v2919 = vunpack.c.h.b16 %v673
  %v2920 = vunpack.c.l.b16 %v674
  %v2921 = vunpack.c.h.b16 %v674
  %v2922 = vunpack.c.l.b16 %v675
  %v2923 = vunpack.c.h.b16 %v675
  %v2924 = vunpack.c.l.b16 %v676
  %v2925 = vunpack.c.h.b16 %v676
  %v2926 = vunpack.c.l.b16 %v677
  %v2927 = vunpack.c.h.b16 %v677
  %v2928 = vunpack.c.l.b16 %v678
  %v2929 = vunpack.c.h.b16 %v678
  %v2930 = vunpack.c.l.b16 %v679
  %v2931 = vunpack.c.l.b16 %v680
  %v2932 = vunpack.c.h.b16 %v680
  %v2933 = vunpack.c.l.b16 %v681
  %v2934 = vunpack.c.h.b16 %v681
  %v2935 = vunpack.c.l.b16 %v682
  %v2936 = vunpack.c.h.b16 %v682
  %v2937 = vunpack.c.l.b16 %v683
  %v2938 = vunpack.c.h.b16 %v683
  %v2939 = vunpack.c.l.b16 %v684
  %v2940 = vunpack.c.h.b16 %v684
  %v2941 = vunpack.c.l.b16 %v685
  %v2942 = vunpack.c.h.b16 %v685
  %v2943 = vunpack.c.l.b16 %v686
  %v2944 = vunpack.c.h.b16 %v686
  %v2945 = vunpack.c.l.b16 %v687
  %v2946 = vunpack.c.l.b16 %v688
  %v2947 = vunpack.c.h.b16 %v688
  %v2948 = vunpack.c.l.b16 %v689
  %v2949 = vunpack.c.h.b16 %v689
  %v2950 = vunpack.c.l.b16 %v690
  %v2951 = vunpack.c.h.b16 %v690
  %v2952 = vunpack.c.l.b16 %v691
  %v2953 = vunpack.c.h.b16 %v691
  %v2954 = vunpack.c.l.b16 %v692
  %v2955 = vunpack.c.h.b16 %v692
  %v2956 = vunpack.c.l.b16 %v693
  %v2957 = vunpack.c.h.b16 %v693
  %v2958 = vunpack.c.l.b16 %v694
  %v2959 = vunpack.c.h.b16 %v694
  %v2960 = vunpack.c.l.b16 %v695
  %v2961 = vunpack.c.l.b16 %v696
  %v2962 = vunpack.c.h.b16 %v696
  %v2963 = vunpack.c.l.b16 %v697
  %v2964 = vunpack.c.h.b16 %v697
  %v2965 = vunpack.c.l.b16 %v698
  %v2966 = vunpack.c.h.b16 %v698
  %v2967 = vunpack.c.l.b16 %v699
  %v2968 = vunpack.c.h.b16 %v699
  %v2969 = vunpack.c.l.b16 %v700
  %v2970 = vunpack.c.h.b16 %v700
  %v2971 = vunpack.c.l.b16 %v701
  %v2972 = vunpack.c.h.b16 %v701
  %v2973 = vunpack.c.l.b16 %v702
  %v2974 = vunpack.c.h.b16 %v702
  %v2975 = vunpack.c.l.b16 %v703
  %v2976 = vunpack.c.l.b16 %v704
  %v2977 = vunpack.c.h.b16 %v704
  %v2978 = vunpack.c.l.b16 %v705
  %v2979 = vunpack.c.h.b16 %v705
  %v2980 = vunpack.c.l.b16 %v706
  %v2981 = vunpack.c.h.b16 %v706
  %v2982 = vunpack.c.l.b16 %v707
  %v2983 = vunpack.c.h.b16 %v707
  %v2984 = vunpack.c.l.b16 %v708
  %v2985 = vunpack.c.h.b16 %v708
  %v2986 = vunpack.c.l.b16 %v709
  %v2987 = vunpack.c.h.b16 %v709
  %v2988 = vunpack.c.l.b16 %v710
  %v2989 = vunpack.c.h.b16 %v710
  %v2990 = vunpack.c.l.b16 %v711
  %v2991 = vunpack.c.l.b16 %v712
  %v2992 = vunpack.c.h.b16 %v712
  %v2993 = vunpack.c.l.b16 %v713
  %v2994 = vunpack.c.h.b16 %v713
  %v2995 = vunpack.c.l.b16 %v714
  %v2996 = vunpack.c.h.b16 %v714
  %v2997 = vunpack.c.l.b16 %v715
  %v2998 = vunpack.c.h.b16 %v715
  %v2999 = vunpack.c.l.b16 %v716
  %v3000 = vunpack.c.h.b16 %v716
  %v3001 = vunpack.c.l.b16 %v717
  %v3002 = vunpack.c.h.b16 %v717
  %v3003 = vunpack.c.l.b16 %v718
  %v3004 = vunpack.c.h.b16 %v718
  %v3005 = vunpack.c.l.b16 %v719
  %v3006 = vunpack.c.l.b16 %v720
  %v3007 = vunpack.c.h.b16 %v720
  %v3008 = vunpack.c.l.b16 %v721
  %v3009 = vunpack.c.h.b16 %v721
  %v3010 = vunpack.c.l.b16 %v722
  %v3011 = vunpack.c.h.b16 %v722
  %v3012 = vunpack.c.l.b16 %v723
  %v3013 = vunpack.c.h.b16 %v723
  %v3014 = vunpack.c.l.b16 %v724
  %v3015 = vunpack.c.h.b16 %v724
  %v3016 = vunpack.c.l.b16 %v725
  %v3017 = vunpack.c.h.b16 %v725
  %v3018 = vunpack.c.l.b16 %v726
  %v3019 = vunpack.c.h.b16 %v726
  %v3020 = vunpack.c.l.b16 %v727
  %v3021 = vunpack.c.l.b16 %v728
  %v3022 = vunpack.c.h.b16 %v728
  %v3023 = vunpack.c.l.b16 %v729
  %v3024 = vunpack.c.h.b16 %v729
  %v3025 = vunpack.c.l.b16 %v730
  %v3026 = vunpack.c.h.b16 %v730
  %v3027 = vunpack.c.l.b16 %v731
  %v3028 = vunpack.c.h.b16 %v731
  %v3029 = vunpack.c.l.b16 %v732
  %v3030 = vunpack.c.h.b16 %v732
  %v3031 = vunpack.c.l.b16 %v733
  %v3032 = vunpack.c.h.b16 %v733
  %v3033 = vunpack.c.l.b16 %v734
  %v3034 = vunpack.c.h.b16 %v734
  %v3035 = vunpack.c.l.b16 %v735
  %v3036 = vunpack.c.l.b16 %v736
  %v3037 = vunpack.c.h.b16 %v736
  %v3038 = vunpack.c.l.b16 %v737
  %v3039 = vunpack.c.h.b16 %v737
  %v3040 = vunpack.c.l.b16 %v738
  %v3041 = vunpack.c.h.b16 %v738
  %v3042 = vunpack.c.l.b16 %v739
  %v3043 = vunpack.c.h.b16 %v739
  %v3044 = vunpack.c.l.b16 %v740
  %v3045 = vunpack.c.h.b16 %v740
  %v3046 = vunpack.c.l.b16 %v741
  %v3047 = vunpack.c.h.b16 %v741
  %v3048 = vunpack.c.l.b16 %v742
  %v3049 = vunpack.c.h.b16 %v742
  %v3050 = vunpack.c.l.b16 %v743
  %v3051 = vunpack.c.l.b16 %v744
  %v3052 = vunpack.c.h.b16 %v744
  %v3053 = vunpack.c.l.b16 %v745
  %v3054 = vunpack.c.h.b16 %v745
  %v3055 = vunpack.c.l.b16 %v746
  %v3056 = vunpack.c.h.b16 %v746
  %v3057 = vunpack.c.l.b16 %v747
  %v3058 = vunpack.c.h.b16 %v747
  %v3059 = vunpack.c.l.b16 %v748
  %v3060 = vunpack.c.h.b16 %v748
  %v3061 = vunpack.c.l.b16 %v749
  %v3062 = vunpack.c.h.b16 %v749
  %v3063 = vunpack.c.l.b16 %v750
  %v3064 = vunpack.c.h.b16 %v750
  %v3065 = vunpack.c.l.b16 %v751
  %v3066 = vunpack.c.l.b16 %v752
  %v3067 = vunpack.c.h.b16 %v752
  %v3068 = vunpack.c.l.b16 %v753
  %v3069 = vunpack.c.h.b16 %v753
  %v3070 = vunpack.c.l.b16 %v754
  %v3071 = vunpack.c.h.b16 %v754
  %v3072 = vunpack.c.l.b16 %v755
  %v3073 = vunpack.c.h.b16 %v755
  %v3074 = vunpack.c.l.b16 %v756
  %v3075 = vunpack.c.h.b16 %v756
  %v3076 = vunpack.c.l.b16 %v757
  %v3077 = vunpack.c.h.b16 %v757
  %v3078 = vunpack.c.l.b16 %v758
  %v3079 = vunpack.c.h.b16 %v758
  %v3080 = vunpack.c.l.b16 %v759
  %v3081 = vunpack.c.l.b16 %v760
  %v3082 = vunpack.c.h.b16 %v760
  %v3083 = vunpack.c.l.b16 %v761
  %v3084 = vunpack.c.h.b16 %v761
  %v3085 = vunpack.c.l.b16 %v762
  %v3086 = vunpack.c.h.b16 %v762
  %v3087 = vunpack.c.l.b16 %v763
  %v3088 = vunpack.c.h.b16 %v763
  %v3089 = vunpack.c.l.b16 %v764
  %v3090 = vunpack.c.h.b16 %v764
  %v3091 = vunpack.c.l.b16 %v765
  %v3092 = vunpack.c.h.b16 %v765
  %v3093 = vunpack.c.l.b16 %v766
  %v3094 = vunpack.c.h.b16 %v766
  %v3095 = vunpack.c.l.b16 %v767
  %v3096 = vunpack.c.l.b16 %v768
  %v3097 = vunpack.c.h.b16 %v768
  %v3098 = vunpack.c.l.b16 %v769
  %v3099 = vunpack.c.h.b16 %v769
  %v3100 = vunpack.c.l.b16 %v770
  %v3101 = vunpack.c.h.b16 %v770
  %v3102 = vunpack.c.l.b16 %v771
  %v3103 = vunpack.c.h.b16 %v771
  %v3104 = vunpack.c.l.b16 %v772
  %v3105 = vunpack.c.h.b16 %v772
  %v3106 = vunpack.c.l.b16 %v773
  %v3107 = vunpack.c.h.b16 %v773
  %v3108 = vunpack.c.l.b16 %v774
  %v3109 = vunpack.c.h.b16 %v774
  %v3110 = vunpack.c.l.b16 %v775
  %v3111 = vunpack.c.l.b16 %v776
  %v3112 = vunpack.c.h.b16 %v776
  %v3113 = vunpack.c.l.b16 %v777
  %v3114 = vunpack.c.h.b16 %v777
  %v3115 = vunpack.c.l.b16 %v778
  %v3116 = vunpack.c.h.b16 %v778
  %v3117 = vunpack.c.l.b16 %v779
  %v3118 = vunpack.c.h.b16 %v779
  %v3119 = vunpack.c.l.b16 %v780
  %v3120 = vunpack.c.h.b16 %v780
  %v3121 = vunpack.c.l.b16 %v781
  %v3122 = vunpack.c.h.b16 %v781
  %v3123 = vunpack.c.l.b16 %v782
  %v3124 = vunpack.c.h.b16 %v782
  %v3125 = vunpack.c.l.b16 %v783
  %v3126 = vpack.c.b16 %v1701, %v1686
  %v3127 = vpack.c.b16 %v1702, %v1687
  %v3128 = vpack.c.b16 %v1703, %v1688
  %v3129 = vpack.c.b16 %v1704, %v1689
  %v3130 = vpack.c.b16 %v1705, %v1690
  %v3131 = vpack.c.b16 %v1706, %v1691
  %v3132 = vpack.c.b16 %v1707, %v1692
  %v3133 = vpack.c.b16 %v1708, %v1693
  %v3134 = vpack.c.b16 %v1709, %v1694
  %v3135 = vpack.c.b16 %v1710, %v1695
  %v3136 = vpack.c.b16 %v1711, %v1696
  %v3137 = vpack.c.b16 %v1712, %v1697
  %v3138 = vpack.c.b16 %v1713, %v1698
  %v3139 = vpack.c.b16 %v1714, %v1699
  %v3140 = vpack.c.b16 %v1715, %v1700
  %v3141 = vpack.c.b16 %v1731, %v1716
  %v3142 = vpack.c.b16 %v1732, %v1717
  %v3143 = vpack.c.b16 %v1733, %v1718
  %v3144 = vpack.c.b16 %v1734, %v1719
  %v3145 = vpack.c.b16 %v1735, %v1720
  %v3146 = vpack.c.b16 %v1736, %v1721
  %v3147 = vpack.c.b16 %v1737, %v1722
  %v3148 = vpack.c.b16 %v1738, %v1723
  %v3149 = vpack.c.b16 %v1739, %v1724
  %v3150 = vpack.c.b16 %v1740, %v1725
  %v3151 = vpack.c.b16 %v1741, %v1726
  %v3152 = vpack.c.b16 %v1742, %v1727
  %v3153 = vpack.c.b16 %v1743, %v1728
  %v3154 = vpack.c.b16 %v1744, %v1729
  %v3155 = vpack.c.b16 %v1745, %v1730
  %v3156 = vpack.c.b16 %v1761, %v1746
  %v3157 = vpack.c.b16 %v1762, %v1747
  %v3158 = vpack.c.b16 %v1763, %v1748
  %v3159 = vpack.c.b16 %v1764, %v1749
  %v3160 = vpack.c.b16 %v1765, %v1750
  %v3161 = vpack.c.b16 %v1766, %v1751
  %v3162 = vpack.c.b16 %v1767, %v1752
  %v3163 = vpack.c.b16 %v1768, %v1753
  %v3164 = vpack.c.b16 %v1769, %v1754
  %v3165 = vpack.c.b16 %v1770, %v1755
  %v3166 = vpack.c.b16 %v1771, %v1756
  %v3167 = vpack.c.b16 %v1772, %v1757
  %v3168 = vpack.c.b16 %v1773, %v1758
  %v3169 = vpack.c.b16 %v1774, %v1759
  %v3170 = vpack.c.b16 %v1775, %v1760
  %v3171 = vpack.c.b16 %v1791, %v1776
  %v3172 = vpack.c.b16 %v1792, %v1777
  %v3173 = vpack.c.b16 %v1793, %v1778
  %v3174 = vpack.c.b16 %v1794, %v1779
  %v3175 = vpack.c.b16 %v1795, %v1780
  %v3176 = vpack.c.b16 %v1796, %v1781
  %v3177 = vpack.c.b16 %v1797, %v1782
  %v3178 = vpack.c.b16 %v1798, %v1783
  %v3179 = vpack.c.b16 %v1799, %v1784
  %v3180 = vpack.c.b16 %v1800, %v1785
  %v3181 = vpack.c.b16 %v1801, %v1786
  %v3182 = vpack.c.b16 %v1802, %v1787
  %v3183 = vpack.c.b16 %v1803, %v1788
  %v3184 = vpack.c.b16 %v1804, %v1789
  %v3185 = vpack.c.b16 %v1805, %v1790
  %v3186 = vpack.c.b16 %v1821, %v1806
  %v3187 = vpack.c.b16 %v1822, %v1807
  %v3188 = vpack.c.b16 %v1823, %v1808
  %v3189 = vpack.c.b16 %v1824, %v1809
  %v3190 = vpack.c.b16 %v1825, %v1810
  %v3191 = vpack.c.b16 %v1826, %v1811
  %v3192 = vpack.c.b16 %v1827, %v1812
  %v3193 = vpack.c.b16 %v1828, %v1813
  %v3194 = vpack.c.b16 %v1829, %v1814
  %v3195 = vpack.c.b16 %v1830, %v1815
  %v3196 = vpack.c.b16 %v1831, %v1816
  %v3197 = vpack.c.b16 %v1832, %v1817
  %v3198 = vpack.c.b16 %v1833, %v1818
  %v3199 = vpack.c.b16 %v1834, %v1819
  %v3200 = vpack.c.b16 %v1835, %v1820
  %v3201 = vpack.c.b16 %v1851, %v1836
  %v3202 = vpack.c.b16 %v1852, %v1837
  %v3203 = vpack.c.b16 %v1853, %v1838
  %v3204 = vpack.c.b16 %v1854, %v1839
  %v3205 = vpack.c.b16 %v1855, %v1840
  %v3206 = vpack.c.b16 %v1856, %v1841
  %v3207 = vpack.c.b16 %v1857, %v1842
  %v3208 = vpack.c.b16 %v1858, %v1843
  %v3209 = vpack.c.b16 %v1859, %v1844
  %v3210 = vpack.c.b16 %v1860, %v1845
  %v3211 = vpack.c.b16 %v1861, %v1846
  %v3212 = vpack.c.b16 %v1862, %v1847
  %v3213 = vpack.c.b16 %v1863, %v1848
  %v3214 = vpack.c.b16 %v1864, %v1849
  %v3215 = vpack.c.b16 %v1865, %v1850
  %v3216 = vpack.c.b16 %v1881, %v1866
  %v3217 = vpack.c.b16 %v1882, %v1867
  %v3218 = vpack.c.b16 %v1883, %v1868
  %v3219 = vpack.c.b16 %v1884, %v1869
  %v3220 = vpack.c.b16 %v1885, %v1870
  %v3221 = vpack.c.b16 %v1886, %v1871
  %v3222 = vpack.c.b16 %v1887, %v1872
  %v3223 = vpack.c.b16 %v1888, %v1873
  %v3224 = vpack.c.b16 %v1889, %v1874
  %v3225 = vpack.c.b16 %v1890, %v1875
  %v3226 = vpack.c.b16 %v1891, %v1876
  %v3227 = vpack.c.b16 %v1892, %v1877
  %v3228 = vpack.c.b16 %v1893, %v1878
  %v3229 = vpack.c.b16 %v1894, %v1879
  %v3230 = vpack.c.b16 %v1895, %v1880
  %v3231 = vpack.c.b16 %v1911, %v1896
  %v3232 = vpack.c.b16 %v1912, %v1897
  %v3233 = vpack.c.b16 %v1913, %v1898
  %v3234 = vpack.c.b16 %v1914, %v1899
  %v3235 = vpack.c.b16 %v1915, %v1900
  %v3236 = vpack.c.b16 %v1916, %v1901
  %v3237 = vpack.c.b16 %v1917, %v1902
  %v3238 = vpack.c.b16 %v1918, %v1903
  %v3239 = vpack.c.b16 %v1919, %v1904
  %v3240 = vpack.c.b16 %v1920, %v1905
  %v3241 = vpack.c.b16 %v1921, %v1906
  %v3242 = vpack.c.b16 %v1922, %v1907
  %v3243 = vpack.c.b16 %v1923, %v1908
  %v3244 = vpack.c.b16 %v1924, %v1909
  %v3245 = vpack.c.b16 %v1925, %v1910
  %v3246 = vpack.c.b16 %v1941, %v1926
  %v3247 = vpack.c.b16 %v1942, %v1927
  %v3248 = vpack.c.b16 %v1943, %v1928
  %v3249 = vpack.c.b16 %v1944, %v1929
  %v3250 = vpack.c.b16 %v1945, %v1930
  %v3251 = vpack.c.b16 %v1946, %v1931
  %v3252 = vpack.c.b16 %v1947, %v1932
  %v3253 = vpack.c.b16 %v1948, %v1933
  %v3254 = vpack.c.b16 %v1949, %v1934
  %v3255 = vpack.c.b16 %v1950, %v1935
  %v3256 = vpack.c.b16 %v1951, %v1936
  %v3257 = vpack.c.b16 %v1952, %v1937
  %v3258 = vpack.c.b16 %v1953, %v1938
  %v3259 = vpack.c.b16 %v1954, %v1939
  %v3260 = vpack.c.b16 %v1955, %v1940
  %v3261 = vpack.c.b16 %v1971, %v1956
  %v3262 = vpack.c.b16 %v1972, %v1957
  %v3263 = vpack.c.b16 %v1973, %v1958
  %v3264 = vpack.c.b16 %v1974, %v1959
  %v3265 = vpack.c.b16 %v1975, %v1960
  %v3266 = vpack.c.b16 %v1976, %v1961
  %v3267 = vpack.c.b16 %v1977, %v1962
  %v3268 = vpack.c.b16 %v1978, %v1963
  %v3269 = vpack.c.b16 %v1979, %v1964
  %v3270 = vpack.c.b16 %v1980, %v1965
  %v3271 = vpack.c.b16 %v1981, %v1966
  %v3272 = vpack.c.b16 %v1982, %v1967
  %v3273 = vpack.c.b16 %v1983, %v1968
  %v3274 = vpack.c.b16 %v1984, %v1969
  %v3275 = vpack.c.b16 %v1985, %v1970
  %v3276 = vpack.c.b16 %v2001, %v1986
  %v3277 = vpack.c.b16 %v2002, %v1987
  %v3278 = vpack.c.b16 %v2003, %v1988
  %v3279 = vpack.c.b16 %v2004, %v1989
  %v3280 = vpack.c.b16 %v2005, %v1990
  %v3281 = vpack.c.b16 %v2006, %v1991
  %v3282 = vpack.c.b16 %v2007, %v1992
  %v3283 = vpack.c.b16 %v2008, %v1993
  %v3284 = vpack.c.b16 %v2009, %v1994
  %v3285 = vpack.c.b16 %v2010, %v1995
  %v3286 = vpack.c.b16 %v2011, %v1996
  %v3287 = vpack.c.b16 %v2012, %v1997
  %v3288 = vpack.c.b16 %v2013, %v1998
  %v3289 = vpack.c.b16 %v2014, %v1999
  %v3290 = vpack.c.b16 %v2015, %v2000
  %v3291 = vpack.c.b16 %v2031, %v2016
  %v3292 = vpack.c.b16 %v2032, %v2017
  %v3293 = vpack.c.b16 %v2033, %v2018
  %v3294 = vpack.c.b16 %v2034, %v2019
  %v3295 = vpack.c.b16 %v2035, %v2020
  %v3296 = vpack.c.b16 %v2036, %v2021
  %v3297 = vpack.c.b16 %v2037, %v2022
  %v3298 = vpack.c.b16 %v2038, %v2023
  %v3299 = vpack.c.b16 %v2039, %v2024
  %v3300 = vpack.c.b16 %v2040, %v2025
  %v3301 = vpack.c.b16 %v2041, %v2026
  %v3302 = vpack.c.b16 %v2042, %v2027
  %v3303 = vpack.c.b16 %v2043, %v2028
  %v3304 = vpack.c.b16 %v2044, %v2029
  %v3305 = vpack.c.b16 %v2045, %v2030
  %v3306 = vpack.c.b16 %v2061, %v2046
  %v3307 = vpack.c.b16 %v2062, %v2047
  %v3308 = vpack.c.b16 %v2063, %v2048
  %v3309 = vpack.c.b16 %v2064, %v2049
  %v3310 = vpack.c.b16 %v2065, %v2050
  %v3311 = vpack.c.b16 %v2066, %v2051
  %v3312 = vpack.c.b16 %v2067, %v2052
  %v3313 = vpack.c.b16 %v2068, %v2053
  %v3314 = vpack.c.b16 %v2069, %v2054
  %v3315 = vpack.c.b16 %v2070, %v2055
  %v3316 = vpack.c.b16 %v2071, %v2056
  %v3317 = vpack.c.b16 %v2072, %v2057
  %v3318 = vpack.c.b16 %v2073, %v2058
  %v3319 = vpack.c.b16 %v2074, %v2059
  %v3320 = vpack.c.b16 %v2075, %v2060
  %v3321 = vpack.c.b16 %v2091, %v2076
  %v3322 = vpack.c.b16 %v2092, %v2077
  %v3323 = vpack.c.b16 %v2093, %v2078
  %v3324 = vpack.c.b16 %v2094, %v2079
  %v3325 = vpack.c.b16 %v2095, %v2080
  %v3326 = vpack.c.b16 %v2096, %v2081
  %v3327 = vpack.c.b16 %v2097, %v2082
  %v3328 = vpack.c.b16 %v2098, %v2083
  %v3329 = vpack.c.b16 %v2099, %v2084
  %v3330 = vpack.c.b16 %v2100, %v2085
  %v3331 = vpack.c.b16 %v2101, %v2086
  %v3332 = vpack.c.b16 %v2102, %v2087
  %v3333 = vpack.c.b16 %v2103, %v2088
  %v3334 = vpack.c.b16 %v2104, %v2089
  %v3335 = vpack.c.b16 %v2105, %v2090
  %v3336 = vpack.c.b16 %v2121, %v2106
  %v3337 = vpack.c.b16 %v2122, %v2107
  %v3338 = vpack.c.b16 %v2123, %v2108
  %v3339 = vpack.c.b16 %v2124, %v2109
  %v3340 = vpack.c.b16 %v2125, %v2110
  %v3341 = vpack.c.b16 %v2126, %v2111
  %v3342 = vpack.c.b16 %v2127, %v2112
  %v3343 = vpack.c.b16 %v2128, %v2113
  %v3344 = vpack.c.b16 %v2129, %v2114
  %v3345 = vpack.c.b16 %v2130, %v2115
  %v3346 = vpack.c.b16 %v2131, %v2116
  %v3347 = vpack.c.b16 %v2132, %v2117
  %v3348 = vpack.c.b16 %v2133, %v2118
  %v3349 = vpack.c.b16 %v2134, %v2119
  %v3350 = vpack.c.b16 %v2135, %v2120
  %v3351 = vpack.c.b16 %v2151, %v2136
  %v3352 = vpack.c.b16 %v2152, %v2137
  %v3353 = vpack.c.b16 %v2153, %v2138
  %v3354 = vpack.c.b16 %v2154, %v2139
  %v3355 = vpack.c.b16 %v2155, %v2140
  %v3356 = vpack.c.b16 %v2156, %v2141
  %v3357 = vpack.c.b16 %v2157, %v2142
  %v3358 = vpack.c.b16 %v2158, %v2143
  %v3359 = vpack.c.b16 %v2159, %v2144
  %v3360 = vpack.c.b16 %v2160, %v2145
  %v3361 = vpack.c.b16 %v2161, %v2146
  %v3362 = vpack.c.b16 %v2162, %v2147
  %v3363 = vpack.c.b16 %v2163, %v2148
  %v3364 = vpack.c.b16 %v2164, %v2149
  %v3365 = vpack.c.b16 %v2165, %v2150
  %v3366 = vpack.c.b16 %v2181, %v2166
  %v3367 = vpack.c.b16 %v2182, %v2167
  %v3368 = vpack.c.b16 %v2183, %v2168
  %v3369 = vpack.c.b16 %v2184, %v2169
  %v3370 = vpack.c.b16 %v2185, %v2170
  %v3371 = vpack.c.b16 %v2186, %v2171
  %v3372 = vpack.c.b16 %v2187, %v2172
  %v3373 = vpack.c.b16 %v2188, %v2173
  %v3374 = vpack.c.b16 %v2189, %v2174
  %v3375 = vpack.c.b16 %v2190, %v2175
  %v3376 = vpack.c.b16 %v2191, %v2176
  %v3377 = vpack.c.b16 %v2192, %v2177
  %v3378 = vpack.c.b16 %v2193, %v2178
  %v3379 = vpack.c.b16 %v2194, %v2179
  %v3380 = vpack.c.b16 %v2195, %v2180
  %v3381 = vpack.c.b16 %v2211, %v2196
  %v3382 = vpack.c.b16 %v2212, %v2197
  %v3383 = vpack.c.b16 %v2213, %v2198
  %v3384 = vpack.c.b16 %v2214, %v2199
  %v3385 = vpack.c.b16 %v2215, %v2200
  %v3386 = vpack.c.b16 %v2216, %v2201
  %v3387 = vpack.c.b16 %v2217, %v2202
  %v3388 = vpack.c.b16 %v2218, %v2203
  %v3389 = vpack.c.b16 %v2219, %v2204
  %v3390 = vpack.c.b16 %v2220, %v2205
  %v3391 = vpack.c.b16 %v2221, %v2206
  %v3392 = vpack.c.b16 %v2222, %v2207
  %v3393 = vpack.c.b16 %v2223, %v2208
  %v3394 = vpack.c.b16 %v2224, %v2209
  %v3395 = vpack.c.b16 %v2225, %v2210
  %v3396 = vpack.c.b16 %v2241, %v2226
  %v3397 = vpack.c.b16 %v2242, %v2227
  %v3398 = vpack.c.b16 %v2243, %v2228
  %v3399 = vpack.c.b16 %v2244, %v2229
  %v3400 = vpack.c.b16 %v2245, %v2230
  %v3401 = vpack.c.b16 %v2246, %v2231
  %v3402 = vpack.c.b16 %v2247, %v2232
  %v3403 = vpack.c.b16 %v2248, %v2233
  %v3404 = vpack.c.b16 %v2249, %v2234
  %v3405 = vpack.c.b16 %v2250, %v2235
  %v3406 = vpack.c.b16 %v2251, %v2236
  %v3407 = vpack.c.b16 %v2252, %v2237
  %v3408 = vpack.c.b16 %v2253, %v2238
  %v3409 = vpack.c.b16 %v2254, %v2239
  %v3410 = vpack.c.b16 %v2255, %v2240
  %v3411 = vpack.c.b16 %v2271, %v2256
  %v3412 = vpack.c.b16 %v2272, %v2257
  %v3413 = vpack.c.b16 %v2273, %v2258
  %v3414 = vpack.c.b16 %v2274, %v2259
  %v3415 = vpack.c.b16 %v2275, %v2260
  %v3416 = vpack.c.b16 %v2276, %v2261
  %v3417 = vpack.c.b16 %v2277, %v2262
  %v3418 = vpack.c.b16 %v2278, %v2263
  %v3419 = vpack.c.b16 %v2279, %v2264
  %v3420 = vpack.c.b16 %v2280, %v2265
  %v3421 = vpack.c.b16 %v2281, %v2266
  %v3422 = vpack.c.b16 %v2282, %v2267
  %v3423 = vpack.c.b16 %v2283, %v2268
  %v3424 = vpack.c.b16 %v2284, %v2269
  %v3425 = vpack.c.b16 %v2285, %v2270
  %v3426 = vpack.c.b16 %v2301, %v2286
  %v3427 = vpack.c.b16 %v2302, %v2287
  %v3428 = vpack.c.b16 %v2303, %v2288
  %v3429 = vpack.c.b16 %v2304, %v2289
  %v3430 = vpack.c.b16 %v2305, %v2290
  %v3431 = vpack.c.b16 %v2306, %v2291
  %v3432 = vpack.c.b16 %v2307, %v2292
  %v3433 = vpack.c.b16 %v2308, %v2293
  %v3434 = vpack.c.b16 %v2309, %v2294
  %v3435 = vpack.c.b16 %v2310, %v2295
  %v3436 = vpack.c.b16 %v2311, %v2296
  %v3437 = vpack.c.b16 %v2312, %v2297
  %v3438 = vpack.c.b16 %v2313, %v2298
  %v3439 = vpack.c.b16 %v2314, %v2299
  %v3440 = vpack.c.b16 %v2315, %v2300
  %v3441 = vpack.c.b16 %v2331, %v2316
  %v3442 = vpack.c.b16 %v2332, %v2317
  %v3443 = vpack.c.b16 %v2333, %v2318
  %v3444 = vpack.c.b16 %v2334, %v2319
  %v3445 = vpack.c.b16 %v2335, %v2320
  %v3446 = vpack.c.b16 %v2336, %v2321
  %v3447 = vpack.c.b16 %v2337, %v2322
  %v3448 = vpack.c.b16 %v2338, %v2323
  %v3449 = vpack.c.b16 %v2339, %v2324
  %v3450 = vpack.c.b16 %v2340, %v2325
  %v3451 = vpack.c.b16 %v2341, %v2326
  %v3452 = vpack.c.b16 %v2342, %v2327
  %v3453 = vpack.c.b16 %v2343, %v2328
  %v3454 = vpack.c.b16 %v2344, %v2329
  %v3455 = vpack.c.b16 %v2345, %v2330
  %v3456 = vpack.c.b16 %v2361, %v2346
  %v3457 = vpack.c.b16 %v2362, %v2347
  %v3458 = vpack.c.b16 %v2363, %v2348
  %v3459 = vpack.c.b16 %v2364, %v2349
  %v3460 = vpack.c.b16 %v2365, %v2350
  %v3461 = vpack.c.b16 %v2366, %v2351
  %v3462 = vpack.c.b16 %v2367, %v2352
  %v3463 = vpack.c.b16 %v2368, %v2353
  %v3464 = vpack.c.b16 %v2369, %v2354
  %v3465 = vpack.c.b16 %v2370, %v2355
  %v3466 = vpack.c.b16 %v2371, %v2356
  %v3467 = vpack.c.b16 %v2372, %v2357
  %v3468 = vpack.c.b16 %v2373, %v2358
  %v3469 = vpack.c.b16 %v2374, %v2359
  %v3470 = vpack.c.b16 %v2375, %v2360
  %v3471 = vpack.c.b16 %v2391, %v2376
  %v3472 = vpack.c.b16 %v2392, %v2377
  %v3473 = vpack.c.b16 %v2393, %v2378
  %v3474 = vpack.c.b16 %v2394, %v2379
  %v3475 = vpack.c.b16 %v2395, %v2380
  %v3476 = vpack.c.b16 %v2396, %v2381
  %v3477 = vpack.c.b16 %v2397, %v2382
  %v3478 = vpack.c.b16 %v2398, %v2383
  %v3479 = vpack.c.b16 %v2399, %v2384
  %v3480 = vpack.c.b16 %v2400, %v2385
  %v3481 = vpack.c.b16 %v2401, %v2386
  %v3482 = vpack.c.b16 %v2402, %v2387
  %v3483 = vpack.c.b16 %v2403, %v2388
  %v3484 = vpack.c.b16 %v2404, %v2389
  %v3485 = vpack.c.b16 %v2405, %v2390
  %v3486 = vpack.c.b16 %v2421, %v2406
  %v3487 = vpack.c.b16 %v2422, %v2407
  %v3488 = vpack.c.b16 %v2423, %v2408
  %v3489 = vpack.c.b16 %v2424, %v2409
  %v3490 = vpack.c.b16 %v2425, %v2410
  %v3491 = vpack.c.b16 %v2426, %v2411
  %v3492 = vpack.c.b16 %v2427, %v2412
  %v3493 = vpack.c.b16 %v2428, %v2413
  %v3494 = vpack.c.b16 %v2429, %v2414
  %v3495 = vpack.c.b16 %v2430, %v2415
  %v3496 = vpack.c.b16 %v2431, %v2416
  %v3497 = vpack.c.b16 %v2432, %v2417
  %v3498 = vpack.c.b16 %v2433, %v2418
  %v3499 = vpack.c.b16 %v2434, %v2419
  %v3500 = vpack.c.b16 %v2435, %v2420
  %v3501 = vpack.c.b16 %v2451, %v2436
  %v3502 = vpack.c.b16 %v2452, %v2437
  %v3503 = vpack.c.b16 %v2453, %v2438
  %v3504 = vpack.c.b16 %v2454, %v2439
  %v3505 = vpack.c.b16 %v2455, %v2440
  %v3506 = vpack.c.b16 %v2456, %v2441
  %v3507 = vpack.c.b16 %v2457, %v2442
  %v3508 = vpack.c.b16 %v2458, %v2443
  %v3509 = vpack.c.b16 %v2459, %v2444
  %v3510 = vpack.c.b16 %v2460, %v2445
  %v3511 = vpack.c.b16 %v2461, %v2446
  %v3512 = vpack.c.b16 %v2462, %v2447
  %v3513 = vpack.c.b16 %v2463, %v2448
  %v3514 = vpack.c.b16 %v2464, %v2449
  %v3515 = vpack.c.b16 %v2465, %v2450
  %v3516 = vpack.c.b16 %v2481, %v2466
  %v3517 = vpack.c.b16 %v2482, %v2467
  %v3518 = vpack.c.b16 %v2483, %v2468
  %v3519 = vpack.c.b16 %v2484, %v2469
  %v3520 = vpack.c.b16 %v2485, %v2470
  %v3521 = vpack.c.b16 %v2486, %v2471
  %v3522 = vpack.c.b16 %v2487, %v2472
  %v3523 = vpack.c.b16 %v2488, %v2473
  %v3524 = vpack.c.b16 %v2489, %v2474
  %v3525 = vpack.c.b16 %v2490, %v2475
  %v3526 = vpack.c.b16 %v2491, %v2476
  %v3527 = vpack.c.b16 %v2492, %v2477
  %v3528 = vpack.c.b16 %v2493, %v2478
  %v3529 = vpack.c.b16 %v2494, %v2479
  %v3530 = vpack.c.b16 %v2495, %v2480
  %v3531 = vpack.c.b16 %v2511, %v2496
  %v3532 = vpack.c.b16 %v2512, %v2497
  %v3533 = vpack.c.b16 %v2513, %v2498
  %v3534 = vpack.c.b16 %v2514, %v2499
  %v3535 = vpack.c.b16 %v2515, %v2500
  %v3536 = vpack.c.b16 %v2516, %v2501
  %v3537 = vpack.c.b16 %v2517, %v2502
  %v3538 = vpack.c.b16 %v2518, %v2503
  %v3539 = vpack.c.b16 %v2519, %v2504
  %v3540 = vpack.c.b16 %v2520, %v2505
  %v3541 = vpack.c.b16 %v2521, %v2506
  %v3542 = vpack.c.b16 %v2522, %v2507
  %v3543 = vpack.c.b16 %v2523, %v2508
  %v3544 = vpack.c.b16 %v2524, %v2509
  %v3545 = vpack.c.b16 %v2525, %v2510
  %v3546 = vpack.c.b16 %v2541, %v2526
  %v3547 = vpack.c.b16 %v2542, %v2527
  %v3548 = vpack.c.b16 %v2543, %v2528
  %v3549 = vpack.c.b16 %v2544, %v2529
  %v3550 = vpack.c.b16 %v2545, %v2530
  %v3551 = vpack.c.b16 %v2546, %v2531
  %v3552 = vpack.c.b16 %v2547, %v2532
  %v3553 = vpack.c.b16 %v2548, %v2533
  %v3554 = vpack.c.b16 %v2549, %v2534
  %v3555 = vpack.c.b16 %v2550, %v2535
  %v3556 = vpack.c.b16 %v2551, %v2536
  %v3557 = vpack.c.b16 %v2552, %v2537
  %v3558 = vpack.c.b16 %v2553, %v2538
  %v3559 = vpack.c.b16 %v2554, %v2539
  %v3560 = vpack.c.b16 %v2555, %v2540
  %v3561 = vpack.c.b16 %v2571, %v2556
  %v3562 = vpack.c.b16 %v2572, %v2557
  %v3563 = vpack.c.b16 %v2573, %v2558
  %v3564 = vpack.c.b16 %v2574, %v2559
  %v3565 = vpack.c.b16 %v2575, %v2560
  %v3566 = vpack.c.b16 %v2576, %v2561
  %v3567 = vpack.c.b16 %v2577, %v2562
  %v3568 = vpack.c.b16 %v2578, %v2563
  %v3569 = vpack.c.b16 %v2579, %v2564
  %v3570 = vpack.c.b16 %v2580, %v2565
  %v3571 = vpack.c.b16 %v2581, %v2566
  %v3572 = vpack.c.b16 %v2582, %v2567
  %v3573 = vpack.c.b16 %v2583, %v2568
  %v3574 = vpack.c.b16 %v2584, %v2569
  %v3575 = vpack.c.b16 %v2585, %v2570
  %v3576 = vpack.c.b16 %v2601, %v2586
  %v3577 = vpack.c.b16 %v2602, %v2587
  %v3578 = vpack.c.b16 %v2603, %v2588
  %v3579 = vpack.c.b16 %v2604, %v2589
  %v3580 = vpack.c.b16 %v2605, %v2590
  %v3581 = vpack.c.b16 %v2606, %v2591
  %v3582 = vpack.c.b16 %v2607, %v2592
  %v3583 = vpack.c.b16 %v2608, %v2593
  %v3584 = vpack.c.b16 %v2609, %v2594
  %v3585 = vpack.c.b16 %v2610, %v2595
  %v3586 = vpack.c.b16 %v2611, %v2596
  %v3587 = vpack.c.b16 %v2612, %v2597
  %v3588 = vpack.c.b16 %v2613, %v2598
  %v3589 = vpack.c.b16 %v2614, %v2599
  %v3590 = vpack.c.b16 %v2615, %v2600
  %v3591 = vpack.c.b16 %v2631, %v2616
  %v3592 = vpack.c.b16 %v2632, %v2617
  %v3593 = vpack.c.b16 %v2633, %v2618
  %v3594 = vpack.c.b16 %v2634, %v2619
  %v3595 = vpack.c.b16 %v2635, %v2620
  %v3596 = vpack.c.b16 %v2636, %v2621
  %v3597 = vpack.c.b16 %v2637, %v2622
  %v3598 = vpack.c.b16 %v2638, %v2623
  %v3599 = vpack.c.b16 %v2639, %v2624
  %v3600 = vpack.c.b16 %v2640, %v2625
  %v3601 = vpack.c.b16 %v2641, %v2626
  %v3602 = vpack.c.b16 %v2642, %v2627
  %v3603 = vpack.c.b16 %v2643, %v2628
  %v3604 = vpack.c.b16 %v2644, %v2629
  %v3605 = vpack.c.b16 %v2645, %v2630
  %v3606 = vpack.c.b16 %v2661, %v2646
  %v3607 = vpack.c.b16 %v2662, %v2647
  %v3608 = vpack.c.b16 %v2663, %v2648
  %v3609 = vpack.c.b16 %v2664, %v2649
  %v3610 = vpack.c.b16 %v2665, %v2650
  %v3611 = vpack.c.b16 %v2666, %v2651
  %v3612 = vpack.c.b16 %v2667, %v2652
  %v3613 = vpack.c.b16 %v2668, %v2653
  %v3614 = vpack.c.b16 %v2669, %v2654
  %v3615 = vpack.c.b16 %v2670, %v2655
  %v3616 = vpack.c.b16 %v2671, %v2656
  %v3617 = vpack.c.b16 %v2672, %v2657
  %v3618 = vpack.c.b16 %v2673, %v2658
  %v3619 = vpack.c.b16 %v2674, %v2659
  %v3620 = vpack.c.b16 %v2675, %v2660
  %v3621 = vpack.c.b16 %v2691, %v2676
  %v3622 = vpack.c.b16 %v2692, %v2677
  %v3623 = vpack.c.b16 %v2693, %v2678
  %v3624 = vpack.c.b16 %v2694, %v2679
  %v3625 = vpack.c.b16 %v2695, %v2680
  %v3626 = vpack.c.b16 %v2696, %v2681
  %v3627 = vpack.c.b16 %v2697, %v2682
  %v3628 = vpack.c.b16 %v2698, %v2683
  %v3629 = vpack.c.b16 %v2699, %v2684
  %v3630 = vpack.c.b16 %v2700, %v2685
  %v3631 = vpack.c.b16 %v2701, %v2686
  %v3632 = vpack.c.b16 %v2702, %v2687
  %v3633 = vpack.c.b16 %v2703, %v2688
  %v3634 = vpack.c.b16 %v2704, %v2689
  %v3635 = vpack.c.b16 %v2705, %v2690
  %v3636 = vpack.c.b16 %v2721, %v2706
  %v3637 = vpack.c.b16 %v2722, %v2707
  %v3638 = vpack.c.b16 %v2723, %v2708
  %v3639 = vpack.c.b16 %v2724, %v2709
  %v3640 = vpack.c.b16 %v2725, %v2710
  %v3641 = vpack.c.b16 %v2726, %v2711
  %v3642 = vpack.c.b16 %v2727, %v2712
  %v3643 = vpack.c.b16 %v2728, %v2713
  %v3644 = vpack.c.b16 %v2729, %v2714
  %v3645 = vpack.c.b16 %v2730, %v2715
  %v3646 = vpack.c.b16 %v2731, %v2716
  %v3647 = vpack.c.b16 %v2732, %v2717
  %v3648 = vpack.c.b16 %v2733, %v2718
  %v3649 = vpack.c.b16 %v2734, %v2719
  %v3650 = vpack.c.b16 %v2735, %v2720
  %v3651 = vpack.c.b16 %v2751, %v2736
  %v3652 = vpack.c.b16 %v2752, %v2737
  %v3653 = vpack.c.b16 %v2753, %v2738
  %v3654 = vpack.c.b16 %v2754, %v2739
  %v3655 = vpack.c.b16 %v2755, %v2740
  %v3656 = vpack.c.b16 %v2756, %v2741
  %v3657 = vpack.c.b16 %v2757, %v2742
  %v3658 = vpack.c.b16 %v2758, %v2743
  %v3659 = vpack.c.b16 %v2759, %v2744
  %v3660 = vpack.c.b16 %v2760, %v2745
  %v3661 = vpack.c.b16 %v2761, %v2746
  %v3662 = vpack.c.b16 %v2762, %v2747
  %v3663 = vpack.c.b16 %v2763, %v2748
  %v3664 = vpack.c.b16 %v2764, %v2749
  %v3665 = vpack.c.b16 %v2765, %v2750
  %v3666 = vpack.c.b16 %v2781, %v2766
  %v3667 = vpack.c.b16 %v2782, %v2767
  %v3668 = vpack.c.b16 %v2783, %v2768
  %v3669 = vpack.c.b16 %v2784, %v2769
  %v3670 = vpack.c.b16 %v2785, %v2770
  %v3671 = vpack.c.b16 %v2786, %v2771
  %v3672 = vpack.c.b16 %v2787, %v2772
  %v3673 = vpack.c.b16 %v2788, %v2773
  %v3674 = vpack.c.b16 %v2789, %v2774
  %v3675 = vpack.c.b16 %v2790, %v2775
  %v3676 = vpack.c.b16 %v2791, %v2776
  %v3677 = vpack.c.b16 %v2792, %v2777
  %v3678 = vpack.c.b16 %v2793, %v2778
  %v3679 = vpack.c.b16 %v2794, %v2779
  %v3680 = vpack.c.b16 %v2795, %v2780
  %v3681 = vpack.c.b16 %v2811, %v2796
  %v3682 = vpack.c.b16 %v2812, %v2797
  %v3683 = vpack.c.b16 %v2813, %v2798
  %v3684 = vpack.c.b16 %v2814, %v2799
  %v3685 = vpack.c.b16 %v2815, %v2800
  %v3686 = vpack.c.b16 %v2816, %v2801
  %v3687 = vpack.c.b16 %v2817, %v2802
  %v3688 = vpack.c.b16 %v2818, %v2803
  %v3689 = vpack.c.b16 %v2819, %v2804
  %v3690 = vpack.c.b16 %v2820, %v2805
  %v3691 = vpack.c.b16 %v2821, %v2806
  %v3692 = vpack.c.b16 %v2822, %v2807
  %v3693 = vpack.c.b16 %v2823, %v2808
  %v3694 = vpack.c.b16 %v2824, %v2809
  %v3695 = vpack.c.b16 %v2825, %v2810
  %v3696 = vpack.c.b16 %v2841, %v2826
  %v3697 = vpack.c.b16 %v2842, %v2827
  %v3698 = vpack.c.b16 %v2843, %v2828
  %v3699 = vpack.c.b16 %v2844, %v2829
  %v3700 = vpack.c.b16 %v2845, %v2830
  %v3701 = vpack.c.b16 %v2846, %v2831
  %v3702 = vpack.c.b16 %v2847, %v2832
  %v3703 = vpack.c.b16 %v2848, %v2833
  %v3704 = vpack.c.b16 %v2849, %v2834
  %v3705 = vpack.c.b16 %v2850, %v2835
  %v3706 = vpack.c.b16 %v2851, %v2836
  %v3707 = vpack.c.b16 %v2852, %v2837
  %v3708 = vpack.c.b16 %v2853, %v2838
  %v3709 = vpack.c.b16 %v2854, %v2839
  %v3710 = vpack.c.b16 %v2855, %v2840
  %v3711 = vpack.c.b16 %v2871, %v2856
  %v3712 = vpack.c.b16 %v2872, %v2857
  %v3713 = vpack.c.b16 %v2873, %v2858
  %v3714 = vpack.c.b16 %v2874, %v2859
  %v3715 = vpack.c.b16 %v2875, %v2860
  %v3716 = vpack.c.b16 %v2876, %v2861
  %v3717 = vpack.c.b16 %v2877, %v2862
  %v3718 = vpack.c.b16 %v2878, %v2863
  %v3719 = vpack.c.b16 %v2879, %v2864
  %v3720 = vpack.c.b16 %v2880, %v2865
  %v3721 = vpack.c.b16 %v2881, %v2866
  %v3722 = vpack.c.b16 %v2882, %v2867
  %v3723 = vpack.c.b16 %v2883, %v2868
  %v3724 = vpack.c.b16 %v2884, %v2869
  %v3725 = vpack.c.b16 %v2885, %v2870
  %v3726 = vpack.c.b16 %v2901, %v2886
  %v3727 = vpack.c.b16 %v2902, %v2887
  %v3728 = vpack.c.b16 %v2903, %v2888
  %v3729 = vpack.c.b16 %v2904, %v2889
  %v3730 = vpack.c.b16 %v2905, %v2890
  %v3731 = vpack.c.b16 %v2906, %v2891
  %v3732 = vpack.c.b16 %v2907, %v2892
  %v3733 = vpack.c.b16 %v2908, %v2893
  %v3734 = vpack.c.b16 %v2909, %v2894
  %v3735 = vpack.c.b16 %v2910, %v2895
  %v3736 = vpack.c.b16 %v2911, %v2896
  %v3737 = vpack.c.b16 %v2912, %v2897
  %v3738 = vpack.c.b16 %v2913, %v2898
  %v3739 = vpack.c.b16 %v2914, %v2899
  %v3740 = vpack.c.b16 %v2915, %v2900
  %v3741 = vpack.c.b16 %v2931, %v2916
  %v3742 = vpack.c.b16 %v2932, %v2917
  %v3743 = vpack.c.b16 %v2933, %v2918
  %v3744 = vpack.c.b16 %v2934, %v2919
  %v3745 = vpack.c.b16 %v2935, %v2920
  %v3746 = vpack.c.b16 %v2936, %v2921
  %v3747 = vpack.c.b16 %v2937, %v2922
  %v3748 = vpack.c.b16 %v2938, %v2923
  %v3749 = vpack.c.b16 %v2939, %v2924
  %v3750 = vpack.c.b16 %v2940, %v2925
  %v3751 = vpack.c.b16 %v2941, %v2926
  %v3752 = vpack.c.b16 %v2942, %v2927
  %v3753 = vpack.c.b16 %v2943, %v2928
  %v3754 = vpack.c.b16 %v2944, %v2929
  %v3755 = vpack.c.b16 %v2945, %v2930
  %v3756 = vpack.c.b16 %v2961, %v2946
  %v3757 = vpack.c.b16 %v2962, %v2947
  %v3758 = vpack.c.b16 %v2963, %v2948
  %v3759 = vpack.c.b16 %v2964, %v2949
  %v3760 = vpack.c.b16 %v2965, %v2950
  %v3761 = vpack.c.b16 %v2966, %v2951
  %v3762 = vpack.c.b16 %v2967, %v2952
  %v3763 = vpack.c.b16 %v2968, %v2953
  %v3764 = vpack.c.b16 %v2969, %v2954
  %v3765 = vpack.c.b16 %v2970, %v2955
  %v3766 = vpack.c.b16 %v2971, %v2956
  %v3767 = vpack.c.b16 %v2972, %v2957
  %v3768 = vpack.c.b16 %v2973, %v2958
  %v3769 = vpack.c.b16 %v2974, %v2959
  %v3770 = vpack.c.b16 %v2975, %v2960
  %v3771 = vpack.c.b16 %v2991, %v2976
  %v3772 = vpack.c.b16 %v2992, %v2977
  %v3773 = vpack.c.b16 %v2993, %v2978
  %v3774 = vpack.c.b16 %v2994, %v2979
  %v3775 = vpack.c.b16 %v2995, %v2980
  %v3776 = vpack.c.b16 %v2996, %v2981
  %v3777 = vpack.c.b16 %v2997, %v2982
  %v3778 = vpack.c.b16 %v2998, %v2983
  %v3779 = vpack.c.b16 %v2999, %v2984
  %v3780 = vpack.c.b16 %v3000, %v2985
  %v3781 = vpack.c.b16 %v3001, %v2986
  %v3782 = vpack.c.b16 %v3002, %v2987
  %v3783 = vpack.c.b16 %v3003, %v2988
  %v3784 = vpack.c.b16 %v3004, %v2989
  %v3785 = vpack.c.b16 %v3005, %v2990
  %v3786 = vpack.c.b16 %v3021, %v3006
  %v3787 = vpack.c.b16 %v3022, %v3007
  %v3788 = vpack.c.b16 %v3023, %v3008
  %v3789 = vpack.c.b16 %v3024, %v3009
  %v3790 = vpack.c.b16 %v3025, %v3010
  %v3791 = vpack.c.b16 %v3026, %v3011
  %v3792 = vpack.c.b16 %v3027, %v3012
  %v3793 = vpack.c.b16 %v3028, %v3013
  %v3794 = vpack.c.b16 %v3029, %v3014
  %v3795 = vpack.c.b16 %v3030, %v3015
  %v3796 = vpack.c.b16 %v3031, %v3016
  %v3797 = vpack.c.b16 %v3032, %v3017
  %v3798 = vpack.c.b16 %v3033, %v3018
  %v3799 = vpack.c.b16 %v3034, %v3019
  %v3800 = vpack.c.b16 %v3035, %v3020
  %v3801 = vpack.c.b16 %v3051, %v3036
  %v3802 = vpack.c.b16 %v3052, %v3037
  %v3803 = vpack.c.b16 %v3053, %v3038
  %v3804 = vpack.c.b16 %v3054, %v3039
  %v3805 = vpack.c.b16 %v3055, %v3040
  %v3806 = vpack.c.b16 %v3056, %v3041
  %v3807 = vpack.c.b16 %v3057, %v3042
  %v3808 = vpack.c.b16 %v3058, %v3043
  %v3809 = vpack.c.b16 %v3059, %v3044
  %v3810 = vpack.c.b16 %v3060, %v3045
  %v3811 = vpack.c.b16 %v3061, %v3046
  %v3812 = vpack.c.b16 %v3062, %v3047
  %v3813 = vpack.c.b16 %v3063, %v3048
  %v3814 = vpack.c.b16 %v3064, %v3049
  %v3815 = vpack.c.b16 %v3065, %v3050
  %v3816 = vpack.c.b16 %v3081, %v3066
  %v3817 = vpack.c.b16 %v3082, %v3067
  %v3818 = vpack.c.b16 %v3083, %v3068
  %v3819 = vpack.c.b16 %v3084, %v3069
  %v3820 = vpack.c.b16 %v3085, %v3070
  %v3821 = vpack.c.b16 %v3086, %v3071
  %v3822 = vpack.c.b16 %v3087, %v3072
  %v3823 = vpack.c.b16 %v3088, %v3073
  %v3824 = vpack.c.b16 %v3089, %v3074
  %v3825 = vpack.c.b16 %v3090, %v3075
  %v3826 = vpack.c.b16 %v3091, %v3076
  %v3827 = vpack.c.b16 %v3092, %v3077
  %v3828 = vpack.c.b16 %v3093, %v3078
  %v3829 = vpack.c.b16 %v3094, %v3079
  %v3830 = vpack.c.b16 %v3095, %v3080
  %v3831 = vpack.c.b16 %v3111, %v3096
  %v3832 = vpack.c.b16 %v3112, %v3097
  %v3833 = vpack.c.b16 %v3113, %v3098
  %v3834 = vpack.c.b16 %v3114, %v3099
  %v3835 = vpack.c.b16 %v3115, %v3100
  %v3836 = vpack.c.b16 %v3116, %v3101
  %v3837 = vpack.c.b16 %v3117, %v3102
  %v3838 = vpack.c.b16 %v3118, %v3103
  %v3839 = vpack.c.b16 %v3119, %v3104
  %v3840 = vpack.c.b16 %v3120, %v3105
  %v3841 = vpack.c.b16 %v3121, %v3106
  %v3842 = vpack.c.b16 %v3122, %v3107
  %v3843 = vpack.c.b16 %v3123, %v3108
  %v3844 = vpack.c.b16 %v3124, %v3109
  %v3845 = vpack.c.b16 %v3125, %v3110
  %4566 = vmatprep.subr.bf16.mxu0 %v3127
  %4567 = vmatpush1.bf16.msra.mxu0 %v3126
  %4568 = vmatprep.subr.bf16.mxu0 %v3142
  %4569 = vmatpush1.bf16.msra.mxu0 %v3141
  %4570 = vmatprep.subr.bf16.mxu0 %v3157
  %4571 = vmatpush1.bf16.msra.mxu0 %v3156
  %4572 = vmatprep.subr.bf16.mxu0 %v3172
  %4573 = vmatpush1.bf16.msra.mxu0 %v3171
  %4574 = vmatprep.subr.bf16.mxu0 %v3187
  %4575 = vmatpush1.bf16.msra.mxu0 %v3186
  %4576 = vmatprep.subr.bf16.mxu0 %v3202
  %4577 = vmatpush1.bf16.msra.mxu0 %v3201
  %4578 = vmatprep.subr.bf16.mxu0 %v3217
  %4579 = vmatpush1.bf16.msra.mxu0 %v3216
  %4580 = vmatprep.subr.bf16.mxu0 %v3232
  %4581 = vmatpush1.bf16.msra.mxu0 %v3231
  %4582 = vmatprep.subr.bf16.mxu0 %v3247
  %4583 = vmatpush1.bf16.msra.mxu0 %v3246
  %4584 = vmatprep.subr.bf16.mxu0 %v3262
  %4585 = vmatpush1.bf16.msra.mxu0 %v3261
  %4586 = vmatprep.subr.bf16.mxu0 %v3277
  %4587 = vmatpush1.bf16.msra.mxu0 %v3276
  %4588 = vmatprep.subr.bf16.mxu0 %v3292
  %4589 = vmatpush1.bf16.msra.mxu0 %v3291
  %4590 = vmatprep.subr.bf16.mxu0 %v3307
  %4591 = vmatpush1.bf16.msra.mxu0 %v3306
  %4592 = vmatprep.subr.bf16.mxu0 %v3322
  %4593 = vmatpush1.bf16.msra.mxu0 %v3321
  %4594 = vmatprep.subr.bf16.mxu0 %v3337
  %4595 = vmatpush1.bf16.msra.mxu0 %v3336
  %4596 = vmatprep.subr.bf16.mxu0 %v3352
  %4597 = vmatpush1.bf16.msra.mxu0 %v3351
  %4598 = vmatprep.mubr.bf16.mxu0 %v902
  %4599 = vmatmul.mubr.bf16.gmra.mrb[0].mxu0 %v888
  %v4600 = vpop.f32.mrb[0].mxu0
  %v4601 = vadd.f32 %v792, %v4600
  %v4602 = vpop.f32.mrb[0].mxu0
  %v4603 = vadd.f32 %v796, %v4602
  %v4604 = vpop.f32.mrb[0].mxu0
  %v4605 = vpop.f32.mrb[0].mxu0
  %4606 = vdwg.mxu0
  %4607 = vmatprep.subr.bf16.mxu0 %v3367
  %4608 = vmatpush1.bf16.msra.mxu0 %v3366
  %4609 = vmatprep.subr.bf16.mxu0 %v3382
  %4610 = vmatpush1.bf16.msra.mxu0 %v3381
  %4611 = vmatprep.subr.bf16.mxu0 %v3397
  %4612 = vmatpush1.bf16.msra.mxu0 %v3396
  %4613 = vmatprep.subr.bf16.mxu0 %v3412
  %4614 = vmatpush1.bf16.msra.mxu0 %v3411
  %4615 = vmatprep.subr.bf16.mxu0 %v3427
  %4616 = vmatpush1.bf16.msra.mxu0 %v3426
  %4617 = vmatprep.subr.bf16.mxu0 %v3442
  %4618 = vmatpush1.bf16.msra.mxu0 %v3441
  %4619 = vmatprep.subr.bf16.mxu0 %v3457
  %4620 = vmatpush1.bf16.msra.mxu0 %v3456
  %4621 = vmatprep.subr.bf16.mxu0 %v3472
  %4622 = vmatpush1.bf16.msra.mxu0 %v3471
  %4623 = vmatprep.subr.bf16.mxu0 %v3487
  %4624 = vmatpush1.bf16.msra.mxu0 %v3486
  %4625 = vmatprep.subr.bf16.mxu0 %v3502
  %4626 = vmatpush1.bf16.msra.mxu0 %v3501
  %4627 = vmatprep.subr.bf16.mxu0 %v3517
  %4628 = vmatpush1.bf16.msra.mxu0 %v3516
  %4629 = vmatprep.subr.bf16.mxu0 %v3532
  %4630 = vmatpush1.bf16.msra.mxu0 %v3531
  %4631 = vmatprep.subr.bf16.mxu0 %v3547
  %4632 = vmatpush1.bf16.msra.mxu0 %v3546
  %4633 = vmatprep.subr.bf16.mxu0 %v3562
  %4634 = vmatpush1.bf16.msra.mxu0 %v3561
  %4635 = vmatprep.subr.bf16.mxu0 %v3577
  %4636 = vmatpush1.bf16.msra.mxu0 %v3576
  %4637 = vmatprep.subr.bf16.mxu0 %v3592
  %4638 = vmatpush1.bf16.msra.mxu0 %v3591
  %4639 = vmatprep.mubr.bf16.mxu0 %v911
  %4640 = vmatmul.mubr.bf16.gmra.mrb[0].mxu0 %v910
  %v4641 = vpop.f32.mrb[0].mxu0
  %v4642 = vadd.f32 %v4601, %v4641
  %v4643 = vpop.f32.mrb[0].mxu0
  %v4644 = vadd.f32 %v4603, %v4643
  %v4645 = vpop.f32.mrb[0].mxu0
  %v4646 = vpop.f32.mrb[0].mxu0
  %4647 = vdwg.mxu0
  %4648 = vmatprep.subr.bf16.mxu0 %v3607
  %4649 = vmatpush1.bf16.msra.mxu0 %v3606
  %4650 = vmatprep.subr.bf16.mxu0 %v3622
  %4651 = vmatpush1.bf16.msra.mxu0 %v3621
  %4652 = vmatprep.subr.bf16.mxu0 %v3637
  %4653 = vmatpush1.bf16.msra.mxu0 %v3636
  %4654 = vmatprep.subr.bf16.mxu0 %v3652
  %4655 = vmatpush1.bf16.msra.mxu0 %v3651
  %4656 = vmatprep.subr.bf16.mxu0 %v3667
  %4657 = vmatpush1.bf16.msra.mxu0 %v3666
  %4658 = vmatprep.subr.bf16.mxu0 %v3682
  %4659 = vmatpush1.bf16.msra.mxu0 %v3681
  %4660 = vmatprep.subr.bf16.mxu0 %v3697
  %4661 = vmatpush1.bf16.msra.mxu0 %v3696
  %4662 = vmatprep.subr.bf16.mxu0 %v3712
  %4663 = vmatpush1.bf16.msra.mxu0 %v3711
  %4664 = vmatprep.subr.bf16.mxu0 %v3727
  %4665 = vmatpush1.bf16.msra.mxu0 %v3726
  %4666 = vmatprep.subr.bf16.mxu0 %v3742
  %4667 = vmatpush1.bf16.msra.mxu0 %v3741
  %4668 = vmatprep.subr.bf16.mxu0 %v3757
  %4669 = vmatpush1.bf16.msra.mxu0 %v3756
  %4670 = vmatprep.subr.bf16.mxu0 %v3772
  %4671 = vmatpush1.bf16.msra.mxu0 %v3771
  %4672 = vmatprep.subr.bf16.mxu0 %v3787
  %4673 = vmatpush1.bf16.msra.mxu0 %v3786
  %4674 = vmatprep.subr.bf16.mxu0 %v3802
  %4675 = vmatpush1.bf16.msra.mxu0 %v3801
  %4676 = vmatprep.subr.bf16.mxu0 %v3817
  %4677 = vmatpush1.bf16.msra.mxu0 %v3816
  %4678 = vmatprep.subr.bf16.mxu0 %v3832
  %4679 = vmatpush1.bf16.msra.mxu0 %v3831
  %4680 = vmatprep.mubr.bf16.mxu0 %v909
  %4681 = vmatmul.mubr.bf16.gmra.mrb[0].mxu0 %v895
  %v4682 = vpop.f32.mrb[0].mxu0
  %v4683 = vadd.f32 %v4642, %v4682
  %v4684 = vpop.f32.mrb[0].mxu0
  %v4685 = vadd.f32 %v4644, %v4684
  %v4686 = vpop.f32.mrb[0].mxu0
  %v4687 = vpop.f32.mrb[0].mxu0
  %4688 = vdwg.mxu0
  %4689 = vmatprep.subr.bf16.mxu0 %v3129
  %4690 = vmatpush1.bf16.msra.mxu0 %v3128
  %4691 = vmatprep.subr.bf16.mxu0 %v3144
  %4692 = vmatpush1.bf16.msra.mxu0 %v3143
  %4693 = vmatprep.subr.bf16.mxu0 %v3159
  %4694 = vmatpush1.bf16.msra.mxu0 %v3158
  %4695 = vmatprep.subr.bf16.mxu0 %v3174
  %4696 = vmatpush1.bf16.msra.mxu0 %v3173
  %4697 = vmatprep.subr.bf16.mxu0 %v3189
  %4698 = vmatpush1.bf16.msra.mxu0 %v3188
  %4699 = vmatprep.subr.bf16.mxu0 %v3204
  %4700 = vmatpush1.bf16.msra.mxu0 %v3203
  %4701 = vmatprep.subr.bf16.mxu0 %v3219
  %4702 = vmatpush1.bf16.msra.mxu0 %v3218
  %4703 = vmatprep.subr.bf16.mxu0 %v3234
  %4704 = vmatpush1.bf16.msra.mxu0 %v3233
  %4705 = vmatprep.subr.bf16.mxu0 %v3249
  %4706 = vmatpush1.bf16.msra.mxu0 %v3248
  %4707 = vmatprep.subr.bf16.mxu0 %v3264
  %4708 = vmatpush1.bf16.msra.mxu0 %v3263
  %4709 = vmatprep.subr.bf16.mxu0 %v3279
  %4710 = vmatpush1.bf16.msra.mxu0 %v3278
  %4711 = vmatprep.subr.bf16.mxu0 %v3294
  %4712 = vmatpush1.bf16.msra.mxu0 %v3293
  %4713 = vmatprep.subr.bf16.mxu0 %v3309
  %4714 = vmatpush1.bf16.msra.mxu0 %v3308
  %4715 = vmatprep.subr.bf16.mxu0 %v3324
  %4716 = vmatpush1.bf16.msra.mxu0 %v3323
  %4717 = vmatprep.subr.bf16.mxu0 %v3339
  %4718 = vmatpush1.bf16.msra.mxu0 %v3338
  %4719 = vmatprep.subr.bf16.mxu0 %v3354
  %4720 = vmatpush1.bf16.msra.mxu0 %v3353
  %4721 = vmatprep.mubr.bf16.mxu0 %v902
  %4722 = vmatmul.mubr.bf16.gmra.mrb[0].mxu0 %v888
  %v4723 = vpop.f32.mrb[0].mxu0
  %v4724 = vadd.f32 %v800, %v4723
  %v4725 = vpop.f32.mrb[0].mxu0
  %v4726 = vadd.f32 %v804, %v4725
  %v4727 = vpop.f32.mrb[0].mxu0
  %v4728 = vpop.f32.mrb[0].mxu0
  %4729 = vdwg.mxu0
  %4730 = vmatprep.subr.bf16.mxu0 %v3369
  %4731 = vmatpush1.bf16.msra.mxu0 %v3368
  %4732 = vmatprep.subr.bf16.mxu0 %v3384
  %4733 = vmatpush1.bf16.msra.mxu0 %v3383
  %4734 = vmatprep.subr.bf16.mxu0 %v3399
  %4735 = vmatpush1.bf16.msra.mxu0 %v3398
  %4736 = vmatprep.subr.bf16.mxu0 %v3414
  %4737 = vmatpush1.bf16.msra.mxu0 %v3413
  %4738 = vmatprep.subr.bf16.mxu0 %v3429
  %4739 = vmatpush1.bf16.msra.mxu0 %v3428
  %4740 = vmatprep.subr.bf16.mxu0 %v3444
  %4741 = vmatpush1.bf16.msra.mxu0 %v3443
  %4742 = vmatprep.subr.bf16.mxu0 %v3459
  %4743 = vmatpush1.bf16.msra.mxu0 %v3458
  %4744 = vmatprep.subr.bf16.mxu0 %v3474
  %4745 = vmatpush1.bf16.msra.mxu0 %v3473
  %4746 = vmatprep.subr.bf16.mxu0 %v3489
  %4747 = vmatpush1.bf16.msra.mxu0 %v3488
  %4748 = vmatprep.subr.bf16.mxu0 %v3504
  %4749 = vmatpush1.bf16.msra.mxu0 %v3503
  %4750 = vmatprep.subr.bf16.mxu0 %v3519
  %4751 = vmatpush1.bf16.msra.mxu0 %v3518
  %4752 = vmatprep.subr.bf16.mxu0 %v3534
  %4753 = vmatpush1.bf16.msra.mxu0 %v3533
  %4754 = vmatprep.subr.bf16.mxu0 %v3549
  %4755 = vmatpush1.bf16.msra.mxu0 %v3548
  %4756 = vmatprep.subr.bf16.mxu0 %v3564
  %4757 = vmatpush1.bf16.msra.mxu0 %v3563
  %4758 = vmatprep.subr.bf16.mxu0 %v3579
  %4759 = vmatpush1.bf16.msra.mxu0 %v3578
  %4760 = vmatprep.subr.bf16.mxu0 %v3594
  %4761 = vmatpush1.bf16.msra.mxu0 %v3593
  %4762 = vmatprep.mubr.bf16.mxu0 %v911
  %4763 = vmatmul.mubr.bf16.gmra.mrb[0].mxu0 %v910
  %v4764 = vpop.f32.mrb[0].mxu0
  %v4765 = vadd.f32 %v4724, %v4764
  %v4766 = vpop.f32.mrb[0].mxu0
  %v4767 = vadd.f32 %v4726, %v4766
  %v4768 = vpop.f32.mrb[0].mxu0
  %v4769 = vpop.f32.mrb[0].mxu0
  %4770 = vdwg.mxu0
  %4771 = vmatprep.subr.bf16.mxu0 %v3609
  %4772 = vmatpush1.bf16.msra.mxu0 %v3608
  %4773 = vmatprep.subr.bf16.mxu0 %v3624
  %4774 = vmatpush1.bf16.msra.mxu0 %v3623
  %4775 = vmatprep.subr.bf16.mxu0 %v3639
  %4776 = vmatpush1.bf16.msra.mxu0 %v3638
  %4777 = vmatprep.subr.bf16.mxu0 %v3654
  %4778 = vmatpush1.bf16.msra.mxu0 %v3653
  %4779 = vmatprep.subr.bf16.mxu0 %v3669
  %4780 = vmatpush1.bf16.msra.mxu0 %v3668
  %4781 = vmatprep.subr.bf16.mxu0 %v3684
  %4782 = vmatpush1.bf16.msra.mxu0 %v3683
  %4783 = vmatprep.subr.bf16.mxu0 %v3699
  %4784 = vmatpush1.bf16.msra.mxu0 %v3698
  %4785 = vmatprep.subr.bf16.mxu0 %v3714
  %4786 = vmatpush1.bf16.msra.mxu0 %v3713
  %4787 = vmatprep.subr.bf16.mxu0 %v3729
  %4788 = vmatpush1.bf16.msra.mxu0 %v3728
  %4789 = vmatprep.subr.bf16.mxu0 %v3744
  %4790 = vmatpush1.bf16.msra.mxu0 %v3743
  %4791 = vmatprep.subr.bf16.mxu0 %v3759
  %4792 = vmatpush1.bf16.msra.mxu0 %v3758
  %4793 = vmatprep.subr.bf16.mxu0 %v3774
  %4794 = vmatpush1.bf16.msra.mxu0 %v3773
  %4795 = vmatprep.subr.bf16.mxu0 %v3789
  %4796 = vmatpush1.bf16.msra.mxu0 %v3788
  %4797 = vmatprep.subr.bf16.mxu0 %v3804
  %4798 = vmatpush1.bf16.msra.mxu0 %v3803
  %4799 = vmatprep.subr.bf16.mxu0 %v3819
  %4800 = vmatpush1.bf16.msra.mxu0 %v3818
  %4801 = vmatprep.subr.bf16.mxu0 %v3834
  %4802 = vmatpush1.bf16.msra.mxu0 %v3833
  %4803 = vmatprep.mubr.bf16.mxu0 %v909
  %4804 = vmatmul.mubr.bf16.gmra.mrb[0].mxu0 %v895
  %v4805 = vpop.f32.mrb[0].mxu0
  %v4806 = vadd.f32 %v4765, %v4805
  %v4807 = vpop.f32.mrb[0].mxu0
  %v4808 = vadd.f32 %v4767, %v4807
  %v4809 = vpop.f32.mrb[0].mxu0
  %v4810 = vpop.f32.mrb[0].mxu0
  %4811 = vdwg.mxu0
  %4812 = vmatprep.subr.bf16.mxu0 %v3131
  %4813 = vmatpush1.bf16.msra.mxu0 %v3130
  %4814 = vmatprep.subr.bf16.mxu0 %v3146
  %4815 = vmatpush1.bf16.msra.mxu0 %v3145
  %4816 = vmatprep.subr.bf16.mxu0 %v3161
  %4817 = vmatpush1.bf16.msra.mxu0 %v3160
  %4818 = vmatprep.subr.bf16.mxu0 %v3176
  %4819 = vmatpush1.bf16.msra.mxu0 %v3175
  %4820 = vmatprep.subr.bf16.mxu0 %v3191
  %4821 = vmatpush1.bf16.msra.mxu0 %v3190
  %4822 = vmatprep.subr.bf16.mxu0 %v3206
  %4823 = vmatpush1.bf16.msra.mxu0 %v3205
  %4824 = vmatprep.subr.bf16.mxu0 %v3221
  %4825 = vmatpush1.bf16.msra.mxu0 %v3220
  %4826 = vmatprep.subr.bf16.mxu0 %v3236
  %4827 = vmatpush1.bf16.msra.mxu0 %v3235
  %4828 = vmatprep.subr.bf16.mxu0 %v3251
  %4829 = vmatpush1.bf16.msra.mxu0 %v3250
  %4830 = vmatprep.subr.bf16.mxu0 %v3266
  %4831 = vmatpush1.bf16.msra.mxu0 %v3265
  %4832 = vmatprep.subr.bf16.mxu0 %v3281
  %4833 = vmatpush1.bf16.msra.mxu0 %v3280
  %4834 = vmatprep.subr.bf16.mxu0 %v3296
  %4835 = vmatpush1.bf16.msra.mxu0 %v3295
  %4836 = vmatprep.subr.bf16.mxu0 %v3311
  %4837 = vmatpush1.bf16.msra.mxu0 %v3310
  %4838 = vmatprep.subr.bf16.mxu0 %v3326
  %4839 = vmatpush1.bf16.msra.mxu0 %v3325
  %4840 = vmatprep.subr.bf16.mxu0 %v3341
  %4841 = vmatpush1.bf16.msra.mxu0 %v3340
  %4842 = vmatprep.subr.bf16.mxu0 %v3356
  %4843 = vmatpush1.bf16.msra.mxu0 %v3355
  %4844 = vmatprep.mubr.bf16.mxu0 %v902
  %4845 = vmatmul.mubr.bf16.gmra.mrb[0].mxu0 %v888
  %v4846 = vpop.f32.mrb[0].mxu0
  %v4847 = vadd.f32 %v808, %v4846
  %v4848 = vpop.f32.mrb[0].mxu0
  %v4849 = vadd.f32 %v812, %v4848
  %v4850 = vpop.f32.mrb[0].mxu0
  %v4851 = vpop.f32.mrb[0].mxu0
  %4852 = vdwg.mxu0
  %4853 = vmatprep.subr.bf16.mxu0 %v3371
  %4854 = vmatpush1.bf16.msra.mxu0 %v3370
  %4855 = vmatprep.subr.bf16.mxu0 %v3386
  %4856 = vmatpush1.bf16.msra.mxu0 %v3385
  %4857 = vmatprep.subr.bf16.mxu0 %v3401
  %4858 = vmatpush1.bf16.msra.mxu0 %v3400
  %4859 = vmatprep.subr.bf16.mxu0 %v3416
  %4860 = vmatpush1.bf16.msra.mxu0 %v3415
  %4861 = vmatprep.subr.bf16.mxu0 %v3431
  %4862 = vmatpush1.bf16.msra.mxu0 %v3430
  %4863 = vmatprep.subr.bf16.mxu0 %v3446
  %4864 = vmatpush1.bf16.msra.mxu0 %v3445
  %4865 = vmatprep.subr.bf16.mxu0 %v3461
  %4866 = vmatpush1.bf16.msra.mxu0 %v3460
  %4867 = vmatprep.subr.bf16.mxu0 %v3476
  %4868 = vmatpush1.bf16.msra.mxu0 %v3475
  %4869 = vmatprep.subr.bf16.mxu0 %v3491
  %4870 = vmatpush1.bf16.msra.mxu0 %v3490
  %4871 = vmatprep.subr.bf16.mxu0 %v3506
  %4872 = vmatpush1.bf16.msra.mxu0 %v3505
  %4873 = vmatprep.subr.bf16.mxu0 %v3521
  %4874 = vmatpush1.bf16.msra.mxu0 %v3520
  %4875 = vmatprep.subr.bf16.mxu0 %v3536
  %4876 = vmatpush1.bf16.msra.mxu0 %v3535
  %4877 = vmatprep.subr.bf16.mxu0 %v3551
  %4878 = vmatpush1.bf16.msra.mxu0 %v3550
  %4879 = vmatprep.subr.bf16.mxu0 %v3566
  %4880 = vmatpush1.bf16.msra.mxu0 %v3565
  %4881 = vmatprep.subr.bf16.mxu0 %v3581
  %4882 = vmatpush1.bf16.msra.mxu0 %v3580
  %4883 = vmatprep.subr.bf16.mxu0 %v3596
  %4884 = vmatpush1.bf16.msra.mxu0 %v3595
  %4885 = vmatprep.mubr.bf16.mxu0 %v911
  %4886 = vmatmul.mubr.bf16.gmra.mrb[0].mxu0 %v910
  %v4887 = vpop.f32.mrb[0].mxu0
  %v4888 = vadd.f32 %v4847, %v4887
  %v4889 = vpop.f32.mrb[0].mxu0
  %v4890 = vadd.f32 %v4849, %v4889
  %v4891 = vpop.f32.mrb[0].mxu0
  %v4892 = vpop.f32.mrb[0].mxu0
  %4893 = vdwg.mxu0
  %4894 = vmatprep.subr.bf16.mxu0 %v3611
  %4895 = vmatpush1.bf16.msra.mxu0 %v3610
  %4896 = vmatprep.subr.bf16.mxu0 %v3626
  %4897 = vmatpush1.bf16.msra.mxu0 %v3625
  %4898 = vmatprep.subr.bf16.mxu0 %v3641
  %4899 = vmatpush1.bf16.msra.mxu0 %v3640
  %4900 = vmatprep.subr.bf16.mxu0 %v3656
  %4901 = vmatpush1.bf16.msra.mxu0 %v3655
  %4902 = vmatprep.subr.bf16.mxu0 %v3671
  %4903 = vmatpush1.bf16.msra.mxu0 %v3670
  %4904 = vmatprep.subr.bf16.mxu0 %v3686
  %4905 = vmatpush1.bf16.msra.mxu0 %v3685
  %4906 = vmatprep.subr.bf16.mxu0 %v3701
  %4907 = vmatpush1.bf16.msra.mxu0 %v3700
  %4908 = vmatprep.subr.bf16.mxu0 %v3716
  %4909 = vmatpush1.bf16.msra.mxu0 %v3715
  %4910 = vmatprep.subr.bf16.mxu0 %v3731
  %4911 = vmatpush1.bf16.msra.mxu0 %v3730
  %4912 = vmatprep.subr.bf16.mxu0 %v3746
  %4913 = vmatpush1.bf16.msra.mxu0 %v3745
  %4914 = vmatprep.subr.bf16.mxu0 %v3761
  %4915 = vmatpush1.bf16.msra.mxu0 %v3760
  %4916 = vmatprep.subr.bf16.mxu0 %v3776
  %4917 = vmatpush1.bf16.msra.mxu0 %v3775
  %4918 = vmatprep.subr.bf16.mxu0 %v3791
  %4919 = vmatpush1.bf16.msra.mxu0 %v3790
  %4920 = vmatprep.subr.bf16.mxu0 %v3806
  %4921 = vmatpush1.bf16.msra.mxu0 %v3805
  %4922 = vmatprep.subr.bf16.mxu0 %v3821
  %4923 = vmatpush1.bf16.msra.mxu0 %v3820
  %4924 = vmatprep.subr.bf16.mxu0 %v3836
  %4925 = vmatpush1.bf16.msra.mxu0 %v3835
  %4926 = vmatprep.mubr.bf16.mxu0 %v909
  %4927 = vmatmul.mubr.bf16.gmra.mrb[0].mxu0 %v895
  %v4928 = vpop.f32.mrb[0].mxu0
  %v4929 = vadd.f32 %v4888, %v4928
  %v4930 = vpop.f32.mrb[0].mxu0
  %v4931 = vadd.f32 %v4890, %v4930
  %v4932 = vpop.f32.mrb[0].mxu0
  %v4933 = vpop.f32.mrb[0].mxu0
  %4934 = vdwg.mxu0
  %4935 = vmatprep.subr.bf16.mxu0 %v3133
  %4936 = vmatpush1.bf16.msra.mxu0 %v3132
  %4937 = vmatprep.subr.bf16.mxu0 %v3148
  %4938 = vmatpush1.bf16.msra.mxu0 %v3147
  %4939 = vmatprep.subr.bf16.mxu0 %v3163
  %4940 = vmatpush1.bf16.msra.mxu0 %v3162
  %4941 = vmatprep.subr.bf16.mxu0 %v3178
  %4942 = vmatpush1.bf16.msra.mxu0 %v3177
  %4943 = vmatprep.subr.bf16.mxu0 %v3193
  %4944 = vmatpush1.bf16.msra.mxu0 %v3192
  %4945 = vmatprep.subr.bf16.mxu0 %v3208
  %4946 = vmatpush1.bf16.msra.mxu0 %v3207
  %4947 = vmatprep.subr.bf16.mxu0 %v3223
  %4948 = vmatpush1.bf16.msra.mxu0 %v3222
  %4949 = vmatprep.subr.bf16.mxu0 %v3238
  %4950 = vmatpush1.bf16.msra.mxu0 %v3237
  %4951 = vmatprep.subr.bf16.mxu0 %v3253
  %4952 = vmatpush1.bf16.msra.mxu0 %v3252
  %4953 = vmatprep.subr.bf16.mxu0 %v3268
  %4954 = vmatpush1.bf16.msra.mxu0 %v3267
  %4955 = vmatprep.subr.bf16.mxu0 %v3283
  %4956 = vmatpush1.bf16.msra.mxu0 %v3282
  %4957 = vmatprep.subr.bf16.mxu0 %v3298
  %4958 = vmatpush1.bf16.msra.mxu0 %v3297
  %4959 = vmatprep.subr.bf16.mxu0 %v3313
  %4960 = vmatpush1.bf16.msra.mxu0 %v3312
  %4961 = vmatprep.subr.bf16.mxu0 %v3328
  %4962 = vmatpush1.bf16.msra.mxu0 %v3327
  %4963 = vmatprep.subr.bf16.mxu0 %v3343
  %4964 = vmatpush1.bf16.msra.mxu0 %v3342
  %4965 = vmatprep.subr.bf16.mxu0 %v3358
  %4966 = vmatpush1.bf16.msra.mxu0 %v3357
  %4967 = vmatprep.mubr.bf16.mxu0 %v902
  %4968 = vmatmul.mubr.bf16.gmra.mrb[0].mxu0 %v888
  %v4969 = vpop.f32.mrb[0].mxu0
  %v4970 = vadd.f32 %v816, %v4969
  %v4971 = vpop.f32.mrb[0].mxu0
  %v4972 = vadd.f32 %v820, %v4971
  %v4973 = vpop.f32.mrb[0].mxu0
  %v4974 = vpop.f32.mrb[0].mxu0
  %4975 = vdwg.mxu0
  %4976 = vmatprep.subr.bf16.mxu0 %v3373
  %4977 = vmatpush1.bf16.msra.mxu0 %v3372
  %4978 = vmatprep.subr.bf16.mxu0 %v3388
  %4979 = vmatpush1.bf16.msra.mxu0 %v3387
  %4980 = vmatprep.subr.bf16.mxu0 %v3403
  %4981 = vmatpush1.bf16.msra.mxu0 %v3402
  %4982 = vmatprep.subr.bf16.mxu0 %v3418
  %4983 = vmatpush1.bf16.msra.mxu0 %v3417
  %4984 = vmatprep.subr.bf16.mxu0 %v3433
  %4985 = vmatpush1.bf16.msra.mxu0 %v3432
  %4986 = vmatprep.subr.bf16.mxu0 %v3448
  %4987 = vmatpush1.bf16.msra.mxu0 %v3447
  %4988 = vmatprep.subr.bf16.mxu0 %v3463
  %4989 = vmatpush1.bf16.msra.mxu0 %v3462
  %4990 = vmatprep.subr.bf16.mxu0 %v3478
  %4991 = vmatpush1.bf16.msra.mxu0 %v3477
  %4992 = vmatprep.subr.bf16.mxu0 %v3493
  %4993 = vmatpush1.bf16.msra.mxu0 %v3492
  %4994 = vmatprep.subr.bf16.mxu0 %v3508
  %4995 = vmatpush1.bf16.msra.mxu0 %v3507
  %4996 = vmatprep.subr.bf16.mxu0 %v3523
  %4997 = vmatpush1.bf16.msra.mxu0 %v3522
  %4998 = vmatprep.subr.bf16.mxu0 %v3538
  %4999 = vmatpush1.bf16.msra.mxu0 %v3537
  %5000 = vmatprep.subr.bf16.mxu0 %v3553
  %5001 = vmatpush1.bf16.msra.mxu0 %v3552
  %5002 = vmatprep.subr.bf16.mxu0 %v3568
  %5003 = vmatpush1.bf16.msra.mxu0 %v3567
  %5004 = vmatprep.subr.bf16.mxu0 %v3583
  %5005 = vmatpush1.bf16.msra.mxu0 %v3582
  %5006 = vmatprep.subr.bf16.mxu0 %v3598
  %5007 = vmatpush1.bf16.msra.mxu0 %v3597
  %5008 = vmatprep.mubr.bf16.mxu0 %v911
  %5009 = vmatmul.mubr.bf16.gmra.mrb[0].mxu0 %v910
  %v5010 = vpop.f32.mrb[0].mxu0
  %v5011 = vadd.f32 %v4970, %v5010
  %v5012 = vpop.f32.mrb[0].mxu0
  %v5013 = vadd.f32 %v4972, %v5012
  %v5014 = vpop.f32.mrb[0].mxu0
  %v5015 = vpop.f32.mrb[0].mxu0
  %5016 = vdwg.mxu0
  %5017 = vmatprep.subr.bf16.mxu0 %v3613
  %5018 = vmatpush1.bf16.msra.mxu0 %v3612
  %5019 = vmatprep.subr.bf16.mxu0 %v3628
  %5020 = vmatpush1.bf16.msra.mxu0 %v3627
  %5021 = vmatprep.subr.bf16.mxu0 %v3643
  %5022 = vmatpush1.bf16.msra.mxu0 %v3642
  %5023 = vmatprep.subr.bf16.mxu0 %v3658
  %5024 = vmatpush1.bf16.msra.mxu0 %v3657
  %5025 = vmatprep.subr.bf16.mxu0 %v3673
  %5026 = vmatpush1.bf16.msra.mxu0 %v3672
  %5027 = vmatprep.subr.bf16.mxu0 %v3688
  %5028 = vmatpush1.bf16.msra.mxu0 %v3687
  %5029 = vmatprep.subr.bf16.mxu0 %v3703
  %5030 = vmatpush1.bf16.msra.mxu0 %v3702
  %5031 = vmatprep.subr.bf16.mxu0 %v3718
  %5032 = vmatpush1.bf16.msra.mxu0 %v3717
  %5033 = vmatprep.subr.bf16.mxu0 %v3733
  %5034 = vmatpush1.bf16.msra.mxu0 %v3732
  %5035 = vmatprep.subr.bf16.mxu0 %v3748
  %5036 = vmatpush1.bf16.msra.mxu0 %v3747
  %5037 = vmatprep.subr.bf16.mxu0 %v3763
  %5038 = vmatpush1.bf16.msra.mxu0 %v3762
  %5039 = vmatprep.subr.bf16.mxu0 %v3778
  %5040 = vmatpush1.bf16.msra.mxu0 %v3777
  %5041 = vmatprep.subr.bf16.mxu0 %v3793
  %5042 = vmatpush1.bf16.msra.mxu0 %v3792
  %5043 = vmatprep.subr.bf16.mxu0 %v3808
  %5044 = vmatpush1.bf16.msra.mxu0 %v3807
  %5045 = vmatprep.subr.bf16.mxu0 %v3823
  %5046 = vmatpush1.bf16.msra.mxu0 %v3822
  %5047 = vmatprep.subr.bf16.mxu0 %v3838
  %5048 = vmatpush1.bf16.msra.mxu0 %v3837
  %5049 = vmatprep.mubr.bf16.mxu0 %v909
  %5050 = vmatmul.mubr.bf16.gmra.mrb[0].mxu0 %v895
  %v5051 = vpop.f32.mrb[0].mxu0
  %v5052 = vadd.f32 %v5011, %v5051
  %v5053 = vpop.f32.mrb[0].mxu0
  %v5054 = vadd.f32 %v5013, %v5053
  %v5055 = vpop.f32.mrb[0].mxu0
  %v5056 = vpop.f32.mrb[0].mxu0
  %5057 = vdwg.mxu0
  %5058 = vmatprep.subr.bf16.mxu0 %v3135
  %5059 = vmatpush1.bf16.msra.mxu0 %v3134
  %5060 = vmatprep.subr.bf16.mxu0 %v3150
  %5061 = vmatpush1.bf16.msra.mxu0 %v3149
  %5062 = vmatprep.subr.bf16.mxu0 %v3165
  %5063 = vmatpush1.bf16.msra.mxu0 %v3164
  %5064 = vmatprep.subr.bf16.mxu0 %v3180
  %5065 = vmatpush1.bf16.msra.mxu0 %v3179
  %5066 = vmatprep.subr.bf16.mxu0 %v3195
  %5067 = vmatpush1.bf16.msra.mxu0 %v3194
  %5068 = vmatprep.subr.bf16.mxu0 %v3210
  %5069 = vmatpush1.bf16.msra.mxu0 %v3209
  %5070 = vmatprep.subr.bf16.mxu0 %v3225
  %5071 = vmatpush1.bf16.msra.mxu0 %v3224
  %5072 = vmatprep.subr.bf16.mxu0 %v3240
  %5073 = vmatpush1.bf16.msra.mxu0 %v3239
  %5074 = vmatprep.subr.bf16.mxu0 %v3255
  %5075 = vmatpush1.bf16.msra.mxu0 %v3254
  %5076 = vmatprep.subr.bf16.mxu0 %v3270
  %5077 = vmatpush1.bf16.msra.mxu0 %v3269
  %5078 = vmatprep.subr.bf16.mxu0 %v3285
  %5079 = vmatpush1.bf16.msra.mxu0 %v3284
  %5080 = vmatprep.subr.bf16.mxu0 %v3300
  %5081 = vmatpush1.bf16.msra.mxu0 %v3299
  %5082 = vmatprep.subr.bf16.mxu0 %v3315
  %5083 = vmatpush1.bf16.msra.mxu0 %v3314
  %5084 = vmatprep.subr.bf16.mxu0 %v3330
  %5085 = vmatpush1.bf16.msra.mxu0 %v3329
  %5086 = vmatprep.subr.bf16.mxu0 %v3345
  %5087 = vmatpush1.bf16.msra.mxu0 %v3344
  %5088 = vmatprep.subr.bf16.mxu0 %v3360
  %5089 = vmatpush1.bf16.msra.mxu0 %v3359
  %5090 = vmatprep.mubr.bf16.mxu0 %v902
  %5091 = vmatmul.mubr.bf16.gmra.mrb[0].mxu0 %v888
  %v5092 = vpop.f32.mrb[0].mxu0
  %v5093 = vadd.f32 %v824, %v5092
  %v5094 = vpop.f32.mrb[0].mxu0
  %v5095 = vadd.f32 %v828, %v5094
  %v5096 = vpop.f32.mrb[0].mxu0
  %v5097 = vpop.f32.mrb[0].mxu0
  %5098 = vdwg.mxu0
  %5099 = vmatprep.subr.bf16.mxu0 %v3375
  %5100 = vmatpush1.bf16.msra.mxu0 %v3374
  %5101 = vmatprep.subr.bf16.mxu0 %v3390
  %5102 = vmatpush1.bf16.msra.mxu0 %v3389
  %5103 = vmatprep.subr.bf16.mxu0 %v3405
  %5104 = vmatpush1.bf16.msra.mxu0 %v3404
  %5105 = vmatprep.subr.bf16.mxu0 %v3420
  %5106 = vmatpush1.bf16.msra.mxu0 %v3419
  %5107 = vmatprep.subr.bf16.mxu0 %v3435
  %5108 = vmatpush1.bf16.msra.mxu0 %v3434
  %5109 = vmatprep.subr.bf16.mxu0 %v3450
  %5110 = vmatpush1.bf16.msra.mxu0 %v3449
  %5111 = vmatprep.subr.bf16.mxu0 %v3465
  %5112 = vmatpush1.bf16.msra.mxu0 %v3464
  %5113 = vmatprep.subr.bf16.mxu0 %v3480
  %5114 = vmatpush1.bf16.msra.mxu0 %v3479
  %5115 = vmatprep.subr.bf16.mxu0 %v3495
  %5116 = vmatpush1.bf16.msra.mxu0 %v3494
  %5117 = vmatprep.subr.bf16.mxu0 %v3510
  %5118 = vmatpush1.bf16.msra.mxu0 %v3509
  %5119 = vmatprep.subr.bf16.mxu0 %v3525
  %5120 = vmatpush1.bf16.msra.mxu0 %v3524
  %5121 = vmatprep.subr.bf16.mxu0 %v3540
  %5122 = vmatpush1.bf16.msra.mxu0 %v3539
  %5123 = vmatprep.subr.bf16.mxu0 %v3555
  %5124 = vmatpush1.bf16.msra.mxu0 %v3554
  %5125 = vmatprep.subr.bf16.mxu0 %v3570
  %5126 = vmatpush1.bf16.msra.mxu0 %v3569
  %5127 = vmatprep.subr.bf16.mxu0 %v3585
  %5128 = vmatpush1.bf16.msra.mxu0 %v3584
  %5129 = vmatprep.subr.bf16.mxu0 %v3600
  %5130 = vmatpush1.bf16.msra.mxu0 %v3599
  %5131 = vmatprep.mubr.bf16.mxu0 %v911
  %5132 = vmatmul.mubr.bf16.gmra.mrb[0].mxu0 %v910
  %v5133 = vpop.f32.mrb[0].mxu0
  %v5134 = vadd.f32 %v5093, %v5133
  %v5135 = vpop.f32.mrb[0].mxu0
  %v5136 = vadd.f32 %v5095, %v5135
  %v5137 = vpop.f32.mrb[0].mxu0
  %v5138 = vpop.f32.mrb[0].mxu0
  %5139 = vdwg.mxu0
  %5140 = vmatprep.subr.bf16.mxu0 %v3615
  %5141 = vmatpush1.bf16.msra.mxu0 %v3614
  %5142 = vmatprep.subr.bf16.mxu0 %v3630
  %5143 = vmatpush1.bf16.msra.mxu0 %v3629
  %5144 = vmatprep.subr.bf16.mxu0 %v3645
  %5145 = vmatpush1.bf16.msra.mxu0 %v3644
  %5146 = vmatprep.subr.bf16.mxu0 %v3660
  %5147 = vmatpush1.bf16.msra.mxu0 %v3659
  %5148 = vmatprep.subr.bf16.mxu0 %v3675
  %5149 = vmatpush1.bf16.msra.mxu0 %v3674
  %5150 = vmatprep.subr.bf16.mxu0 %v3690
  %5151 = vmatpush1.bf16.msra.mxu0 %v3689
  %5152 = vmatprep.subr.bf16.mxu0 %v3705
  %5153 = vmatpush1.bf16.msra.mxu0 %v3704
  %5154 = vmatprep.subr.bf16.mxu0 %v3720
  %5155 = vmatpush1.bf16.msra.mxu0 %v3719
  %5156 = vmatprep.subr.bf16.mxu0 %v3735
  %5157 = vmatpush1.bf16.msra.mxu0 %v3734
  %5158 = vmatprep.subr.bf16.mxu0 %v3750
  %5159 = vmatpush1.bf16.msra.mxu0 %v3749
  %5160 = vmatprep.subr.bf16.mxu0 %v3765
  %5161 = vmatpush1.bf16.msra.mxu0 %v3764
  %5162 = vmatprep.subr.bf16.mxu0 %v3780
  %5163 = vmatpush1.bf16.msra.mxu0 %v3779
  %5164 = vmatprep.subr.bf16.mxu0 %v3795
  %5165 = vmatpush1.bf16.msra.mxu0 %v3794
  %5166 = vmatprep.subr.bf16.mxu0 %v3810
  %5167 = vmatpush1.bf16.msra.mxu0 %v3809
  %5168 = vmatprep.subr.bf16.mxu0 %v3825
  %5169 = vmatpush1.bf16.msra.mxu0 %v3824
  %5170 = vmatprep.subr.bf16.mxu0 %v3840
  %5171 = vmatpush1.bf16.msra.mxu0 %v3839
  %5172 = vmatprep.mubr.bf16.mxu0 %v909
  %5173 = vmatmul.mubr.bf16.gmra.mrb[0].mxu0 %v895
  %v5174 = vpop.f32.mrb[0].mxu0
  %v5175 = vadd.f32 %v5134, %v5174
  %v5176 = vpop.f32.mrb[0].mxu0
  %v5177 = vadd.f32 %v5136, %v5176
  %v5178 = vpop.f32.mrb[0].mxu0
  %v5179 = vpop.f32.mrb[0].mxu0
  %5180 = vdwg.mxu0
  %5181 = vmatprep.subr.bf16.mxu0 %v3137
  %5182 = vmatpush1.bf16.msra.mxu0 %v3136
  %5183 = vmatprep.subr.bf16.mxu0 %v3152
  %5184 = vmatpush1.bf16.msra.mxu0 %v3151
  %5185 = vmatprep.subr.bf16.mxu0 %v3167
  %5186 = vmatpush1.bf16.msra.mxu0 %v3166
  %5187 = vmatprep.subr.bf16.mxu0 %v3182
  %5188 = vmatpush1.bf16.msra.mxu0 %v3181
  %5189 = vmatprep.subr.bf16.mxu0 %v3197
  %5190 = vmatpush1.bf16.msra.mxu0 %v3196
  %5191 = vmatprep.subr.bf16.mxu0 %v3212
  %5192 = vmatpush1.bf16.msra.mxu0 %v3211
  %5193 = vmatprep.subr.bf16.mxu0 %v3227
  %5194 = vmatpush1.bf16.msra.mxu0 %v3226
  %5195 = vmatprep.subr.bf16.mxu0 %v3242
  %5196 = vmatpush1.bf16.msra.mxu0 %v3241
  %5197 = vmatprep.subr.bf16.mxu0 %v3257
  %5198 = vmatpush1.bf16.msra.mxu0 %v3256
  %5199 = vmatprep.subr.bf16.mxu0 %v3272
  %5200 = vmatpush1.bf16.msra.mxu0 %v3271
  %5201 = vmatprep.subr.bf16.mxu0 %v3287
  %5202 = vmatpush1.bf16.msra.mxu0 %v3286
  %5203 = vmatprep.subr.bf16.mxu0 %v3302
  %5204 = vmatpush1.bf16.msra.mxu0 %v3301
  %5205 = vmatprep.subr.bf16.mxu0 %v3317
  %5206 = vmatpush1.bf16.msra.mxu0 %v3316
  %5207 = vmatprep.subr.bf16.mxu0 %v3332
  %5208 = vmatpush1.bf16.msra.mxu0 %v3331
  %5209 = vmatprep.subr.bf16.mxu0 %v3347
  %5210 = vmatpush1.bf16.msra.mxu0 %v3346
  %5211 = vmatprep.subr.bf16.mxu0 %v3362
  %5212 = vmatpush1.bf16.msra.mxu0 %v3361
  %5213 = vmatprep.mubr.bf16.mxu0 %v902
  %5214 = vmatmul.mubr.bf16.gmra.mrb[0].mxu0 %v888
  %v5215 = vpop.f32.mrb[0].mxu0
  %v5216 = vadd.f32 %v832, %v5215
  %v5217 = vpop.f32.mrb[0].mxu0
  %v5218 = vadd.f32 %v836, %v5217
  %v5219 = vpop.f32.mrb[0].mxu0
  %v5220 = vpop.f32.mrb[0].mxu0
  %5221 = vdwg.mxu0
  %5222 = vmatprep.subr.bf16.mxu0 %v3377
  %5223 = vmatpush1.bf16.msra.mxu0 %v3376
  %5224 = vmatprep.subr.bf16.mxu0 %v3392
  %5225 = vmatpush1.bf16.msra.mxu0 %v3391
  %5226 = vmatprep.subr.bf16.mxu0 %v3407
  %5227 = vmatpush1.bf16.msra.mxu0 %v3406
  %5228 = vmatprep.subr.bf16.mxu0 %v3422
  %5229 = vmatpush1.bf16.msra.mxu0 %v3421
  %5230 = vmatprep.subr.bf16.mxu0 %v3437
  %5231 = vmatpush1.bf16.msra.mxu0 %v3436
  %5232 = vmatprep.subr.bf16.mxu0 %v3452
  %5233 = vmatpush1.bf16.msra.mxu0 %v3451
  %5234 = vmatprep.subr.bf16.mxu0 %v3467
  %5235 = vmatpush1.bf16.msra.mxu0 %v3466
  %5236 = vmatprep.subr.bf16.mxu0 %v3482
  %5237 = vmatpush1.bf16.msra.mxu0 %v3481
  %5238 = vmatprep.subr.bf16.mxu0 %v3497
  %5239 = vmatpush1.bf16.msra.mxu0 %v3496
  %5240 = vmatprep.subr.bf16.mxu0 %v3512
  %5241 = vmatpush1.bf16.msra.mxu0 %v3511
  %5242 = vmatprep.subr.bf16.mxu0 %v3527
  %5243 = vmatpush1.bf16.msra.mxu0 %v3526
  %5244 = vmatprep.subr.bf16.mxu0 %v3542
  %5245 = vmatpush1.bf16.msra.mxu0 %v3541
  %5246 = vmatprep.subr.bf16.mxu0 %v3557
  %5247 = vmatpush1.bf16.msra.mxu0 %v3556
  %5248 = vmatprep.subr.bf16.mxu0 %v3572
  %5249 = vmatpush1.bf16.msra.mxu0 %v3571
  %5250 = vmatprep.subr.bf16.mxu0 %v3587
  %5251 = vmatpush1.bf16.msra.mxu0 %v3586
  %5252 = vmatprep.subr.bf16.mxu0 %v3602
  %5253 = vmatpush1.bf16.msra.mxu0 %v3601
  %5254 = vmatprep.mubr.bf16.mxu0 %v911
  %5255 = vmatmul.mubr.bf16.gmra.mrb[0].mxu0 %v910
  %v5256 = vpop.f32.mrb[0].mxu0
  %v5257 = vadd.f32 %v5216, %v5256
  %v5258 = vpop.f32.mrb[0].mxu0
  %v5259 = vadd.f32 %v5218, %v5258
  %v5260 = vpop.f32.mrb[0].mxu0
  %v5261 = vpop.f32.mrb[0].mxu0
  %5262 = vdwg.mxu0
  %5263 = vmatprep.subr.bf16.mxu0 %v3617
  %5264 = vmatpush1.bf16.msra.mxu0 %v3616
  %5265 = vmatprep.subr.bf16.mxu0 %v3632
  %5266 = vmatpush1.bf16.msra.mxu0 %v3631
  %5267 = vmatprep.subr.bf16.mxu0 %v3647
  %5268 = vmatpush1.bf16.msra.mxu0 %v3646
  %5269 = vmatprep.subr.bf16.mxu0 %v3662
  %5270 = vmatpush1.bf16.msra.mxu0 %v3661
  %5271 = vmatprep.subr.bf16.mxu0 %v3677
  %5272 = vmatpush1.bf16.msra.mxu0 %v3676
  %5273 = vmatprep.subr.bf16.mxu0 %v3692
  %5274 = vmatpush1.bf16.msra.mxu0 %v3691
  %5275 = vmatprep.subr.bf16.mxu0 %v3707
  %5276 = vmatpush1.bf16.msra.mxu0 %v3706
  %5277 = vmatprep.subr.bf16.mxu0 %v3722
  %5278 = vmatpush1.bf16.msra.mxu0 %v3721
  %5279 = vmatprep.subr.bf16.mxu0 %v3737
  %5280 = vmatpush1.bf16.msra.mxu0 %v3736
  %5281 = vmatprep.subr.bf16.mxu0 %v3752
  %5282 = vmatpush1.bf16.msra.mxu0 %v3751
  %5283 = vmatprep.subr.bf16.mxu0 %v3767
  %5284 = vmatpush1.bf16.msra.mxu0 %v3766
  %5285 = vmatprep.subr.bf16.mxu0 %v3782
  %5286 = vmatpush1.bf16.msra.mxu0 %v3781
  %5287 = vmatprep.subr.bf16.mxu0 %v3797
  %5288 = vmatpush1.bf16.msra.mxu0 %v3796
  %5289 = vmatprep.subr.bf16.mxu0 %v3812
  %5290 = vmatpush1.bf16.msra.mxu0 %v3811
  %5291 = vmatprep.subr.bf16.mxu0 %v3827
  %5292 = vmatpush1.bf16.msra.mxu0 %v3826
  %5293 = vmatprep.subr.bf16.mxu0 %v3842
  %5294 = vmatpush1.bf16.msra.mxu0 %v3841
  %5295 = vmatprep.mubr.bf16.mxu0 %v909
  %5296 = vmatmul.mubr.bf16.gmra.mrb[0].mxu0 %v895
  %v5297 = vpop.f32.mrb[0].mxu0
  %v5298 = vadd.f32 %v5257, %v5297
  %v5299 = vpop.f32.mrb[0].mxu0
  %v5300 = vadd.f32 %v5259, %v5299
  %v5301 = vpop.f32.mrb[0].mxu0
  %v5302 = vpop.f32.mrb[0].mxu0
  %5303 = vdwg.mxu0
  %5304 = vmatprep.subr.bf16.mxu0 %v3139
  %5305 = vmatpush1.bf16.msra.mxu0 %v3138
  %5306 = vmatprep.subr.bf16.mxu0 %v3154
  %5307 = vmatpush1.bf16.msra.mxu0 %v3153
  %5308 = vmatprep.subr.bf16.mxu0 %v3169
  %5309 = vmatpush1.bf16.msra.mxu0 %v3168
  %5310 = vmatprep.subr.bf16.mxu0 %v3184
  %5311 = vmatpush1.bf16.msra.mxu0 %v3183
  %5312 = vmatprep.subr.bf16.mxu0 %v3199
  %5313 = vmatpush1.bf16.msra.mxu0 %v3198
  %5314 = vmatprep.subr.bf16.mxu0 %v3214
  %5315 = vmatpush1.bf16.msra.mxu0 %v3213
  %5316 = vmatprep.subr.bf16.mxu0 %v3229
  %5317 = vmatpush1.bf16.msra.mxu0 %v3228
  %5318 = vmatprep.subr.bf16.mxu0 %v3244
  %5319 = vmatpush1.bf16.msra.mxu0 %v3243
  %5320 = vmatprep.subr.bf16.mxu0 %v3259
  %5321 = vmatpush1.bf16.msra.mxu0 %v3258
  %5322 = vmatprep.subr.bf16.mxu0 %v3274
  %5323 = vmatpush1.bf16.msra.mxu0 %v3273
  %5324 = vmatprep.subr.bf16.mxu0 %v3289
  %5325 = vmatpush1.bf16.msra.mxu0 %v3288
  %5326 = vmatprep.subr.bf16.mxu0 %v3304
  %5327 = vmatpush1.bf16.msra.mxu0 %v3303
  %5328 = vmatprep.subr.bf16.mxu0 %v3319
  %5329 = vmatpush1.bf16.msra.mxu0 %v3318
  %5330 = vmatprep.subr.bf16.mxu0 %v3334
  %5331 = vmatpush1.bf16.msra.mxu0 %v3333
  %5332 = vmatprep.subr.bf16.mxu0 %v3349
  %5333 = vmatpush1.bf16.msra.mxu0 %v3348
  %5334 = vmatprep.subr.bf16.mxu0 %v3364
  %5335 = vmatpush1.bf16.msra.mxu0 %v3363
  %5336 = vmatprep.mubr.bf16.mxu0 %v902
  %5337 = vmatmul.mubr.bf16.gmra.mrb[0].mxu0 %v888
  %v5338 = vpop.f32.mrb[0].mxu0
  %v5339 = vadd.f32 %v840, %v5338
  %v5340 = vpop.f32.mrb[0].mxu0
  %v5341 = vadd.f32 %v844, %v5340
  %v5342 = vpop.f32.mrb[0].mxu0
  %v5343 = vpop.f32.mrb[0].mxu0
  %5344 = vdwg.mxu0
  %5345 = vmatprep.subr.bf16.mxu0 %v3379
  %5346 = vmatpush1.bf16.msra.mxu0 %v3378
  %5347 = vmatprep.subr.bf16.mxu0 %v3394
  %5348 = vmatpush1.bf16.msra.mxu0 %v3393
  %5349 = vmatprep.subr.bf16.mxu0 %v3409
  %5350 = vmatpush1.bf16.msra.mxu0 %v3408
  %5351 = vmatprep.subr.bf16.mxu0 %v3424
  %5352 = vmatpush1.bf16.msra.mxu0 %v3423
  %5353 = vmatprep.subr.bf16.mxu0 %v3439
  %5354 = vmatpush1.bf16.msra.mxu0 %v3438
  %5355 = vmatprep.subr.bf16.mxu0 %v3454
  %5356 = vmatpush1.bf16.msra.mxu0 %v3453
  %5357 = vmatprep.subr.bf16.mxu0 %v3469
  %5358 = vmatpush1.bf16.msra.mxu0 %v3468
  %5359 = vmatprep.subr.bf16.mxu0 %v3484
  %5360 = vmatpush1.bf16.msra.mxu0 %v3483
  %5361 = vmatprep.subr.bf16.mxu0 %v3499
  %5362 = vmatpush1.bf16.msra.mxu0 %v3498
  %5363 = vmatprep.subr.bf16.mxu0 %v3514
  %5364 = vmatpush1.bf16.msra.mxu0 %v3513
  %5365 = vmatprep.subr.bf16.mxu0 %v3529
  %5366 = vmatpush1.bf16.msra.mxu0 %v3528
  %5367 = vmatprep.subr.bf16.mxu0 %v3544
  %5368 = vmatpush1.bf16.msra.mxu0 %v3543
  %5369 = vmatprep.subr.bf16.mxu0 %v3559
  %5370 = vmatpush1.bf16.msra.mxu0 %v3558
  %5371 = vmatprep.subr.bf16.mxu0 %v3574
  %5372 = vmatpush1.bf16.msra.mxu0 %v3573
  %5373 = vmatprep.subr.bf16.mxu0 %v3589
  %5374 = vmatpush1.bf16.msra.mxu0 %v3588
  %5375 = vmatprep.subr.bf16.mxu0 %v3604
  %5376 = vmatpush1.bf16.msra.mxu0 %v3603
  %5377 = vmatprep.mubr.bf16.mxu0 %v911
  %5378 = vmatmul.mubr.bf16.gmra.mrb[0].mxu0 %v910
  %v5379 = vpop.f32.mrb[0].mxu0
  %v5380 = vadd.f32 %v5339, %v5379
  %v5381 = vpop.f32.mrb[0].mxu0
  %v5382 = vadd.f32 %v5341, %v5381
  %v5383 = vpop.f32.mrb[0].mxu0
  %v5384 = vpop.f32.mrb[0].mxu0
  %5385 = vdwg.mxu0
  %5386 = vmatprep.subr.bf16.mxu0 %v3619
  %5387 = vmatpush1.bf16.msra.mxu0 %v3618
  %5388 = vmatprep.subr.bf16.mxu0 %v3634
  %5389 = vmatpush1.bf16.msra.mxu0 %v3633
  %5390 = vmatprep.subr.bf16.mxu0 %v3649
  %5391 = vmatpush1.bf16.msra.mxu0 %v3648
  %5392 = vmatprep.subr.bf16.mxu0 %v3664
  %5393 = vmatpush1.bf16.msra.mxu0 %v3663
  %5394 = vmatprep.subr.bf16.mxu0 %v3679
  %5395 = vmatpush1.bf16.msra.mxu0 %v3678
  %5396 = vmatprep.subr.bf16.mxu0 %v3694
  %5397 = vmatpush1.bf16.msra.mxu0 %v3693
  %5398 = vmatprep.subr.bf16.mxu0 %v3709
  %5399 = vmatpush1.bf16.msra.mxu0 %v3708
  %5400 = vmatprep.subr.bf16.mxu0 %v3724
  %5401 = vmatpush1.bf16.msra.mxu0 %v3723
  %5402 = vmatprep.subr.bf16.mxu0 %v3739
  %5403 = vmatpush1.bf16.msra.mxu0 %v3738
  %5404 = vmatprep.subr.bf16.mxu0 %v3754
  %5405 = vmatpush1.bf16.msra.mxu0 %v3753
  %5406 = vmatprep.subr.bf16.mxu0 %v3769
  %5407 = vmatpush1.bf16.msra.mxu0 %v3768
  %5408 = vmatprep.subr.bf16.mxu0 %v3784
  %5409 = vmatpush1.bf16.msra.mxu0 %v3783
  %5410 = vmatprep.subr.bf16.mxu0 %v3799
  %5411 = vmatpush1.bf16.msra.mxu0 %v3798
  %5412 = vmatprep.subr.bf16.mxu0 %v3814
  %5413 = vmatpush1.bf16.msra.mxu0 %v3813
  %5414 = vmatprep.subr.bf16.mxu0 %v3829
  %5415 = vmatpush1.bf16.msra.mxu0 %v3828
  %5416 = vmatprep.subr.bf16.mxu0 %v3844
  %5417 = vmatpush1.bf16.msra.mxu0 %v3843
  %5418 = vmatprep.mubr.bf16.mxu0 %v909
  %5419 = vmatmul.mubr.bf16.gmra.mrb[0].mxu0 %v895
  %v5420 = vpop.f32.mrb[0].mxu0
  %v5421 = vadd.f32 %v5380, %v5420
  %v5422 = vpop.f32.mrb[0].mxu0
  %v5423 = vadd.f32 %v5382, %v5422
  %v5424 = vpop.f32.mrb[0].mxu0
  %v5425 = vpop.f32.mrb[0].mxu0
  %5426 = vdwg.mxu0
  %5427 = vmatprep.subr.bf16.mxu0 0
  %5428 = vmatpush1.bf16.msra.mxu0 %v3140
  %5429 = vmatprep.subr.bf16.mxu0 0
  %5430 = vmatpush1.bf16.msra.mxu0 %v3155
  %5431 = vmatprep.subr.bf16.mxu0 0
  %5432 = vmatpush1.bf16.msra.mxu0 %v3170
  %5433 = vmatprep.subr.bf16.mxu0 0
  %5434 = vmatpush1.bf16.msra.mxu0 %v3185
  %5435 = vmatprep.subr.bf16.mxu0 0
  %5436 = vmatpush1.bf16.msra.mxu0 %v3200
  %5437 = vmatprep.subr.bf16.mxu0 0
  %5438 = vmatpush1.bf16.msra.mxu0 %v3215
  %5439 = vmatprep.subr.bf16.mxu0 0
  %5440 = vmatpush1.bf16.msra.mxu0 %v3230
  %5441 = vmatprep.subr.bf16.mxu0 0
  %5442 = vmatpush1.bf16.msra.mxu0 %v3245
  %5443 = vmatprep.subr.bf16.mxu0 0
  %5444 = vmatpush1.bf16.msra.mxu0 %v3260
  %5445 = vmatprep.subr.bf16.mxu0 0
  %5446 = vmatpush1.bf16.msra.mxu0 %v3275
  %5447 = vmatprep.subr.bf16.mxu0 0
  %5448 = vmatpush1.bf16.msra.mxu0 %v3290
  %5449 = vmatprep.subr.bf16.mxu0 0
  %5450 = vmatpush1.bf16.msra.mxu0 %v3305
  %5451 = vmatprep.subr.bf16.mxu0 0
  %5452 = vmatpush1.bf16.msra.mxu0 %v3320
  %5453 = vmatprep.subr.bf16.mxu0 0
  %5454 = vmatpush1.bf16.msra.mxu0 %v3335
  %5455 = vmatprep.subr.bf16.mxu0 0
  %5456 = vmatpush1.bf16.msra.mxu0 %v3350
  %5457 = vmatprep.subr.bf16.mxu0 0
  %5458 = vmatpush1.bf16.msra.mxu0 %v3365
  %5459 = vmatprep.mubr.bf16.mxu0 %v902
  %5460 = vmatmul.mubr.bf16.gmra.mrb[0].mxu0 %v888
  %v5461 = vpop.f32.mrb[0].mxu0
  %v5462 = vadd.f32 %v848, %v5461
  %v5463 = vpop.f32.mrb[0].mxu0
  %v5464 = vpop.f32.mrb[0].mxu0
  %v5465 = vpop.f32.mrb[0].mxu0
  %5466 = vdwg.mxu0
  %5467 = vmatprep.subr.bf16.mxu0 0
  %5468 = vmatpush1.bf16.msra.mxu0 %v3380
  %5469 = vmatprep.subr.bf16.mxu0 0
  %5470 = vmatpush1.bf16.msra.mxu0 %v3395
  %5471 = vmatprep.subr.bf16.mxu0 0
  %5472 = vmatpush1.bf16.msra.mxu0 %v3410
  %5473 = vmatprep.subr.bf16.mxu0 0
  %5474 = vmatpush1.bf16.msra.mxu0 %v3425
  %5475 = vmatprep.subr.bf16.mxu0 0
  %5476 = vmatpush1.bf16.msra.mxu0 %v3440
  %5477 = vmatprep.subr.bf16.mxu0 0
  %5478 = vmatpush1.bf16.msra.mxu0 %v3455
  %5479 = vmatprep.subr.bf16.mxu0 0
  %5480 = vmatpush1.bf16.msra.mxu0 %v3470
  %5481 = vmatprep.subr.bf16.mxu0 0
  %5482 = vmatpush1.bf16.msra.mxu0 %v3485
  %5483 = vmatprep.subr.bf16.mxu0 0
  %5484 = vmatpush1.bf16.msra.mxu0 %v3500
  %5485 = vmatprep.subr.bf16.mxu0 0
  %5486 = vmatpush1.bf16.msra.mxu0 %v3515
  %5487 = vmatprep.subr.bf16.mxu0 0
  %5488 = vmatpush1.bf16.msra.mxu0 %v3530
  %5489 = vmatprep.subr.bf16.mxu0 0
  %5490 = vmatpush1.bf16.msra.mxu0 %v3545
  %5491 = vmatprep.subr.bf16.mxu0 0
  %5492 = vmatpush1.bf16.msra.mxu0 %v3560
  %5493 = vmatprep.subr.bf16.mxu0 0
  %5494 = vmatpush1.bf16.msra.mxu0 %v3575
  %5495 = vmatprep.subr.bf16.mxu0 0
  %5496 = vmatpush1.bf16.msra.mxu0 %v3590
  %5497 = vmatprep.subr.bf16.mxu0 0
  %5498 = vmatpush1.bf16.msra.mxu0 %v3605
  %5499 = vmatprep.mubr.bf16.mxu0 %v911
  %5500 = vmatmul.mubr.bf16.gmra.mrb[0].mxu0 %v910
  %v5501 = vpop.f32.mrb[0].mxu0
  %v5502 = vadd.f32 %v5462, %v5501
  %v5503 = vpop.f32.mrb[0].mxu0
  %v5504 = vpop.f32.mrb[0].mxu0
  %v5505 = vpop.f32.mrb[0].mxu0
  %5506 = vdwg.mxu0
  %5507 = vmatprep.subr.bf16.mxu0 0
  %5508 = vmatpush1.bf16.msra.mxu0 %v3620
  %5509 = vmatprep.subr.bf16.mxu0 0
  %5510 = vmatpush1.bf16.msra.mxu0 %v3635
  %5511 = vmatprep.subr.bf16.mxu0 0
  %5512 = vmatpush1.bf16.msra.mxu0 %v3650
  %5513 = vmatprep.subr.bf16.mxu0 0
  %5514 = vmatpush1.bf16.msra.mxu0 %v3665
  %5515 = vmatprep.subr.bf16.mxu0 0
  %5516 = vmatpush1.bf16.msra.mxu0 %v3680
  %5517 = vmatprep.subr.bf16.mxu0 0
  %5518 = vmatpush1.bf16.msra.mxu0 %v3695
  %5519 = vmatprep.subr.bf16.mxu0 0
  %5520 = vmatpush1.bf16.msra.mxu0 %v3710
  %5521 = vmatprep.subr.bf16.mxu0 0
  %5522 = vmatpush1.bf16.msra.mxu0 %v3725
  %5523 = vmatprep.subr.bf16.mxu0 0
  %5524 = vmatpush1.bf16.msra.mxu0 %v3740
  %5525 = vmatprep.subr.bf16.mxu0 0
  %5526 = vmatpush1.bf16.msra.mxu0 %v3755
  %5527 = vmatprep.subr.bf16.mxu0 0
  %5528 = vmatpush1.bf16.msra.mxu0 %v3770
  %5529 = vmatprep.subr.bf16.mxu0 0
  %5530 = vmatpush1.bf16.msra.mxu0 %v3785
  %5531 = vmatprep.subr.bf16.mxu0 0
  %5532 = vmatpush1.bf16.msra.mxu0 %v3800
  %5533 = vmatprep.subr.bf16.mxu0 0
  %5534 = vmatpush1.bf16.msra.mxu0 %v3815
  %5535 = vmatprep.subr.bf16.mxu0 0
  %5536 = vmatpush1.bf16.msra.mxu0 %v3830
  %5537 = vmatprep.subr.bf16.mxu0 0
  %5538 = vmatpush1.bf16.msra.mxu0 %v3845
  %5539 = vmatprep.mubr.bf16.mxu0 %v909
  %5540 = vmatmul.mubr.bf16.gmra.mrb[0].mxu0 %v895
  %v5541 = vpop.f32.mrb[0].mxu0
  %v5542 = vadd.f32 %v5502, %v5541
  %v5543 = vpop.f32.mrb[0].mxu0
  %v5544 = vpop.f32.mrb[0].mxu0
  %v5545 = vpop.f32.mrb[0].mxu0
  %5546 = vdwg.mxu0
  %v5547 = vxor.u32 %v4683, 2147483648
  %v5548 = vxor.u32 %v4685, 2147483648
  %v5549 = vxor.u32 %v4806, 2147483648
  %v5550 = vxor.u32 %v4808, 2147483648
  %v5551 = vxor.u32 %v4929, 2147483648
  %v5552 = vxor.u32 %v4931, 2147483648
  %v5553 = vxor.u32 %v5052, 2147483648
  %v5554 = vxor.u32 %v5054, 2147483648
  %v5555 = vxor.u32 %v5175, 2147483648
  %v5556 = vxor.u32 %v5177, 2147483648
  %v5557 = vxor.u32 %v5298, 2147483648
  %v5558 = vxor.u32 %v5300, 2147483648
  %v5559 = vxor.u32 %v5421, 2147483648
  %v5560 = vxor.u32 %v5423, 2147483648
  %v5561 = vxor.u32 %v5542, 2147483648
  %v5562 = vmul.f32 %v5547, 1.442695
  %v5563 = vpow.pop %v5562
  %v5564 = vmul.f32 %v5548, 1.442695
  %v5565 = vpow.pop %v5564
  %v5566 = vmul.f32 %v5549, 1.442695
  %v5567 = vpow.pop %v5566
  %v5568 = vmul.f32 %v5550, 1.442695
  %v5569 = vpow.pop %v5568
  %v5570 = vmul.f32 %v5551, 1.442695
  %v5571 = vpow.pop %v5570
  %v5572 = vmul.f32 %v5552, 1.442695
  %v5573 = vpow.pop %v5572
  %v5574 = vmul.f32 %v5553, 1.442695
  %v5575 = vpow.pop %v5574
  %v5576 = vmul.f32 %v5554, 1.442695
  %v5577 = vpow.pop %v5576
  %v5578 = vmul.f32 %v5555, 1.442695
  %v5579 = vpow.pop %v5578
  %v5580 = vmul.f32 %v5556, 1.442695
  %v5581 = vpow.pop %v5580
  %v5582 = vmul.f32 %v5557, 1.442695
  %v5583 = vpow.pop %v5582
  %v5584 = vmul.f32 %v5558, 1.442695
  %v5585 = vpow.pop %v5584
  %v5586 = vmul.f32 %v5559, 1.442695
  %v5587 = vpow.pop %v5586
  %v5588 = vmul.f32 %v5560, 1.442695
  %v5589 = vpow.pop %v5588
  %v5590 = vmul.f32 %v5561, 1.442695
  %v5591 = vpow.pop %v5590
  %v5592 = vadd.f32 %v5563, 1.0
  %v5593 = vadd.f32 %v5565, 1.0
  %v5594 = vadd.f32 %v5567, 1.0
  %v5595 = vadd.f32 %v5569, 1.0
  %v5596 = vadd.f32 %v5571, 1.0
  %v5597 = vadd.f32 %v5573, 1.0
  %v5598 = vadd.f32 %v5575, 1.0
  %v5599 = vadd.f32 %v5577, 1.0
  %v5600 = vadd.f32 %v5579, 1.0
  %v5601 = vadd.f32 %v5581, 1.0
  %v5602 = vadd.f32 %v5583, 1.0
  %v5603 = vadd.f32 %v5585, 1.0
  %v5604 = vadd.f32 %v5587, 1.0
  %v5605 = vadd.f32 %v5589, 1.0
  %v5606 = vadd.f32 %v5591, 1.0
  %v5607 = vrcp.pop %v5592
  %v5608 = vmul.f32 1.0, %v5607
  %v5609 = vrcp.pop %v5593
  %v5610 = vmul.f32 1.0, %v5609
  %v5611 = vrcp.pop %v5594
  %v5612 = vmul.f32 1.0, %v5611
  %v5613 = vrcp.pop %v5595
  %v5614 = vmul.f32 1.0, %v5613
  %v5615 = vrcp.pop %v5596
  %v5616 = vmul.f32 1.0, %v5615
  %v5617 = vrcp.pop %v5597
  %v5618 = vmul.f32 1.0, %v5617
  %v5619 = vrcp.pop %v5598
  %v5620 = vmul.f32 1.0, %v5619
  %v5621 = vrcp.pop %v5599
  %v5622 = vmul.f32 1.0, %v5621
  %v5623 = vrcp.pop %v5600
  %v5624 = vmul.f32 1.0, %v5623
  %v5625 = vrcp.pop %v5601
  %v5626 = vmul.f32 1.0, %v5625
  %v5627 = vrcp.pop %v5602
  %v5628 = vmul.f32 1.0, %v5627
  %v5629 = vrcp.pop %v5603
  %v5630 = vmul.f32 1.0, %v5629
  %v5631 = vrcp.pop %v5604
  %v5632 = vmul.f32 1.0, %v5631
  %v5633 = vrcp.pop %v5605
  %v5634 = vmul.f32 1.0, %v5633
  %v5635 = vrcp.pop %v5606
  %v5636 = vmul.f32 1.0, %v5635
  %s5637 = scalar_lea.vmem %s2, 1
  %v5638 = vld [vmem:[%s5637] ss:$2 sm:$0xff]
  %s5639 = scalar_lea.vmem %s2, 17
  %v5640 = vld [vmem:[%s5639] ss:$2 sm:$0xff]
  %v5643 = vlaneseq
  %v5644 = vshrl.u32 %v5643, 7
  %v5645 = vsub.s32 0, %v5644
  %v5646 = vrot.slane %v5638, %v5645
  %v5647 = vlaneseq
  %v5648 = vshrl.u32 %v5647, 7
  %v5649 = vsub.s32 1, %v5648
  %v5650 = vrot.slane %v5638, %v5649
  %v5651 = vlaneseq
  %v5652 = vshrl.u32 %v5651, 7
  %v5653 = vsub.s32 2, %v5652
  %v5654 = vrot.slane %v5638, %v5653
  %v5655 = vlaneseq
  %v5656 = vshrl.u32 %v5655, 7
  %v5657 = vsub.s32 3, %v5656
  %v5658 = vrot.slane %v5638, %v5657
  %v5659 = vlaneseq
  %v5660 = vshrl.u32 %v5659, 7
  %v5661 = vsub.s32 4, %v5660
  %v5662 = vrot.slane %v5638, %v5661
  %v5663 = vlaneseq
  %v5664 = vshrl.u32 %v5663, 7
  %v5665 = vsub.s32 5, %v5664
  %v5666 = vrot.slane %v5638, %v5665
  %v5667 = vlaneseq
  %v5668 = vshrl.u32 %v5667, 7
  %v5669 = vsub.s32 6, %v5668
  %v5670 = vrot.slane %v5638, %v5669
  %v5671 = vlaneseq
  %v5672 = vshrl.u32 %v5671, 7
  %v5673 = vsub.s32 7, %v5672
  %v5674 = vrot.slane %v5638, %v5673
  %v5675 = vlaneseq
  %v5676 = vshrl.u32 %v5675, 7
  %v5677 = vsub.s32 0, %v5676
  %v5678 = vrot.slane %v5640, %v5677
  %v5679 = vlaneseq
  %v5680 = vshrl.u32 %v5679, 7
  %v5681 = vsub.s32 1, %v5680
  %v5682 = vrot.slane %v5640, %v5681
  %v5683 = vlaneseq
  %v5684 = vshrl.u32 %v5683, 7
  %v5685 = vsub.s32 2, %v5684
  %v5686 = vrot.slane %v5640, %v5685
  %v5687 = vlaneseq
  %v5688 = vshrl.u32 %v5687, 7
  %v5689 = vsub.s32 3, %v5688
  %v5690 = vrot.slane %v5640, %v5689
  %v5691 = vlaneseq
  %v5692 = vshrl.u32 %v5691, 7
  %v5693 = vsub.s32 4, %v5692
  %v5694 = vrot.slane %v5640, %v5693
  %v5695 = vlaneseq
  %v5696 = vshrl.u32 %v5695, 7
  %v5697 = vsub.s32 5, %v5696
  %v5698 = vrot.slane %v5640, %v5697
  %v5699 = vlaneseq
  %v5700 = vshrl.u32 %v5699, 7
  %v5701 = vsub.s32 6, %v5700
  %v5702 = vrot.slane %v5640, %v5701
  %v5718 = vmul.f32 %v5608, %v5646
  %v5719 = vmul.f32 %v5610, %v5650
  %v5720 = vmul.f32 %v5612, %v5654
  %v5721 = vmul.f32 %v5614, %v5658
  %v5722 = vmul.f32 %v5616, %v5662
  %v5723 = vmul.f32 %v5618, %v5666
  %v5724 = vmul.f32 %v5620, %v5670
  %v5725 = vmul.f32 %v5622, %v5674
  %v5726 = vmul.f32 %v5624, %v5678
  %v5727 = vmul.f32 %v5626, %v5682
  %v5728 = vmul.f32 %v5628, %v5686
  %v5729 = vmul.f32 %v5630, %v5690
  %v5730 = vmul.f32 %v5632, %v5694
  %v5731 = vmul.f32 %v5634, %v5698
  %v5732 = vmul.f32 %v5636, %v5702
  %v5748 = vcombine.low %v5718, %v5719
  %v5749 = vcombine.low %v5720, %v5721
  %v5751 = vunpack.c.l.s4 1983009808
  %v5752 = vunpack.c.0.s8 %v5751
  %v5753 = vlaneseq
  %v5754 = vshrl.u32 %v5753, 7
  %v5755 = vsub.s32 %v5752, %v5754
  %v5756 = vrot.slane %v5748, %v5755
  %v5758 = vunpack.c.l.s4 1983009808
  %v5759 = vunpack.c.0.s8 %v5758
  %v5760 = vlaneseq
  %v5761 = vshrl.u32 %v5760, 7
  %v5762 = vsub.s32 %v5759, %v5761
  %v5763 = vrot.slane %v5749, %v5762
  %v5764 = vcombine.low %v5756, %v5763
  %v5765 = vcombine.low %v5722, %v5723
  %v5766 = vcombine.low %v5724, %v5725
  %v5768 = vunpack.c.l.s4 1983009808
  %v5769 = vunpack.c.0.s8 %v5768
  %v5770 = vlaneseq
  %v5771 = vshrl.u32 %v5770, 7
  %v5772 = vsub.s32 %v5769, %v5771
  %v5773 = vrot.slane %v5765, %v5772
  %v5775 = vunpack.c.l.s4 1983009808
  %v5776 = vunpack.c.0.s8 %v5775
  %v5777 = vlaneseq
  %v5778 = vshrl.u32 %v5777, 7
  %v5779 = vsub.s32 %v5776, %v5778
  %v5780 = vrot.slane %v5766, %v5779
  %v5781 = vcombine.low %v5773, %v5780
  %v5782 = vcombine.low %v5726, %v5727
  %v5783 = vcombine.low %v5728, %v5729
  %v5785 = vunpack.c.l.s4 1983009808
  %v5786 = vunpack.c.0.s8 %v5785
  %v5787 = vlaneseq
  %v5788 = vshrl.u32 %v5787, 7
  %v5789 = vsub.s32 %v5786, %v5788
  %v5790 = vrot.slane %v5782, %v5789
  %v5792 = vunpack.c.l.s4 1983009808
  %v5793 = vunpack.c.0.s8 %v5792
  %v5794 = vlaneseq
  %v5795 = vshrl.u32 %v5794, 7
  %v5796 = vsub.s32 %v5793, %v5795
  %v5797 = vrot.slane %v5783, %v5796
  %v5798 = vcombine.low %v5790, %v5797
  %v5799 = vcombine.low %v5730, %v5731
  %v5801 = vunpack.c.l.s4 1983009808
  %v5802 = vunpack.c.0.s8 %v5801
  %v5803 = vlaneseq
  %v5804 = vshrl.u32 %v5803, 7
  %v5805 = vsub.s32 %v5802, %v5804
  %v5806 = vrot.slane %v5799, %v5805
  %v5808 = vunpack.c.l.s4 1983009808
  %v5809 = vunpack.c.0.s8 %v5808
  %v5810 = vlaneseq
  %v5811 = vshrl.u32 %v5810, 7
  %v5812 = vsub.s32 %v5809, %v5811
  %v5813 = vrot.slane %v5732, %v5812
  %v5814 = vcombine.low %v5806, %v5813
  %5819 = vst [vmem:[%s3] sm:$0xff] %v5764
  %5820 = vst [vmem:[%s3 + $0x8] sm:$0xff] %v5781
  %5821 = vst [vmem:[%s3 + $0x10] sm:$0xff] %v5798
  %5822 = vst [vmem:[%s3 + $0x18] sm:$0x3f] %v5814
  // Predicated region
  $region14: #{detection_model_forward.1} parent=0 // pred_check
    _
  $region15: #{detection_model_forward.1} parent=0 // pred_check_branch
    %5824 = sbr.rel (0) target = $region17
  $region16: #{detection_model_forward.1} parent=0 // pred_region
    _
  $region17: #{detection_model_forward.1} parent=0 // pred_fallthru
    _
  // Predicated region
  $region18: #{detection_model_forward.1} parent=0 // pred_check
    _
  $region19: #{detection_model_forward.1} parent=0 // pred_check_branch
    %5826 = sbr.rel (0) target = $region21
  $region20: #{detection_model_forward.1} parent=0 // pred_region
    _
  $region21: #{detection_model_forward.1} parent=0 // pred_fallthru
    _

</llo_original>
